<compile_context>
chip_gen: v7x
topology: tpu7x:2x2x1
jax: 0.10.0
libtpu: 0.0.40
codegen_flags: <defaults>
</compile_context>

<pallas_src>
import functools
from itertools import combinations

import numpy as np
import jax
import jax.numpy as jnp
from jax.experimental import pallas as pl
from jax.experimental.pallas import tpu as pltpu

# ------------------------------------------------------------------ config ---
IN_CHANNELS = 32          # in_channels == out_channels for every graph layer
VIS_FEAT = 16             # visual_feat_size
VIS_PROJ = 8              # args.visual_feat_size_after_proj
NUM_CLASSES = 10
NUM_RELATIONS = 3         # memory graph relations
NUM_BRIDGE_RELATIONS = 4  # memory / maptype / ddetr / scene_memory
OBJECTS_PER_SCENE = 2     # args.objects_per_scene
SCENES_PER_BATCH = 2      # args.scenes_per_batch
TOP_K = 5
LOGIT_PAD = 128           # lane-dense logits store
GROUP_BLK = 16            # 16-row node blocks (bf16 sublane tile friendly)

BRIDGE_MEMORY, BRIDGE_MAPTYPE, BRIDGE_DDETR, BRIDGE_SCENE_MEM = 0, 1, 2, 3

_VMEM = functools.partial(pl.BlockSpec, memory_space=pltpu.MemorySpace.VMEM)


def _round_up(n, m=GROUP_BLK):
    return ((n + m - 1) // m) * m


def _pad_rows(x, rows):
    n = x.shape[0]
    if n == rows:
        return x
    return jnp.concatenate(
        [x, jnp.zeros((rows - n,) + x.shape[1:], x.dtype)], axis=0)


# ------------------------------------------------------- fused Pallas kernel ---
def _fused_rgcn_kernel(proj_in_ref, proj_w_ref, proj_b_ref,
                       base_tgt_ref, base_mem_ref, base_dd_ref, map_ref,
                       a_mem_ref, w_mem_ref, b_mem_ref,
                       a_sg_ref, w_sg_ref, b_sg_ref,
                       a_br_ref, w_br_ref, b_br_ref,
                       p1w_ref, p1b_ref, p2w_ref, p2b_ref,
                       logits_ref,
                       *, c, blk, mem_layers, mem_rel, sg_layers,
                       br_layers, br_rel):
    f32 = jnp.float32

    # 1) batched visual projection for target/memory/ddetr features in one matmul.
    #    Packed weights place the 8-wide projection directly into the node-feature
    #    lanes (cols c-8:c for target/memory, cols 0:8 of the second c-block for
    #    ddetr), so the node features are formed by a plain add — no width-8 store.
    vis = jnp.dot(proj_in_ref[...], proj_w_ref[...],
                  preferred_element_type=f32) + proj_b_ref[...]
    x_tgt = base_tgt_ref[...] + vis[0 * blk:1 * blk, 0:c]
    x_mem = base_mem_ref[...] + vis[1 * blk:2 * blk, 0:c]
    x_dd = base_dd_ref[...] + vis[2 * blk:3 * blk, c:2 * c]

    def rgcn_stack(x, a_cat, w_ref, b_ref, n_layers, n_rel):
        # Per layer: ONE X @ [W_root | W_r0 | ...] matmul, then ONE combined
        # aggregation A_cat [Np, R*Np] @ stacked-messages [R*Np, C].
        for l in range(n_layers):                      # unrolled at trace time
            h = jnp.dot(x, w_ref[l], preferred_element_type=f32)
            msg = jnp.concatenate(
                [h[:, (r + 1) * c:(r + 2) * c] for r in range(n_rel)], axis=0)
            x = jnp.maximum(
                h[:, 0:c] + b_ref[l]
                + jnp.dot(a_cat, msg, preferred_element_type=f32), 0.0)
        return x

    # 2) memory RGCN stack (3 layers, 3 relations; RHS is exactly 128 lanes)
    x_mem = rgcn_stack(x_mem, a_mem_ref[...], w_mem_ref, b_mem_ref,
                       mem_layers, mem_rel)

    # 3) scene-graph GCN stack (3 layers)
    a_sg = a_sg_ref[...]                               # hoisted out of the loop
    for l in range(sg_layers):
        xw = jnp.dot(x_dd, w_sg_ref[l], preferred_element_type=f32)
        x_dd = jnp.maximum(
            jnp.dot(a_sg, xw, preferred_element_type=f32) + b_sg_ref[l], 0.0)

    # 4) bridge node assembly — 16-row aligned blocks, stays in VMEM/vregs
    nodes = jnp.concatenate([x_tgt, x_mem, map_ref[...], x_dd], axis=0)

    # 5) bridge RGCN stack (4 layers, 4 relations)
    nodes = rgcn_stack(nodes, a_br_ref[...], w_br_ref, b_br_ref,
                       br_layers, br_rel)

    # 6) predictor MLP on the target block; logits stored lane-dense (128 wide)
    tgt = nodes[0:blk, :]
    hmid = jnp.maximum(
        jnp.dot(tgt, p1w_ref[...], preferred_element_type=f32) + p1b_ref[...], 0.0)
    logits_ref[...] = (jnp.dot(hmid, p2w_ref[...], preferred_element_type=f32)
                       + p2b_ref[...])


# ---------------------------------------------------- graph -> dense glue ---
def rgcn_dense_adj(edge_index, edge_type, num_relations, num_nodes_pad):
    """A[r][tgt, src] with mean normalization per (node, relation), built
    directly at the padded node count (padded rows/cols stay 0)."""
    A = np.zeros((num_relations, num_nodes_pad, num_nodes_pad), np.float32)
    src, tgt = np.asarray(edge_index[0]), np.asarray(edge_index[1])
    et = np.asarray(edge_type)
    for e in range(src.shape[0]):
        A[et[e], tgt[e], src[e]] += 1.0
    deg = A.sum(axis=2, keepdims=True)
    A = np.where(deg > 0, A / np.maximum(deg, 1.0), 0.0).astype(np.float32)
    return A


def gcn_dense_adj(edge_index, num_nodes, num_nodes_pad):
    """A_hat[tgt, src] = d^-1/2(src) d^-1/2(tgt), self-loops added (gcn_norm),
    built at the padded node count (padded rows/cols stay 0)."""
    src = np.concatenate([np.asarray(edge_index[0]), np.arange(num_nodes)])
    tgt = np.concatenate([np.asarray(edge_index[1]), np.arange(num_nodes)])
    deg = np.zeros(num_nodes, np.float32)
    np.add.at(deg, tgt, 1.0)
    dinv = np.zeros_like(deg)
    nz = deg > 0
    dinv[nz] = 1.0 / np.sqrt(deg[nz])
    A = np.zeros((num_nodes_pad, num_nodes_pad), np.float32)
    for e in range(len(src)):
        A[tgt[e], src[e]] += dinv[src[e]] * dinv[tgt[e]]
    return A


# ------------------------------------------------------------- parameters ---
def init_params(key):
    ks = iter(jax.random.split(key, 64))

    def nrm(shape, scale):
        return jax.random.normal(next(ks), shape, jnp.float32) * scale

    c = IN_CHANNELS
    return {
        "obj_emb": nrm((NUM_CLASSES, c - VIS_PROJ), 1.0),
        "scene_emb": nrm((4, c), 1.0),
        "proj_w": nrm((VIS_FEAT, VIS_PROJ), 1.0 / np.sqrt(VIS_FEAT)),
        "proj_b": nrm((VIS_PROJ,), 0.01),
        "pred1_w": nrm((c, c), 1.0 / np.sqrt(c)),
        "pred1_b": nrm((c,), 0.01),
        "pred2_w": nrm((c, NUM_CLASSES), 1.0 / np.sqrt(c)),
        "pred2_b": nrm((NUM_CLASSES,), 0.01),
        "mem_wrel": nrm((3, NUM_RELATIONS, c, c), 1.0 / np.sqrt(c)),
        "mem_wroot": nrm((3, c, c), 1.0 / np.sqrt(c)),
        "mem_b": nrm((3, c), 0.01),
        "sg_w": nrm((3, c, c), 1.0 / np.sqrt(c)),
        "sg_b": nrm((3, c), 0.01),
        "br_wrel": nrm((4, NUM_BRIDGE_RELATIONS, c, c), 1.0 / np.sqrt(c)),
        "br_wroot": nrm((4, c, c), 1.0 / np.sqrt(c)),
        "br_b": nrm((4, c), 0.01),
    }


def pack_params(params):
    """One-time weight packing (done at init, NOT per forward)."""
    c = IN_CHANNELS
    p = dict(params)

    # Visual projection packed into [VIS_FEAT, 2C]:
    #   cols (c-8):c      -> projection for target/memory nodes (emb first, vis last)
    #   cols c:(c+8)      -> projection for ddetr nodes (vis first, emb last)
    wp = jnp.zeros((VIS_FEAT, 2 * c), jnp.float32)
    wp = wp.at[:, c - VIS_PROJ:c].set(params["proj_w"])
    wp = wp.at[:, c:c + VIS_PROJ].set(params["proj_w"])
    bp = jnp.zeros((1, 2 * c), jnp.float32)
    bp = bp.at[0, c - VIS_PROJ:c].set(params["proj_b"])
    bp = bp.at[0, c:c + VIS_PROJ].set(params["proj_b"])
    p["proj_w_packed"], p["proj_b_packed"] = wp, bp

    def pack_rgcn(w_rel, w_root):
        L = w_rel.shape[0]
        w_all = jnp.concatenate([w_root[:, None], w_rel], axis=1)  # [L, R+1, C, C]
        # packed[l][:, k*C:(k+1)*C] == w_all[l, k]  (k=0 is W_root)
        return jnp.transpose(w_all, (0, 2, 1, 3)).reshape(L, c, -1)

    p["mem_w_packed"] = pack_rgcn(params["mem_wrel"], params["mem_wroot"])  # [3,32,128]
    p["br_w_packed"] = pack_rgcn(params["br_wrel"], params["br_wroot"])     # [4,32,160]
    p["mem_b2"] = params["mem_b"].reshape(3, 1, c)
    p["sg_b2"] = params["sg_b"].reshape(3, 1, c)
    p["br_b2"] = params["br_b"].reshape(4, 1, c)
    p["pred1_b2"] = params["pred1_b"].reshape(1, c)

    # lane-pad the 10-class predictor head to 128 lanes (slice host-side)
    p["pred2_w_pad"] = jnp.zeros((c, LOGIT_PAD), jnp.float32).at[:, :NUM_CLASSES].set(
        params["pred2_w"])
    p["pred2_b_pad"] = jnp.zeros((1, LOGIT_PAD), jnp.float32).at[0, :NUM_CLASSES].set(
        params["pred2_b"])
    return p


# ----------------------------------------------------------------- forward ---
def rgcn_forward(params, input_dict, mem_dict, id_to_name, name_to_id):
    c = IN_CHANNELS

    # ---- host-side bookkeeping (mirrors the python loops in the module) ----
    obj_lens = np.asarray(input_dict["obj_lens"])
    target_obj_inds_batch = np.concatenate([[0], np.cumsum(obj_lens)])[:-1].astype(np.int64)
    obj_ids_input = np.asarray(input_dict["obj_ids"])
    obj_labels_gt = obj_ids_input[target_obj_inds_batch]
    num_targets = len(obj_labels_gt)
    num_objs_per_batch = OBJECTS_PER_SCENE
    num_batches = SCENES_PER_BATCH

    obj_ids_mem = np.asarray(mem_dict["obj_ids"])
    num_memory_nodes = len(obj_ids_mem)
    ddetr_labels = np.asarray(input_dict["ddetr_labels"])
    ddetr_batch_inds = np.asarray(input_dict["ddetr_batch_inds"])
    num_ddetr = len(ddetr_labels)
    map_ids = np.asarray(input_dict["map_types"])
    num_map = len(map_ids)

    # every node group gets a 16-row-aligned block in the bridge graph
    blk = _round_up(max(num_targets, num_memory_nodes, num_map, num_ddetr))
    MEM_OFF, MAP_OFF, DD_OFF = blk, 2 * blk, 3 * blk
    n_bridge_pad = 4 * blk

    # ---- node base features (embedding gathers, host/plain JAX glue) ----
    obj_emb, scene_emb = params["obj_emb"], params["scene_emb"]
    zvis = lambda n: jnp.zeros((n, VIS_PROJ), jnp.float32)
    base_tgt = _pad_rows(jnp.concatenate(
        [obj_emb[jnp.asarray(obj_labels_gt)], zvis(num_targets)], axis=1), blk)
    base_mem = _pad_rows(jnp.concatenate(
        [obj_emb[jnp.asarray(obj_ids_mem)], zvis(num_memory_nodes)], axis=1), blk)
    base_dd = _pad_rows(jnp.concatenate(
        [zvis(num_ddetr), obj_emb[jnp.asarray(ddetr_labels)]], axis=1), blk)
    map_feats = _pad_rows(scene_emb[jnp.asarray(map_ids)], blk)

    # raw visual features for the single in-kernel batched projection
    proj_in = jnp.concatenate([
        _pad_rows(jnp.asarray(input_dict["obj_feats"])[jnp.asarray(target_obj_inds_batch)], blk),
        _pad_rows(jnp.asarray(mem_dict["obj_feats"]), blk),
        _pad_rows(jnp.asarray(input_dict["features_ddetr"]), blk)], axis=0)

    # ---- memory graph adjacency (lane-concatenated relations) ----
    subj_obj_inds_mem = np.asarray(mem_dict["subj_obj_inds"]).T
    rel_inds_mem = np.asarray(mem_dict["rel_inds"])
    A_mem = rgcn_dense_adj(subj_obj_inds_mem, rel_inds_mem, NUM_RELATIONS, blk)
    A_mem_cat = jnp.asarray(A_mem.transpose(1, 0, 2).reshape(blk, NUM_RELATIONS * blk))

    # ---- SG (scene graph) edges: all pairs within each batch ----
    sg_list = []
    for b in range(num_batches):
        feat_inds_b = np.where(ddetr_batch_inds == b)[0]
        pairs = np.array(list(combinations(range(feat_inds_b[0], feat_inds_b[-1] + 1), 2))).T
        sg_list.append(pairs)
    subj_obj_inds_SG = np.concatenate(sg_list, axis=1).astype(np.int64)
    A_sg = jnp.asarray(gcn_dense_adj(subj_obj_inds_SG, num_ddetr, blk))

    # ---- bridge edges (same construction as the torch forward, remapped to
    #      the 16-aligned block layout: targets@0, memory@blk, map@2blk, ddetr@3blk)
    subj_list, rel_list = [], []
    for obj_i in range(num_targets):                      # memory -> target
        mem_matches = np.where(obj_ids_mem == obj_labels_gt[obj_i])[0] + MEM_OFF
        subj_list.append(np.stack([mem_matches,
                                   np.full(len(mem_matches), obj_i, np.int64)]))
        rel_list.append(np.full(len(mem_matches), BRIDGE_MEMORY, np.int64))
    for b in range(num_batches):                          # map type -> target
        target_inds = np.arange(num_objs_per_batch) + b * num_objs_per_batch
        subj_list.append(np.stack([np.full(len(target_inds), MAP_OFF + b, np.int64),
                                   target_inds]))
        rel_list.append(np.full(len(target_inds), BRIDGE_MAPTYPE, np.int64))
    for b in range(num_batches):                          # ddetr scene -> target
        feat_inds_b = np.where(ddetr_batch_inds == b)[0] + DD_OFF
        feat_rep = np.tile(feat_inds_b, num_objs_per_batch)
        target_inds = np.repeat(np.arange(num_objs_per_batch) + b * num_objs_per_batch,
                                len(feat_inds_b))
        subj_list.append(np.stack([feat_rep, target_inds]))
        rel_list.append(np.full(len(feat_rep), BRIDGE_DDETR, np.int64))
    for obj_i in range(num_ddetr):                        # memory <-> scene
        mem_matches = np.where(obj_ids_mem == ddetr_labels[obj_i])[0] + MEM_OFF
        scene_ind = DD_OFF + obj_i
        e1 = np.stack([mem_matches, np.full(len(mem_matches), scene_ind, np.int64)])
        e2 = np.stack([np.full(len(mem_matches), scene_ind, np.int64), mem_matches])
        e = np.concatenate([e1, e2], axis=1)
        subj_list.append(e)
        rel_list.append(np.full(e.shape[1], BRIDGE_SCENE_MEM, np.int64))
    subj_obj_inds_bridge = np.concatenate(subj_list, axis=1).astype(np.int64)
    rel_inds_bridge = np.concatenate(rel_list).astype(np.int64)
    A_br = rgcn_dense_adj(subj_obj_inds_bridge, rel_inds_bridge,
                          NUM_BRIDGE_RELATIONS, n_bridge_pad)
    A_br_cat = jnp.asarray(
        A_br.transpose(1, 0, 2).reshape(n_bridge_pad, NUM_BRIDGE_RELATIONS * n_bridge_pad))

    # ---- ONE fused Pallas kernel for the entire graph forward ----
    logits_pad = pl.pallas_call(
        functools.partial(_fused_rgcn_kernel, c=c, blk=blk,
                          mem_layers=3, mem_rel=NUM_RELATIONS,
                          sg_layers=3, br_layers=4, br_rel=NUM_BRIDGE_RELATIONS),
        out_shape=jax.ShapeDtypeStruct((blk, LOGIT_PAD), jnp.float32),
        in_specs=[_VMEM()] * 20,
        out_specs=_VMEM(),
    )(proj_in, params["proj_w_packed"], params["proj_b_packed"],
      base_tgt, base_mem, base_dd, map_feats,
      A_mem_cat, params["mem_w_packed"], params["mem_b2"],
      A_sg, params["sg_w"], params["sg_b2"],
      A_br_cat, params["br_w_packed"], params["br_b2"],
      params["pred1_w"], params["pred1_b2"],
      params["pred2_w_pad"], params["pred2_b_pad"])

    obj_class_logits_target = logits_pad[:num_targets, :NUM_CLASSES]

    # ---- BCE-with-logits loss (glue) ----
    batch_inds = np.asarray(input_dict["batch_inds"])
    subj_obj_inds_in = np.asarray(input_dict["subj_obj_inds"])
    ce_targets = np.zeros((num_targets, NUM_CLASSES), np.float32)
    for obj_i in range(num_targets):
        sup_ids = np.unique(subj_obj_inds_in[batch_inds == obj_i, 1])
        sup_classes = obj_ids_input[sup_ids]
        ce_targets[obj_i, sup_classes] = 1.0
    t = jnp.asarray(ce_targets)
    x = obj_class_logits_target
    loss = jnp.mean(jnp.maximum(x, 0.0) - x * t + jnp.log1p(jnp.exp(-jnp.abs(x))))

    # ---- inference: drop "Floor", softmax, top-k ----
    floor_id = name_to_id["Floor"]
    logits_nofloor = obj_class_logits_target[:, :floor_id]
    probs = jax.nn.softmax(logits_nofloor, axis=1)
    top_k_inds = jax.lax.top_k(probs, TOP_K)[1]
    top_k_classes = [[id_to_name[int(j)] for j in row] for row in np.asarray(top_k_inds)]

    inference_dict = {
        "probs": probs,
        "top_k_classes": top_k_classes,
        "input_classes": [id_to_name[int(i)] for i in obj_labels_gt],
    }
    return loss, inference_dict


# --------------------------------------------------------------------- main --
if __name__ == "__main__":
    key = jax.random.PRNGKey(0)
    k_param, k1, k2, k3, k4, k5, k6, k7 = jax.random.split(key, 8)

    params = pack_params(init_params(k_param))   # packing done once, not per forward

    names = [f"Obj{i}" for i in range(NUM_CLASSES - 1)] + ["Floor"]
    id_to_name = {i: n for i, n in enumerate(names)}
    name_to_id = {n: i for i, n in enumerate(names)}

    # ---- synthetic input_dict (num_targets = scenes_per_batch*objects_per_scene = 4) ----
    obj_lens = np.array([2, 3, 1, 2], np.int64)             # total 8 input objects
    total_objs = int(obj_lens.sum())
    input_dict = {
        "obj_lens": obj_lens,
        "obj_ids": np.asarray(jax.random.randint(k1, (total_objs,), 0, NUM_CLASSES)),
        "obj_feats": jax.random.normal(k2, (total_objs, VIS_FEAT), jnp.float32),
        "map_types": np.array([1, 3], np.int64),
        "features_ddetr": jax.random.normal(k3, (6, VIS_FEAT), jnp.float32),
        "ddetr_labels": np.asarray(jax.random.randint(k4, (6,), 0, NUM_CLASSES)),
        "ddetr_batch_inds": np.array([0, 0, 0, 1, 1, 1], np.int64),
        "batch_inds": np.array([0, 0, 1, 1, 2, 3, 3, 3], np.int64),
        "subj_obj_inds": np.asarray(jax.random.randint(k5, (8, 2), 0, total_objs)),
    }

    # ---- synthetic mem_dict (6 memory nodes, 10 relational edges) ----
    mem_dict = {
        "obj_ids": np.asarray(jax.random.randint(k6, (6,), 0, NUM_CLASSES)),
        "obj_feats": jax.random.normal(k7, (6, VIS_FEAT), jnp.float32),
        "subj_obj_inds": np.asarray(
            jax.random.randint(jax.random.PRNGKey(123), (10, 2), 0, 6)),
        "rel_inds": np.asarray(
            jax.random.randint(jax.random.PRNGKey(456), (10,), 0, NUM_RELATIONS)),
    }

    loss, inference_dict = rgcn_forward(params, input_dict, mem_dict, id_to_name, name_to_id)
    jax.block_until_ready(loss)
    jax.block_until_ready(inference_dict["probs"])

    assert np.isfinite(float(loss))
    assert np.all(np.isfinite(np.asarray(inference_dict["probs"])))
    assert len(inference_dict["top_k_classes"]) == 4
    print("KERNEL_OK")
</pallas_src>

<mosaic_0001>
module attributes {stable_mosaic.version = 11 : i64} {
  func.func @_fused_rgcn_kernel(%arg0: memref<48x16xf32, #tpu.memory_space<vmem>>, %arg1: memref<16x64xf32, #tpu.memory_space<vmem>>, %arg2: memref<1x64xf32, #tpu.memory_space<vmem>>, %arg3: memref<16x32xf32, #tpu.memory_space<vmem>>, %arg4: memref<16x32xf32, #tpu.memory_space<vmem>>, %arg5: memref<16x32xf32, #tpu.memory_space<vmem>>, %arg6: memref<16x32xf32, #tpu.memory_space<vmem>>, %arg7: memref<16x48xf32, #tpu.memory_space<vmem>>, %arg8: memref<3x32x128xf32, #tpu.memory_space<vmem>>, %arg9: memref<3x1x32xf32, #tpu.memory_space<vmem>>, %arg10: memref<16x16xf32, #tpu.memory_space<vmem>>, %arg11: memref<3x32x32xf32, #tpu.memory_space<vmem>>, %arg12: memref<3x1x32xf32, #tpu.memory_space<vmem>>, %arg13: memref<64x256xf32, #tpu.memory_space<vmem>>, %arg14: memref<4x32x160xf32, #tpu.memory_space<vmem>>, %arg15: memref<4x1x32xf32, #tpu.memory_space<vmem>>, %arg16: memref<32x32xf32, #tpu.memory_space<vmem>>, %arg17: memref<1x32xf32, #tpu.memory_space<vmem>>, %arg18: memref<32x128xf32, #tpu.memory_space<vmem>>, %arg19: memref<1x128xf32, #tpu.memory_space<vmem>>, %arg20: memref<16x128xf32, #tpu.memory_space<vmem>>) attributes {dimension_semantics = [], scalar_prefetch = 0 : i64, scratch_operands = 0 : i64, tpu.core_type = #tpu.core_type<tc>} {
    %c0 = arith.constant 0 : index
    %c0_0 = arith.constant 0 : index
    %0 = vector.load %arg0[%c0, %c0_0] : memref<48x16xf32, #tpu.memory_space<vmem>>, vector<48x16xf32>
    %c0_1 = arith.constant 0 : index
    %c0_2 = arith.constant 0 : index
    %1 = vector.load %arg1[%c0_1, %c0_2] : memref<16x64xf32, #tpu.memory_space<vmem>>, vector<16x64xf32>
    %cst = arith.constant dense<0.000000e+00> : vector<48x64xf32>
    %2 = tpu.matmul %0, %1, %cst {dimension_numbers = #tpu.dot_dimension_numbers<[1], [0], [0], [1], [0, 0, 1, 1], [], []>} : vector<48x16xf32>, vector<16x64xf32>, vector<48x64xf32> -> vector<48x64xf32>
    %c0_3 = arith.constant 0 : index
    %c0_4 = arith.constant 0 : index
    %3 = vector.load %arg2[%c0_3, %c0_4] : memref<1x64xf32, #tpu.memory_space<vmem>>, vector<1x64xf32>
    %4 = vector.broadcast %3 : vector<1x64xf32> to vector<48x64xf32>
    %5 = arith.addf %2, %4 : vector<48x64xf32>
    %c0_5 = arith.constant 0 : index
    %c0_6 = arith.constant 0 : index
    %6 = vector.load %arg3[%c0_5, %c0_6] : memref<16x32xf32, #tpu.memory_space<vmem>>, vector<16x32xf32>
    %7 = vector.extract_strided_slice %5 {offsets = [0, 0], sizes = [16, 32], strides = [1, 1]} : vector<48x64xf32> to vector<16x32xf32>
    %8 = arith.addf %6, %7 : vector<16x32xf32>
    %c0_7 = arith.constant 0 : index
    %c0_8 = arith.constant 0 : index
    %9 = vector.load %arg4[%c0_7, %c0_8] : memref<16x32xf32, #tpu.memory_space<vmem>>, vector<16x32xf32>
    %10 = vector.extract_strided_slice %5 {offsets = [16, 0], sizes = [16, 32], strides = [1, 1]} : vector<48x64xf32> to vector<16x32xf32>
    %11 = arith.addf %9, %10 : vector<16x32xf32>
    %c0_9 = arith.constant 0 : index
    %c0_10 = arith.constant 0 : index
    %12 = vector.load %arg5[%c0_9, %c0_10] : memref<16x32xf32, #tpu.memory_space<vmem>>, vector<16x32xf32>
    %13 = vector.extract_strided_slice %5 {offsets = [32, 32], sizes = [16, 32], strides = [1, 1]} : vector<48x64xf32> to vector<16x32xf32>
    %14 = arith.addf %12, %13 : vector<16x32xf32>
    %c0_11 = arith.constant 0 : index
    %c0_12 = arith.constant 0 : index
    %15 = vector.load %arg7[%c0_11, %c0_12] : memref<16x48xf32, #tpu.memory_space<vmem>>, vector<16x48xf32>
    %c0_13 = arith.constant 0 : index
    %c0_14 = arith.constant 0 : index
    %c0_15 = arith.constant 0 : index
    %16 = vector.load %arg8[%c0_13, %c0_14, %c0_15] : memref<3x32x128xf32, #tpu.memory_space<vmem>>, vector<1x32x128xf32>
    %17 = vector.shape_cast %16 : vector<1x32x128xf32> to vector<32x128xf32>
    %cst_16 = arith.constant dense<0.000000e+00> : vector<16x128xf32>
    %18 = tpu.matmul %11, %17, %cst_16 {dimension_numbers = #tpu.dot_dimension_numbers<[1], [0], [0], [1], [0, 0, 1, 1], [], []>} : vector<16x32xf32>, vector<32x128xf32>, vector<16x128xf32> -> vector<16x128xf32>
    %19 = vector.extract_strided_slice %18 {offsets = [0, 32], sizes = [16, 32], strides = [1, 1]} : vector<16x128xf32> to vector<16x32xf32>
    %20 = vector.extract_strided_slice %18 {offsets = [0, 64], sizes = [16, 32], strides = [1, 1]} : vector<16x128xf32> to vector<16x32xf32>
    %21 = vector.extract_strided_slice %18 {offsets = [0, 96], sizes = [16, 32], strides = [1, 1]} : vector<16x128xf32> to vector<16x32xf32>
    %22 = tpu.concatenate %19, %20, %21 in 0 : vector<16x32xf32>, vector<16x32xf32>, vector<16x32xf32> -> vector<48x32xf32>
    %23 = vector.extract_strided_slice %18 {offsets = [0, 0], sizes = [16, 32], strides = [1, 1]} : vector<16x128xf32> to vector<16x32xf32>
    %c0_17 = arith.constant 0 : index
    %c0_18 = arith.constant 0 : index
    %c0_19 = arith.constant 0 : index
    %24 = vector.load %arg9[%c0_17, %c0_18, %c0_19] : memref<3x1x32xf32, #tpu.memory_space<vmem>>, vector<1x1x32xf32>
    %25 = vector.shape_cast %24 : vector<1x1x32xf32> to vector<1x32xf32>
    %26 = vector.broadcast %25 : vector<1x32xf32> to vector<16x32xf32>
    %27 = arith.addf %23, %26 : vector<16x32xf32>
    %cst_20 = arith.constant dense<0.000000e+00> : vector<16x32xf32>
    %28 = tpu.matmul %15, %22, %cst_20 {dimension_numbers = #tpu.dot_dimension_numbers<[1], [0], [0], [1], [0, 0, 1, 1], [], []>} : vector<16x48xf32>, vector<48x32xf32>, vector<16x32xf32> -> vector<16x32xf32>
    %29 = arith.addf %27, %28 : vector<16x32xf32>
    %cst_21 = arith.constant 0.000000e+00 : f32
    %30 = vector.broadcast %cst_21 : f32 to vector<16x32xf32>
    %31 = arith.maximumf %29, %30 : vector<16x32xf32>
    %c1 = arith.constant 1 : index
    %c0_22 = arith.constant 0 : index
    %c0_23 = arith.constant 0 : index
    %32 = vector.load %arg8[%c1, %c0_22, %c0_23] : memref<3x32x128xf32, #tpu.memory_space<vmem>>, vector<1x32x128xf32>
    %33 = vector.shape_cast %32 : vector<1x32x128xf32> to vector<32x128xf32>
    %cst_24 = arith.constant dense<0.000000e+00> : vector<16x128xf32>
    %34 = tpu.matmul %31, %33, %cst_24 {dimension_numbers = #tpu.dot_dimension_numbers<[1], [0], [0], [1], [0, 0, 1, 1], [], []>} : vector<16x32xf32>, vector<32x128xf32>, vector<16x128xf32> -> vector<16x128xf32>
    %35 = vector.extract_strided_slice %34 {offsets = [0, 32], sizes = [16, 32], strides = [1, 1]} : vector<16x128xf32> to vector<16x32xf32>
    %36 = vector.extract_strided_slice %34 {offsets = [0, 64], sizes = [16, 32], strides = [1, 1]} : vector<16x128xf32> to vector<16x32xf32>
    %37 = vector.extract_strided_slice %34 {offsets = [0, 96], sizes = [16, 32], strides = [1, 1]} : vector<16x128xf32> to vector<16x32xf32>
    %38 = tpu.concatenate %35, %36, %37 in 0 : vector<16x32xf32>, vector<16x32xf32>, vector<16x32xf32> -> vector<48x32xf32>
    %39 = vector.extract_strided_slice %34 {offsets = [0, 0], sizes = [16, 32], strides = [1, 1]} : vector<16x128xf32> to vector<16x32xf32>
    %c1_25 = arith.constant 1 : index
    %c0_26 = arith.constant 0 : index
    %c0_27 = arith.constant 0 : index
    %40 = vector.load %arg9[%c1_25, %c0_26, %c0_27] : memref<3x1x32xf32, #tpu.memory_space<vmem>>, vector<1x1x32xf32>
    %41 = vector.shape_cast %40 : vector<1x1x32xf32> to vector<1x32xf32>
    %42 = vector.broadcast %41 : vector<1x32xf32> to vector<16x32xf32>
    %43 = arith.addf %39, %42 : vector<16x32xf32>
    %cst_28 = arith.constant dense<0.000000e+00> : vector<16x32xf32>
    %44 = tpu.matmul %15, %38, %cst_28 {dimension_numbers = #tpu.dot_dimension_numbers<[1], [0], [0], [1], [0, 0, 1, 1], [], []>} : vector<16x48xf32>, vector<48x32xf32>, vector<16x32xf32> -> vector<16x32xf32>
    %45 = arith.addf %43, %44 : vector<16x32xf32>
    %cst_29 = arith.constant 0.000000e+00 : f32
    %46 = vector.broadcast %cst_29 : f32 to vector<16x32xf32>
    %47 = arith.maximumf %45, %46 : vector<16x32xf32>
    %c2 = arith.constant 2 : index
    %c0_30 = arith.constant 0 : index
    %c0_31 = arith.constant 0 : index
    %48 = vector.load %arg8[%c2, %c0_30, %c0_31] : memref<3x32x128xf32, #tpu.memory_space<vmem>>, vector<1x32x128xf32>
    %49 = vector.shape_cast %48 : vector<1x32x128xf32> to vector<32x128xf32>
    %cst_32 = arith.constant dense<0.000000e+00> : vector<16x128xf32>
    %50 = tpu.matmul %47, %49, %cst_32 {dimension_numbers = #tpu.dot_dimension_numbers<[1], [0], [0], [1], [0, 0, 1, 1], [], []>} : vector<16x32xf32>, vector<32x128xf32>, vector<16x128xf32> -> vector<16x128xf32>
    %51 = vector.extract_strided_slice %50 {offsets = [0, 32], sizes = [16, 32], strides = [1, 1]} : vector<16x128xf32> to vector<16x32xf32>
    %52 = vector.extract_strided_slice %50 {offsets = [0, 64], sizes = [16, 32], strides = [1, 1]} : vector<16x128xf32> to vector<16x32xf32>
    %53 = vector.extract_strided_slice %50 {offsets = [0, 96], sizes = [16, 32], strides = [1, 1]} : vector<16x128xf32> to vector<16x32xf32>
    %54 = tpu.concatenate %51, %52, %53 in 0 : vector<16x32xf32>, vector<16x32xf32>, vector<16x32xf32> -> vector<48x32xf32>
    %55 = vector.extract_strided_slice %50 {offsets = [0, 0], sizes = [16, 32], strides = [1, 1]} : vector<16x128xf32> to vector<16x32xf32>
    %c2_33 = arith.constant 2 : index
    %c0_34 = arith.constant 0 : index
    %c0_35 = arith.constant 0 : index
    %56 = vector.load %arg9[%c2_33, %c0_34, %c0_35] : memref<3x1x32xf32, #tpu.memory_space<vmem>>, vector<1x1x32xf32>
    %57 = vector.shape_cast %56 : vector<1x1x32xf32> to vector<1x32xf32>
    %58 = vector.broadcast %57 : vector<1x32xf32> to vector<16x32xf32>
    %59 = arith.addf %55, %58 : vector<16x32xf32>
    %cst_36 = arith.constant dense<0.000000e+00> : vector<16x32xf32>
    %60 = tpu.matmul %15, %54, %cst_36 {dimension_numbers = #tpu.dot_dimension_numbers<[1], [0], [0], [1], [0, 0, 1, 1], [], []>} : vector<16x48xf32>, vector<48x32xf32>, vector<16x32xf32> -> vector<16x32xf32>
    %61 = arith.addf %59, %60 : vector<16x32xf32>
    %cst_37 = arith.constant 0.000000e+00 : f32
    %62 = vector.broadcast %cst_37 : f32 to vector<16x32xf32>
    %63 = arith.maximumf %61, %62 : vector<16x32xf32>
    %c0_38 = arith.constant 0 : index
    %c0_39 = arith.constant 0 : index
    %64 = vector.load %arg10[%c0_38, %c0_39] : memref<16x16xf32, #tpu.memory_space<vmem>>, vector<16x16xf32>
    %c0_40 = arith.constant 0 : index
    %c0_41 = arith.constant 0 : index
    %c0_42 = arith.constant 0 : index
    %65 = vector.load %arg11[%c0_40, %c0_41, %c0_42] : memref<3x32x32xf32, #tpu.memory_space<vmem>>, vector<1x32x32xf32>
    %66 = vector.shape_cast %65 : vector<1x32x32xf32> to vector<32x32xf32>
    %cst_43 = arith.constant dense<0.000000e+00> : vector<16x32xf32>
    %67 = tpu.matmul %14, %66, %cst_43 {dimension_numbers = #tpu.dot_dimension_numbers<[1], [0], [0], [1], [0, 0, 1, 1], [], []>} : vector<16x32xf32>, vector<32x32xf32>, vector<16x32xf32> -> vector<16x32xf32>
    %cst_44 = arith.constant dense<0.000000e+00> : vector<16x32xf32>
    %68 = tpu.matmul %64, %67, %cst_44 {dimension_numbers = #tpu.dot_dimension_numbers<[1], [0], [0], [1], [0, 0, 1, 1], [], []>} : vector<16x16xf32>, vector<16x32xf32>, vector<16x32xf32> -> vector<16x32xf32>
    %c0_45 = arith.constant 0 : index
    %c0_46 = arith.constant 0 : index
    %c0_47 = arith.constant 0 : index
    %69 = vector.load %arg12[%c0_45, %c0_46, %c0_47] : memref<3x1x32xf32, #tpu.memory_space<vmem>>, vector<1x1x32xf32>
    %70 = vector.shape_cast %69 : vector<1x1x32xf32> to vector<1x32xf32>
    %71 = vector.broadcast %70 : vector<1x32xf32> to vector<16x32xf32>
    %72 = arith.addf %68, %71 : vector<16x32xf32>
    %cst_48 = arith.constant 0.000000e+00 : f32
    %73 = vector.broadcast %cst_48 : f32 to vector<16x32xf32>
    %74 = arith.maximumf %72, %73 : vector<16x32xf32>
    %c1_49 = arith.constant 1 : index
    %c0_50 = arith.constant 0 : index
    %c0_51 = arith.constant 0 : index
    %75 = vector.load %arg11[%c1_49, %c0_50, %c0_51] : memref<3x32x32xf32, #tpu.memory_space<vmem>>, vector<1x32x32xf32>
    %76 = vector.shape_cast %75 : vector<1x32x32xf32> to vector<32x32xf32>
    %cst_52 = arith.constant dense<0.000000e+00> : vector<16x32xf32>
    %77 = tpu.matmul %74, %76, %cst_52 {dimension_numbers = #tpu.dot_dimension_numbers<[1], [0], [0], [1], [0, 0, 1, 1], [], []>} : vector<16x32xf32>, vector<32x32xf32>, vector<16x32xf32> -> vector<16x32xf32>
    %cst_53 = arith.constant dense<0.000000e+00> : vector<16x32xf32>
    %78 = tpu.matmul %64, %77, %cst_53 {dimension_numbers = #tpu.dot_dimension_numbers<[1], [0], [0], [1], [0, 0, 1, 1], [], []>} : vector<16x16xf32>, vector<16x32xf32>, vector<16x32xf32> -> vector<16x32xf32>
    %c1_54 = arith.constant 1 : index
    %c0_55 = arith.constant 0 : index
    %c0_56 = arith.constant 0 : index
    %79 = vector.load %arg12[%c1_54, %c0_55, %c0_56] : memref<3x1x32xf32, #tpu.memory_space<vmem>>, vector<1x1x32xf32>
    %80 = vector.shape_cast %79 : vector<1x1x32xf32> to vector<1x32xf32>
    %81 = vector.broadcast %80 : vector<1x32xf32> to vector<16x32xf32>
    %82 = arith.addf %78, %81 : vector<16x32xf32>
    %cst_57 = arith.constant 0.000000e+00 : f32
    %83 = vector.broadcast %cst_57 : f32 to vector<16x32xf32>
    %84 = arith.maximumf %82, %83 : vector<16x32xf32>
    %c2_58 = arith.constant 2 : index
    %c0_59 = arith.constant 0 : index
    %c0_60 = arith.constant 0 : index
    %85 = vector.load %arg11[%c2_58, %c0_59, %c0_60] : memref<3x32x32xf32, #tpu.memory_space<vmem>>, vector<1x32x32xf32>
    %86 = vector.shape_cast %85 : vector<1x32x32xf32> to vector<32x32xf32>
    %cst_61 = arith.constant dense<0.000000e+00> : vector<16x32xf32>
    %87 = tpu.matmul %84, %86, %cst_61 {dimension_numbers = #tpu.dot_dimension_numbers<[1], [0], [0], [1], [0, 0, 1, 1], [], []>} : vector<16x32xf32>, vector<32x32xf32>, vector<16x32xf32> -> vector<16x32xf32>
    %cst_62 = arith.constant dense<0.000000e+00> : vector<16x32xf32>
    %88 = tpu.matmul %64, %87, %cst_62 {dimension_numbers = #tpu.dot_dimension_numbers<[1], [0], [0], [1], [0, 0, 1, 1], [], []>} : vector<16x16xf32>, vector<16x32xf32>, vector<16x32xf32> -> vector<16x32xf32>
    %c2_63 = arith.constant 2 : index
    %c0_64 = arith.constant 0 : index
    %c0_65 = arith.constant 0 : index
    %89 = vector.load %arg12[%c2_63, %c0_64, %c0_65] : memref<3x1x32xf32, #tpu.memory_space<vmem>>, vector<1x1x32xf32>
    %90 = vector.shape_cast %89 : vector<1x1x32xf32> to vector<1x32xf32>
    %91 = vector.broadcast %90 : vector<1x32xf32> to vector<16x32xf32>
    %92 = arith.addf %88, %91 : vector<16x32xf32>
    %cst_66 = arith.constant 0.000000e+00 : f32
    %93 = vector.broadcast %cst_66 : f32 to vector<16x32xf32>
    %94 = arith.maximumf %92, %93 : vector<16x32xf32>
    %c0_67 = arith.constant 0 : index
    %c0_68 = arith.constant 0 : index
    %95 = vector.load %arg6[%c0_67, %c0_68] : memref<16x32xf32, #tpu.memory_space<vmem>>, vector<16x32xf32>
    %96 = tpu.concatenate %8, %63, %95, %94 in 0 : vector<16x32xf32>, vector<16x32xf32>, vector<16x32xf32>, vector<16x32xf32> -> vector<64x32xf32>
    %c0_69 = arith.constant 0 : index
    %c0_70 = arith.constant 0 : index
    %97 = vector.load %arg13[%c0_69, %c0_70] : memref<64x256xf32, #tpu.memory_space<vmem>>, vector<64x256xf32>
    %c0_71 = arith.constant 0 : index
    %c0_72 = arith.constant 0 : index
    %c0_73 = arith.constant 0 : index
    %98 = vector.load %arg14[%c0_71, %c0_72, %c0_73] : memref<4x32x160xf32, #tpu.memory_space<vmem>>, vector<1x32x160xf32>
    %99 = vector.shape_cast %98 : vector<1x32x160xf32> to vector<32x160xf32>
    %cst_74 = arith.constant dense<0.000000e+00> : vector<64x160xf32>
    %100 = tpu.matmul %96, %99, %cst_74 {dimension_numbers = #tpu.dot_dimension_numbers<[1], [0], [0], [1], [0, 0, 1, 1], [], []>} : vector<64x32xf32>, vector<32x160xf32>, vector<64x160xf32> -> vector<64x160xf32>
    %101 = vector.extract_strided_slice %100 {offsets = [0, 32], sizes = [64, 32], strides = [1, 1]} : vector<64x160xf32> to vector<64x32xf32>
    %102 = vector.extract_strided_slice %100 {offsets = [0, 64], sizes = [64, 32], strides = [1, 1]} : vector<64x160xf32> to vector<64x32xf32>
    %103 = vector.extract_strided_slice %100 {offsets = [0, 96], sizes = [64, 32], strides = [1, 1]} : vector<64x160xf32> to vector<64x32xf32>
    %104 = vector.extract_strided_slice %100 {offsets = [0, 128], sizes = [64, 32], strides = [1, 1]} : vector<64x160xf32> to vector<64x32xf32>
    %105 = tpu.concatenate %101, %102, %103, %104 in 0 : vector<64x32xf32>, vector<64x32xf32>, vector<64x32xf32>, vector<64x32xf32> -> vector<256x32xf32>
    %106 = vector.extract_strided_slice %100 {offsets = [0, 0], sizes = [64, 32], strides = [1, 1]} : vector<64x160xf32> to vector<64x32xf32>
    %c0_75 = arith.constant 0 : index
    %c0_76 = arith.constant 0 : index
    %c0_77 = arith.constant 0 : index
    %107 = vector.load %arg15[%c0_75, %c0_76, %c0_77] : memref<4x1x32xf32, #tpu.memory_space<vmem>>, vector<1x1x32xf32>
    %108 = vector.shape_cast %107 : vector<1x1x32xf32> to vector<1x32xf32>
    %109 = vector.broadcast %108 : vector<1x32xf32> to vector<64x32xf32>
    %110 = arith.addf %106, %109 : vector<64x32xf32>
    %cst_78 = arith.constant dense<0.000000e+00> : vector<64x32xf32>
    %111 = tpu.matmul %97, %105, %cst_78 {dimension_numbers = #tpu.dot_dimension_numbers<[1], [0], [0], [1], [0, 0, 1, 1], [], []>} : vector<64x256xf32>, vector<256x32xf32>, vector<64x32xf32> -> vector<64x32xf32>
    %112 = arith.addf %110, %111 : vector<64x32xf32>
    %cst_79 = arith.constant 0.000000e+00 : f32
    %113 = vector.broadcast %cst_79 : f32 to vector<64x32xf32>
    %114 = arith.maximumf %112, %113 : vector<64x32xf32>
    %c1_80 = arith.constant 1 : index
    %c0_81 = arith.constant 0 : index
    %c0_82 = arith.constant 0 : index
    %115 = vector.load %arg14[%c1_80, %c0_81, %c0_82] : memref<4x32x160xf32, #tpu.memory_space<vmem>>, vector<1x32x160xf32>
    %116 = vector.shape_cast %115 : vector<1x32x160xf32> to vector<32x160xf32>
    %cst_83 = arith.constant dense<0.000000e+00> : vector<64x160xf32>
    %117 = tpu.matmul %114, %116, %cst_83 {dimension_numbers = #tpu.dot_dimension_numbers<[1], [0], [0], [1], [0, 0, 1, 1], [], []>} : vector<64x32xf32>, vector<32x160xf32>, vector<64x160xf32> -> vector<64x160xf32>
    %118 = vector.extract_strided_slice %117 {offsets = [0, 32], sizes = [64, 32], strides = [1, 1]} : vector<64x160xf32> to vector<64x32xf32>
    %119 = vector.extract_strided_slice %117 {offsets = [0, 64], sizes = [64, 32], strides = [1, 1]} : vector<64x160xf32> to vector<64x32xf32>
    %120 = vector.extract_strided_slice %117 {offsets = [0, 96], sizes = [64, 32], strides = [1, 1]} : vector<64x160xf32> to vector<64x32xf32>
    %121 = vector.extract_strided_slice %117 {offsets = [0, 128], sizes = [64, 32], strides = [1, 1]} : vector<64x160xf32> to vector<64x32xf32>
    %122 = tpu.concatenate %118, %119, %120, %121 in 0 : vector<64x32xf32>, vector<64x32xf32>, vector<64x32xf32>, vector<64x32xf32> -> vector<256x32xf32>
    %123 = vector.extract_strided_slice %117 {offsets = [0, 0], sizes = [64, 32], strides = [1, 1]} : vector<64x160xf32> to vector<64x32xf32>
    %c1_84 = arith.constant 1 : index
    %c0_85 = arith.constant 0 : index
    %c0_86 = arith.constant 0 : index
    %124 = vector.load %arg15[%c1_84, %c0_85, %c0_86] : memref<4x1x32xf32, #tpu.memory_space<vmem>>, vector<1x1x32xf32>
    %125 = vector.shape_cast %124 : vector<1x1x32xf32> to vector<1x32xf32>
    %126 = vector.broadcast %125 : vector<1x32xf32> to vector<64x32xf32>
    %127 = arith.addf %123, %126 : vector<64x32xf32>
    %cst_87 = arith.constant dense<0.000000e+00> : vector<64x32xf32>
    %128 = tpu.matmul %97, %122, %cst_87 {dimension_numbers = #tpu.dot_dimension_numbers<[1], [0], [0], [1], [0, 0, 1, 1], [], []>} : vector<64x256xf32>, vector<256x32xf32>, vector<64x32xf32> -> vector<64x32xf32>
    %129 = arith.addf %127, %128 : vector<64x32xf32>
    %cst_88 = arith.constant 0.000000e+00 : f32
    %130 = vector.broadcast %cst_88 : f32 to vector<64x32xf32>
    %131 = arith.maximumf %129, %130 : vector<64x32xf32>
    %c2_89 = arith.constant 2 : index
    %c0_90 = arith.constant 0 : index
    %c0_91 = arith.constant 0 : index
    %132 = vector.load %arg14[%c2_89, %c0_90, %c0_91] : memref<4x32x160xf32, #tpu.memory_space<vmem>>, vector<1x32x160xf32>
    %133 = vector.shape_cast %132 : vector<1x32x160xf32> to vector<32x160xf32>
    %cst_92 = arith.constant dense<0.000000e+00> : vector<64x160xf32>
    %134 = tpu.matmul %131, %133, %cst_92 {dimension_numbers = #tpu.dot_dimension_numbers<[1], [0], [0], [1], [0, 0, 1, 1], [], []>} : vector<64x32xf32>, vector<32x160xf32>, vector<64x160xf32> -> vector<64x160xf32>
    %135 = vector.extract_strided_slice %134 {offsets = [0, 32], sizes = [64, 32], strides = [1, 1]} : vector<64x160xf32> to vector<64x32xf32>
    %136 = vector.extract_strided_slice %134 {offsets = [0, 64], sizes = [64, 32], strides = [1, 1]} : vector<64x160xf32> to vector<64x32xf32>
    %137 = vector.extract_strided_slice %134 {offsets = [0, 96], sizes = [64, 32], strides = [1, 1]} : vector<64x160xf32> to vector<64x32xf32>
    %138 = vector.extract_strided_slice %134 {offsets = [0, 128], sizes = [64, 32], strides = [1, 1]} : vector<64x160xf32> to vector<64x32xf32>
    %139 = tpu.concatenate %135, %136, %137, %138 in 0 : vector<64x32xf32>, vector<64x32xf32>, vector<64x32xf32>, vector<64x32xf32> -> vector<256x32xf32>
    %140 = vector.extract_strided_slice %134 {offsets = [0, 0], sizes = [64, 32], strides = [1, 1]} : vector<64x160xf32> to vector<64x32xf32>
    %c2_93 = arith.constant 2 : index
    %c0_94 = arith.constant 0 : index
    %c0_95 = arith.constant 0 : index
    %141 = vector.load %arg15[%c2_93, %c0_94, %c0_95] : memref<4x1x32xf32, #tpu.memory_space<vmem>>, vector<1x1x32xf32>
    %142 = vector.shape_cast %141 : vector<1x1x32xf32> to vector<1x32xf32>
    %143 = vector.broadcast %142 : vector<1x32xf32> to vector<64x32xf32>
    %144 = arith.addf %140, %143 : vector<64x32xf32>
    %cst_96 = arith.constant dense<0.000000e+00> : vector<64x32xf32>
    %145 = tpu.matmul %97, %139, %cst_96 {dimension_numbers = #tpu.dot_dimension_numbers<[1], [0], [0], [1], [0, 0, 1, 1], [], []>} : vector<64x256xf32>, vector<256x32xf32>, vector<64x32xf32> -> vector<64x32xf32>
    %146 = arith.addf %144, %145 : vector<64x32xf32>
    %cst_97 = arith.constant 0.000000e+00 : f32
    %147 = vector.broadcast %cst_97 : f32 to vector<64x32xf32>
    %148 = arith.maximumf %146, %147 : vector<64x32xf32>
    %c3 = arith.constant 3 : index
    %c0_98 = arith.constant 0 : index
    %c0_99 = arith.constant 0 : index
    %149 = vector.load %arg14[%c3, %c0_98, %c0_99] : memref<4x32x160xf32, #tpu.memory_space<vmem>>, vector<1x32x160xf32>
    %150 = vector.shape_cast %149 : vector<1x32x160xf32> to vector<32x160xf32>
    %cst_100 = arith.constant dense<0.000000e+00> : vector<64x160xf32>
    %151 = tpu.matmul %148, %150, %cst_100 {dimension_numbers = #tpu.dot_dimension_numbers<[1], [0], [0], [1], [0, 0, 1, 1], [], []>} : vector<64x32xf32>, vector<32x160xf32>, vector<64x160xf32> -> vector<64x160xf32>
    %152 = vector.extract_strided_slice %151 {offsets = [0, 32], sizes = [64, 32], strides = [1, 1]} : vector<64x160xf32> to vector<64x32xf32>
    %153 = vector.extract_strided_slice %151 {offsets = [0, 64], sizes = [64, 32], strides = [1, 1]} : vector<64x160xf32> to vector<64x32xf32>
    %154 = vector.extract_strided_slice %151 {offsets = [0, 96], sizes = [64, 32], strides = [1, 1]} : vector<64x160xf32> to vector<64x32xf32>
    %155 = vector.extract_strided_slice %151 {offsets = [0, 128], sizes = [64, 32], strides = [1, 1]} : vector<64x160xf32> to vector<64x32xf32>
    %156 = tpu.concatenate %152, %153, %154, %155 in 0 : vector<64x32xf32>, vector<64x32xf32>, vector<64x32xf32>, vector<64x32xf32> -> vector<256x32xf32>
    %157 = vector.extract_strided_slice %151 {offsets = [0, 0], sizes = [64, 32], strides = [1, 1]} : vector<64x160xf32> to vector<64x32xf32>
    %c3_101 = arith.constant 3 : index
    %c0_102 = arith.constant 0 : index
    %c0_103 = arith.constant 0 : index
    %158 = vector.load %arg15[%c3_101, %c0_102, %c0_103] : memref<4x1x32xf32, #tpu.memory_space<vmem>>, vector<1x1x32xf32>
    %159 = vector.shape_cast %158 : vector<1x1x32xf32> to vector<1x32xf32>
    %160 = vector.broadcast %159 : vector<1x32xf32> to vector<64x32xf32>
    %161 = arith.addf %157, %160 : vector<64x32xf32>
    %cst_104 = arith.constant dense<0.000000e+00> : vector<64x32xf32>
    %162 = tpu.matmul %97, %156, %cst_104 {dimension_numbers = #tpu.dot_dimension_numbers<[1], [0], [0], [1], [0, 0, 1, 1], [], []>} : vector<64x256xf32>, vector<256x32xf32>, vector<64x32xf32> -> vector<64x32xf32>
    %163 = arith.addf %161, %162 : vector<64x32xf32>
    %cst_105 = arith.constant 0.000000e+00 : f32
    %164 = vector.broadcast %cst_105 : f32 to vector<64x32xf32>
    %165 = arith.maximumf %163, %164 : vector<64x32xf32>
    %166 = vector.extract_strided_slice %165 {offsets = [0, 0], sizes = [16, 32], strides = [1, 1]} : vector<64x32xf32> to vector<16x32xf32>
    %c0_106 = arith.constant 0 : index
    %c0_107 = arith.constant 0 : index
    %167 = vector.load %arg16[%c0_106, %c0_107] : memref<32x32xf32, #tpu.memory_space<vmem>>, vector<32x32xf32>
    %cst_108 = arith.constant dense<0.000000e+00> : vector<16x32xf32>
    %168 = tpu.matmul %166, %167, %cst_108 {dimension_numbers = #tpu.dot_dimension_numbers<[1], [0], [0], [1], [0, 0, 1, 1], [], []>} : vector<16x32xf32>, vector<32x32xf32>, vector<16x32xf32> -> vector<16x32xf32>
    %c0_109 = arith.constant 0 : index
    %c0_110 = arith.constant 0 : index
    %169 = vector.load %arg17[%c0_109, %c0_110] : memref<1x32xf32, #tpu.memory_space<vmem>>, vector<1x32xf32>
    %170 = vector.broadcast %169 : vector<1x32xf32> to vector<16x32xf32>
    %171 = arith.addf %168, %170 : vector<16x32xf32>
    %cst_111 = arith.constant 0.000000e+00 : f32
    %172 = vector.broadcast %cst_111 : f32 to vector<16x32xf32>
    %173 = arith.maximumf %171, %172 : vector<16x32xf32>
    %c0_112 = arith.constant 0 : index
    %c0_113 = arith.constant 0 : index
    %174 = vector.load %arg18[%c0_112, %c0_113] : memref<32x128xf32, #tpu.memory_space<vmem>>, vector<32x128xf32>
    %cst_114 = arith.constant dense<0.000000e+00> : vector<16x128xf32>
    %175 = tpu.matmul %173, %174, %cst_114 {dimension_numbers = #tpu.dot_dimension_numbers<[1], [0], [0], [1], [0, 0, 1, 1], [], []>} : vector<16x32xf32>, vector<32x128xf32>, vector<16x128xf32> -> vector<16x128xf32>
    %c0_115 = arith.constant 0 : index
    %c0_116 = arith.constant 0 : index
    %176 = vector.load %arg19[%c0_115, %c0_116] : memref<1x128xf32, #tpu.memory_space<vmem>>, vector<1x128xf32>
    %177 = vector.broadcast %176 : vector<1x128xf32> to vector<16x128xf32>
    %178 = arith.addf %175, %177 : vector<16x128xf32>
    %c0_117 = arith.constant 0 : index
    %c0_118 = arith.constant 0 : index
    %179 = vector.load %arg20[%c0_117, %c0_118] : memref<16x128xf32, #tpu.memory_space<vmem>>, vector<16x128xf32>
    tpu.vector_store %arg20[%c0_117, %c0_118], %178 {strides = array<i32>} : memref<16x128xf32, #tpu.memory_space<vmem>>, vector<16x128xf32>,
    return
  }
}

</mosaic_0001>

<llo_original>
// kernel: tpu_custom_call.1
$region0: #{tpu_custom_call.1}
  #allocation0 [shape = 'u32[]', space=smem, size = 0x4, offset = 0x4, fixed_abs, tag = 'smem constant byte address 0x4 - core index']
  #allocation1 [shape = 'u32[144,128]{1,0:T(1,128)}', space=vmem, size = 0x12000, scoped, tag = 'internal scratch']
  %s0 = inlined_call_operand.vmem [shape: f32[48,16], index: 0, kind: input, shape index: {}]
  %s1 = inlined_call_operand.hbm [shape: f32[16,64], index: 1, kind: input, shape index: {}]
  %s2 = inlined_call_operand.hbm [shape: f32[1,64], index: 2, kind: input, shape index: {}]
  %s3 = inlined_call_operand.hbm [shape: f32[16,32], index: 3, kind: input, shape index: {}]
  %s4 = inlined_call_operand.hbm [shape: f32[16,32], index: 4, kind: input, shape index: {}]
  %s5 = inlined_call_operand.hbm [shape: f32[16,32], index: 5, kind: input, shape index: {}]
  %s6 = inlined_call_operand.hbm [shape: f32[16,32], index: 6, kind: input, shape index: {}]
  %s7 = inlined_call_operand.hbm [shape: f32[16,48], index: 7, kind: input, shape index: {}]
  %s8 = inlined_call_operand.hbm [shape: f32[3,32,128], index: 8, kind: input, shape index: {}]
  %s9 = inlined_call_operand.hbm [shape: f32[3,1,32], index: 9, kind: input, shape index: {}]
  %s10 = inlined_call_operand.hbm [shape: f32[16,16], index: 10, kind: input, shape index: {}]
  %s11 = inlined_call_operand.vmem [shape: f32[3,32,32], index: 11, kind: input, shape index: {}]
  %s12 = inlined_call_operand.hbm [shape: f32[3,1,32], index: 12, kind: input, shape index: {}]
  %s13 = inlined_call_operand.hbm [shape: f32[64,256], index: 13, kind: input, shape index: {}]
  %s14 = inlined_call_operand.hbm [shape: f32[4,32,160], index: 14, kind: input, shape index: {}]
  %s15 = inlined_call_operand.hbm [shape: f32[4,1,32], index: 15, kind: input, shape index: {}]
  %s16 = inlined_call_operand.hbm [shape: f32[32,32], index: 16, kind: input, shape index: {}]
  %s17 = inlined_call_operand.hbm [shape: f32[1,32], index: 17, kind: input, shape index: {}]
  %s18 = inlined_call_operand.vmem [shape: f32[32,128], index: 18, kind: input, shape index: {}]
  %s19 = inlined_call_operand.vmem [shape: f32[1,128], index: 19, kind: input, shape index: {}]
  %s20 = inlined_call_operand.hbm [shape: f32[16,128], index: 20, kind: output, shape index: {}]
  %s21 = sld [smem:[#allocation0]]
  $region154: #{tpu_custom_call.1} parent=0
    _
  %s23 = ssub.s32 1, %s21
  %s24 = scalar_select 0, %s23, %s21
  $region1: #{tpu_custom_call.1} parent=0
    #allocation2 [shape = 'u8[8192]{0}', space=vmem, size = 0x2000, scoped, tag = 'input window, operand 1, single buffered']
    #allocation3 [shape = 's32[1]{0}', space=sflag, size = 0x4, scoped, tag = 'scoped memory for tpu_custom_call.1']
    #allocation4 [shape = 's32[1]{0}', space=sflag, size = 0x4, scoped, tag = 'scoped memory for tpu_custom_call.1']
    #allocation5 [shape = 'u8[512]{0}', space=vmem, size = 0x400, scoped, tag = 'input window, operand 2, single buffered']
    #allocation6 [shape = 's32[1]{0}', space=sflag, size = 0x4, scoped, tag = 'scoped memory for tpu_custom_call.1']
    #allocation7 [shape = 'u8[8192]{0}', space=vmem, size = 0x2000, scoped, tag = 'input window, operand 3, single buffered']
    #allocation8 [shape = 'u8[8192]{0}', space=vmem, size = 0x2000, scoped, tag = 'input window, operand 4, single buffered']
    #allocation9 [shape = 's32[1]{0}', space=sflag, size = 0x4, scoped, tag = 'scoped memory for tpu_custom_call.1']
    #allocation10 [shape = 'u8[8192]{0}', space=vmem, size = 0x2000, scoped, tag = 'input window, operand 5, single buffered']
    #allocation11 [shape = 'u8[8192]{0}', space=vmem, size = 0x2000, scoped, tag = 'input window, operand 6, single buffered']
    #allocation12 [shape = 's32[1]{0}', space=sflag, size = 0x4, scoped, tag = 'scoped memory for tpu_custom_call.1']
    #allocation13 [shape = 'u8[8192]{0}', space=vmem, size = 0x2000, scoped, tag = 'input window, operand 7, single buffered']
    #allocation14 [shape = 'u8[49152]{0}', space=vmem, size = 0xc000, scoped, tag = 'input window, operand 8, single buffered']
    #allocation15 [shape = 's32[1]{0}', space=sflag, size = 0x4, scoped, tag = 'scoped memory for tpu_custom_call.1']
    #allocation16 [shape = 'u8[1536]{0}', space=vmem, size = 0x800, scoped, tag = 'input window, operand 9, single buffered']
    #allocation17 [shape = 'u8[8192]{0}', space=vmem, size = 0x2000, scoped, tag = 'input window, operand 10, single buffered']
    #allocation18 [shape = 's32[1]{0}', space=sflag, size = 0x4, scoped, tag = 'scoped memory for tpu_custom_call.1']
    #allocation19 [shape = 'u8[1536]{0}', space=vmem, size = 0x800, scoped, tag = 'input window, operand 12, single buffered']
    #allocation20 [shape = 'u8[65536]{0}', space=vmem, size = 0x10000, scoped, tag = 'input window, operand 13, single buffered']
    #allocation21 [shape = 's32[1]{0}', space=sflag, size = 0x4, scoped, tag = 'scoped memory for tpu_custom_call.1']
    #allocation22 [shape = 'u8[131072]{0}', space=vmem, size = 0x20000, scoped, tag = 'input window, operand 14, single buffered']
    #allocation23 [shape = 'u8[2048]{0}', space=vmem, size = 0x800, scoped, tag = 'input window, operand 15, single buffered']
    #allocation24 [shape = 's32[1]{0}', space=sflag, size = 0x4, scoped, tag = 'scoped memory for tpu_custom_call.1']
    #allocation25 [shape = 'u8[16384]{0}', space=vmem, size = 0x4000, scoped, tag = 'input window, operand 16, single buffered']
    #allocation26 [shape = 'u8[512]{0}', space=vmem, size = 0x400, scoped, tag = 'input window, operand 17, single buffered']
    #allocation27 [shape = 's32[1]{0}', space=sflag, size = 0x4, scoped, tag = 'scoped memory for tpu_custom_call.1']
    #allocation28 [shape = 'u8[8192]{0}', space=vmem, size = 0x2000, scoped, tag = 'output window, operand 0, single buffered']
    %25 = vsyncpa [#allocation3], 0
    %26 = vsyncpa [#allocation6], 0
    %27 = vsyncpa [#allocation9], 0
    %28 = vsyncpa [#allocation12], 0
    %29 = vsyncpa [#allocation15], 0
    %30 = vsyncpa [#allocation18], 0
    %31 = vsyncpa [#allocation21], 0
    %32 = vsyncpa [#allocation24], 0
    %33 = vsyncpa [#allocation27], 0
    %34 = vsyncpa [#allocation4], 0
    // Predicated region
    $region2: #{tpu_custom_call.1} parent=1 // pred_check
      _
    $region3: #{tpu_custom_call.1} parent=1 // pred_check_branch
      %36 = sbr.rel (0) target = $region5
    $region4: #{tpu_custom_call.1} parent=1 // pred_region
      _
    $region5: #{tpu_custom_call.1} parent=1 // pred_fallthru
      _
    // Predicated region
    $region6: #{tpu_custom_call.1} parent=1 // pred_check
      _
    $region7: #{tpu_custom_call.1} parent=1 // pred_check_branch
      %38 = sbr.rel (0) target = $region9
    $region8: #{tpu_custom_call.1} parent=1 // pred_region
      %s40 = ssub.s32 256, 256
      %41 = vsyncadd [#allocation3], %s40
      %s42 = sshll.u32 [#allocation2], 4
      %s43 = int_to_ptr.vmem [resolvable:$true] %s42
      %48 = dma.hbm_to_vmem [thread:$0]  %s1, 256, %s43, [#allocation3], 128, 128, 8
    $region9: #{tpu_custom_call.1} parent=1 // pred_fallthru
      _
    // Predicated region
    $region10: #{tpu_custom_call.1} parent=1 // pred_check
      _
    $region11: #{tpu_custom_call.1} parent=1 // pred_check_branch
      %50 = sbr.rel (0) target = $region13
    $region12: #{tpu_custom_call.1} parent=1 // pred_region
      %s52 = ssub.s32 16, 16
      %53 = vsyncadd [#allocation6], %s52
      %s55 = sshll.u32 [#allocation5], 4
      %s56 = int_to_ptr.vmem [resolvable:$true] %s55
      %58 = dma.hbm_to_vmem [thread:$0]  %s2, 16, %s56, [#allocation6]
    $region13: #{tpu_custom_call.1} parent=1 // pred_fallthru
      _
    // Predicated region
    $region14: #{tpu_custom_call.1} parent=1 // pred_check
      _
    $region15: #{tpu_custom_call.1} parent=1 // pred_check_branch
      %60 = sbr.rel (0) target = $region17
    $region16: #{tpu_custom_call.1} parent=1 // pred_region
      %s62 = ssub.s32 256, 256
      %63 = vsyncadd [#allocation6], %s62
      %s64 = sshll.u32 [#allocation7], 4
      %s65 = int_to_ptr.vmem [resolvable:$true] %s64
      %70 = dma.hbm_to_vmem [thread:$0]  %s3, 256, %s65, [#allocation6], 128, 128, 8
    $region17: #{tpu_custom_call.1} parent=1 // pred_fallthru
      _
    // Predicated region
    $region18: #{tpu_custom_call.1} parent=1 // pred_check
      _
    $region19: #{tpu_custom_call.1} parent=1 // pred_check_branch
      %72 = sbr.rel (0) target = $region21
    $region20: #{tpu_custom_call.1} parent=1 // pred_region
      %s74 = ssub.s32 256, 256
      %75 = vsyncadd [#allocation9], %s74
      %s76 = sshll.u32 [#allocation8], 4
      %s77 = int_to_ptr.vmem [resolvable:$true] %s76
      %82 = dma.hbm_to_vmem [thread:$0]  %s4, 256, %s77, [#allocation9], 128, 128, 8
    $region21: #{tpu_custom_call.1} parent=1 // pred_fallthru
      _
    // Predicated region
    $region22: #{tpu_custom_call.1} parent=1 // pred_check
      _
    $region23: #{tpu_custom_call.1} parent=1 // pred_check_branch
      %84 = sbr.rel (0) target = $region25
    $region24: #{tpu_custom_call.1} parent=1 // pred_region
      %s86 = ssub.s32 256, 256
      %87 = vsyncadd [#allocation9], %s86
      %s88 = sshll.u32 [#allocation10], 4
      %s89 = int_to_ptr.vmem [resolvable:$true] %s88
      %94 = dma.hbm_to_vmem [thread:$0]  %s5, 256, %s89, [#allocation9], 128, 128, 8
    $region25: #{tpu_custom_call.1} parent=1 // pred_fallthru
      _
    // Predicated region
    $region26: #{tpu_custom_call.1} parent=1 // pred_check
      _
    $region27: #{tpu_custom_call.1} parent=1 // pred_check_branch
      %96 = sbr.rel (0) target = $region29
    $region28: #{tpu_custom_call.1} parent=1 // pred_region
      %s98 = ssub.s32 256, 256
      %99 = vsyncadd [#allocation12], %s98
      %s100 = sshll.u32 [#allocation11], 4
      %s101 = int_to_ptr.vmem [resolvable:$true] %s100
      %106 = dma.hbm_to_vmem [thread:$0]  %s6, 256, %s101, [#allocation12], 128, 128, 8
    $region29: #{tpu_custom_call.1} parent=1 // pred_fallthru
      _
    // Predicated region
    $region30: #{tpu_custom_call.1} parent=1 // pred_check
      _
    $region31: #{tpu_custom_call.1} parent=1 // pred_check_branch
      %108 = sbr.rel (0) target = $region33
    $region32: #{tpu_custom_call.1} parent=1 // pred_region
      %s110 = ssub.s32 256, 256
      %111 = vsyncadd [#allocation12], %s110
      %s112 = sshll.u32 [#allocation13], 4
      %s113 = int_to_ptr.vmem [resolvable:$true] %s112
      %118 = dma.hbm_to_vmem [thread:$0]  %s7, 256, %s113, [#allocation12], 128, 128, 8
    $region33: #{tpu_custom_call.1} parent=1 // pred_fallthru
      _
    // Predicated region
    $region34: #{tpu_custom_call.1} parent=1 // pred_check
      _
    $region35: #{tpu_custom_call.1} parent=1 // pred_check_branch
      %120 = sbr.rel (0) target = $region37
    $region36: #{tpu_custom_call.1} parent=1 // pred_region
      %s122 = ssub.s32 1536, 1536
      %123 = vsyncadd [#allocation15], %s122
      %s124 = sshll.u32 [#allocation14], 4
      %s125 = int_to_ptr.vmem [resolvable:$true] %s124
      %130 = dma.hbm_to_vmem [thread:$0]  %s8, 1536, %s125, [#allocation15], 128, 128, 8
    $region37: #{tpu_custom_call.1} parent=1 // pred_fallthru
      _
    // Predicated region
    $region38: #{tpu_custom_call.1} parent=1 // pred_check
      _
    $region39: #{tpu_custom_call.1} parent=1 // pred_check_branch
      %132 = sbr.rel (0) target = $region41
    $region40: #{tpu_custom_call.1} parent=1 // pred_region
      %s134 = ssub.s32 48, 48
      %135 = vsyncadd [#allocation15], %s134
      %s136 = sshll.u32 [#allocation16], 4
      %s137 = int_to_ptr.vmem [resolvable:$true] %s136
      %142 = dma.hbm_to_vmem [thread:$0]  %s9, 48, %s137, [#allocation15], 16, 16, 1
    $region41: #{tpu_custom_call.1} parent=1 // pred_fallthru
      _
    // Predicated region
    $region42: #{tpu_custom_call.1} parent=1 // pred_check
      _
    $region43: #{tpu_custom_call.1} parent=1 // pred_check_branch
      %144 = sbr.rel (0) target = $region45
    $region44: #{tpu_custom_call.1} parent=1 // pred_region
      %s146 = ssub.s32 256, 256
      %147 = vsyncadd [#allocation18], %s146
      %s148 = sshll.u32 [#allocation17], 4
      %s149 = int_to_ptr.vmem [resolvable:$true] %s148
      %154 = dma.hbm_to_vmem [thread:$0]  %s10, 256, %s149, [#allocation18], 128, 128, 8
    $region45: #{tpu_custom_call.1} parent=1 // pred_fallthru
      _
    // Predicated region
    $region46: #{tpu_custom_call.1} parent=1 // pred_check
      _
    $region47: #{tpu_custom_call.1} parent=1 // pred_check_branch
      %156 = sbr.rel (0) target = $region49
    $region48: #{tpu_custom_call.1} parent=1 // pred_region
      _
    $region49: #{tpu_custom_call.1} parent=1 // pred_fallthru
      _
    // Predicated region
    $region50: #{tpu_custom_call.1} parent=1 // pred_check
      _
    $region51: #{tpu_custom_call.1} parent=1 // pred_check_branch
      %158 = sbr.rel (0) target = $region53
    $region52: #{tpu_custom_call.1} parent=1 // pred_region
      %s160 = ssub.s32 48, 48
      %161 = vsyncadd [#allocation18], %s160
      %s162 = sshll.u32 [#allocation19], 4
      %s163 = int_to_ptr.vmem [resolvable:$true] %s162
      %168 = dma.hbm_to_vmem [thread:$0]  %s12, 48, %s163, [#allocation18], 16, 16, 1
    $region53: #{tpu_custom_call.1} parent=1 // pred_fallthru
      _
    // Predicated region
    $region54: #{tpu_custom_call.1} parent=1 // pred_check
      _
    $region55: #{tpu_custom_call.1} parent=1 // pred_check_branch
      %170 = sbr.rel (0) target = $region57
    $region56: #{tpu_custom_call.1} parent=1 // pred_region
      %s172 = ssub.s32 2048, 2048
      %173 = vsyncadd [#allocation21], %s172
      %s174 = sshll.u32 [#allocation20], 4
      %s175 = int_to_ptr.vmem [resolvable:$true] %s174
      %180 = dma.hbm_to_vmem [thread:$0]  %s13, 2048, %s175, [#allocation21], 256, 256, 16
    $region57: #{tpu_custom_call.1} parent=1 // pred_fallthru
      _
    // Predicated region
    $region58: #{tpu_custom_call.1} parent=1 // pred_check
      _
    $region59: #{tpu_custom_call.1} parent=1 // pred_check_branch
      %182 = sbr.rel (0) target = $region61
    $region60: #{tpu_custom_call.1} parent=1 // pred_region
      %s184 = ssub.s32 4096, 4096
      %185 = vsyncadd [#allocation21], %s184
      %s186 = sshll.u32 [#allocation22], 4
      %s187 = int_to_ptr.vmem [resolvable:$true] %s186
      %192 = dma.hbm_to_vmem [thread:$0]  %s14, 4096, %s187, [#allocation21], 256, 256, 16
    $region61: #{tpu_custom_call.1} parent=1 // pred_fallthru
      _
    // Predicated region
    $region62: #{tpu_custom_call.1} parent=1 // pred_check
      _
    $region63: #{tpu_custom_call.1} parent=1 // pred_check_branch
      %194 = sbr.rel (0) target = $region65
    $region64: #{tpu_custom_call.1} parent=1 // pred_region
      %s196 = ssub.s32 64, 64
      %197 = vsyncadd [#allocation24], %s196
      %s198 = sshll.u32 [#allocation23], 4
      %s199 = int_to_ptr.vmem [resolvable:$true] %s198
      %204 = dma.hbm_to_vmem [thread:$0]  %s15, 64, %s199, [#allocation24], 16, 16, 1
    $region65: #{tpu_custom_call.1} parent=1 // pred_fallthru
      _
    // Predicated region
    $region66: #{tpu_custom_call.1} parent=1 // pred_check
      _
    $region67: #{tpu_custom_call.1} parent=1 // pred_check_branch
      %206 = sbr.rel (0) target = $region69
    $region68: #{tpu_custom_call.1} parent=1 // pred_region
      %s208 = ssub.s32 512, 512
      %209 = vsyncadd [#allocation24], %s208
      %s210 = sshll.u32 [#allocation25], 4
      %s211 = int_to_ptr.vmem [resolvable:$true] %s210
      %216 = dma.hbm_to_vmem [thread:$0]  %s16, 512, %s211, [#allocation24], 128, 128, 8
    $region69: #{tpu_custom_call.1} parent=1 // pred_fallthru
      _
    // Predicated region
    $region70: #{tpu_custom_call.1} parent=1 // pred_check
      _
    $region71: #{tpu_custom_call.1} parent=1 // pred_check_branch
      %218 = sbr.rel (0) target = $region73
    $region72: #{tpu_custom_call.1} parent=1 // pred_region
      %s220 = ssub.s32 16, 16
      %221 = vsyncadd [#allocation27], %s220
      %s223 = sshll.u32 [#allocation26], 4
      %s224 = int_to_ptr.vmem [resolvable:$true] %s223
      %226 = dma.hbm_to_vmem [thread:$0]  %s17, 16, %s224, [#allocation27]
    $region73: #{tpu_custom_call.1} parent=1 // pred_fallthru
      _
    // Predicated region
    $region74: #{tpu_custom_call.1} parent=1 // pred_check
      _
    $region75: #{tpu_custom_call.1} parent=1 // pred_check_branch
      %228 = sbr.rel (0) target = $region77
    $region76: #{tpu_custom_call.1} parent=1 // pred_region
      _
    $region77: #{tpu_custom_call.1} parent=1 // pred_fallthru
      _
    // Predicated region
    $region78: #{tpu_custom_call.1} parent=1 // pred_check
      _
    $region79: #{tpu_custom_call.1} parent=1 // pred_check_branch
      %230 = sbr.rel (0) target = $region81
    $region80: #{tpu_custom_call.1} parent=1 // pred_region
      _
    $region81: #{tpu_custom_call.1} parent=1 // pred_fallthru
      _
    // Predicated region
    $region82: #{tpu_custom_call.1} parent=1 // pred_check
      _
    $region83: #{tpu_custom_call.1} parent=1 // pred_check_branch
      %232 = sbr.rel (0) target = $region85
    $region84: #{tpu_custom_call.1} parent=1 // pred_region
      %233 = dma.done [#allocation3], 256
    $region85: #{tpu_custom_call.1} parent=1 // pred_fallthru
      _
    // Predicated region
    $region86: #{tpu_custom_call.1} parent=1 // pred_check
      _
    $region87: #{tpu_custom_call.1} parent=1 // pred_check_branch
      %235 = sbr.rel (0) target = $region89
    $region88: #{tpu_custom_call.1} parent=1 // pred_region
      %236 = dma.done [#allocation6], 16
    $region89: #{tpu_custom_call.1} parent=1 // pred_fallthru
      _
    // Predicated region
    $region90: #{tpu_custom_call.1} parent=1 // pred_check
      _
    $region91: #{tpu_custom_call.1} parent=1 // pred_check_branch
      %238 = sbr.rel (0) target = $region93
    $region92: #{tpu_custom_call.1} parent=1 // pred_region
      %239 = dma.done [#allocation6], 256
    $region93: #{tpu_custom_call.1} parent=1 // pred_fallthru
      _
    // Predicated region
    $region94: #{tpu_custom_call.1} parent=1 // pred_check
      _
    $region95: #{tpu_custom_call.1} parent=1 // pred_check_branch
      %241 = sbr.rel (0) target = $region97
    $region96: #{tpu_custom_call.1} parent=1 // pred_region
      %242 = dma.done [#allocation9], 256
    $region97: #{tpu_custom_call.1} parent=1 // pred_fallthru
      _
    // Predicated region
    $region98: #{tpu_custom_call.1} parent=1 // pred_check
      _
    $region99: #{tpu_custom_call.1} parent=1 // pred_check_branch
      %244 = sbr.rel (0) target = $region101
    $region100: #{tpu_custom_call.1} parent=1 // pred_region
      %245 = dma.done [#allocation9], 256
    $region101: #{tpu_custom_call.1} parent=1 // pred_fallthru
      _
    // Predicated region
    $region102: #{tpu_custom_call.1} parent=1 // pred_check
      _
    $region103: #{tpu_custom_call.1} parent=1 // pred_check_branch
      %247 = sbr.rel (0) target = $region105
    $region104: #{tpu_custom_call.1} parent=1 // pred_region
      %248 = dma.done [#allocation12], 256
    $region105: #{tpu_custom_call.1} parent=1 // pred_fallthru
      _
    // Predicated region
    $region106: #{tpu_custom_call.1} parent=1 // pred_check
      _
    $region107: #{tpu_custom_call.1} parent=1 // pred_check_branch
      %250 = sbr.rel (0) target = $region109
    $region108: #{tpu_custom_call.1} parent=1 // pred_region
      %251 = dma.done [#allocation12], 256
    $region109: #{tpu_custom_call.1} parent=1 // pred_fallthru
      _
    // Predicated region
    $region110: #{tpu_custom_call.1} parent=1 // pred_check
      _
    $region111: #{tpu_custom_call.1} parent=1 // pred_check_branch
      %253 = sbr.rel (0) target = $region113
    $region112: #{tpu_custom_call.1} parent=1 // pred_region
      %254 = dma.done [#allocation15], 1536
    $region113: #{tpu_custom_call.1} parent=1 // pred_fallthru
      _
    // Predicated region
    $region114: #{tpu_custom_call.1} parent=1 // pred_check
      _
    $region115: #{tpu_custom_call.1} parent=1 // pred_check_branch
      %256 = sbr.rel (0) target = $region117
    $region116: #{tpu_custom_call.1} parent=1 // pred_region
      %257 = dma.done [#allocation15], 48
    $region117: #{tpu_custom_call.1} parent=1 // pred_fallthru
      _
    // Predicated region
    $region118: #{tpu_custom_call.1} parent=1 // pred_check
      _
    $region119: #{tpu_custom_call.1} parent=1 // pred_check_branch
      %259 = sbr.rel (0) target = $region121
    $region120: #{tpu_custom_call.1} parent=1 // pred_region
      %260 = dma.done [#allocation18], 256
    $region121: #{tpu_custom_call.1} parent=1 // pred_fallthru
      _
    // Predicated region
    $region122: #{tpu_custom_call.1} parent=1 // pred_check
      _
    $region123: #{tpu_custom_call.1} parent=1 // pred_check_branch
      %262 = sbr.rel (0) target = $region125
    $region124: #{tpu_custom_call.1} parent=1 // pred_region
      %263 = dma.done [#allocation18], 48
    $region125: #{tpu_custom_call.1} parent=1 // pred_fallthru
      _
    // Predicated region
    $region126: #{tpu_custom_call.1} parent=1 // pred_check
      _
    $region127: #{tpu_custom_call.1} parent=1 // pred_check_branch
      %265 = sbr.rel (0) target = $region129
    $region128: #{tpu_custom_call.1} parent=1 // pred_region
      %266 = dma.done [#allocation21], 2048
    $region129: #{tpu_custom_call.1} parent=1 // pred_fallthru
      _
    // Predicated region
    $region130: #{tpu_custom_call.1} parent=1 // pred_check
      _
    $region131: #{tpu_custom_call.1} parent=1 // pred_check_branch
      %268 = sbr.rel (0) target = $region133
    $region132: #{tpu_custom_call.1} parent=1 // pred_region
      %269 = dma.done [#allocation21], 4096
    $region133: #{tpu_custom_call.1} parent=1 // pred_fallthru
      _
    // Predicated region
    $region134: #{tpu_custom_call.1} parent=1 // pred_check
      _
    $region135: #{tpu_custom_call.1} parent=1 // pred_check_branch
      %271 = sbr.rel (0) target = $region137
    $region136: #{tpu_custom_call.1} parent=1 // pred_region
      %272 = dma.done [#allocation24], 64
    $region137: #{tpu_custom_call.1} parent=1 // pred_fallthru
      _
    // Predicated region
    $region138: #{tpu_custom_call.1} parent=1 // pred_check
      _
    $region139: #{tpu_custom_call.1} parent=1 // pred_check_branch
      %274 = sbr.rel (0) target = $region141
    $region140: #{tpu_custom_call.1} parent=1 // pred_region
      %275 = dma.done [#allocation24], 512
    $region141: #{tpu_custom_call.1} parent=1 // pred_fallthru
      _
    // Predicated region
    $region142: #{tpu_custom_call.1} parent=1 // pred_check
      _
    $region143: #{tpu_custom_call.1} parent=1 // pred_check_branch
      %277 = sbr.rel (0) target = $region145
    $region144: #{tpu_custom_call.1} parent=1 // pred_region
      %278 = dma.done [#allocation27], 16
    $region145: #{tpu_custom_call.1} parent=1 // pred_fallthru
      _
    %v279 = vld [vmem:[%s0] sm:$0xff]
    %v280 = vld [vmem:[%s0 + $0x8] sm:$0xff]
    %v281 = vld [vmem:[%s0 + $0x10] sm:$0xff]
    %v282 = vld [vmem:[%s0 + $0x18] sm:$0xff]
    %v283 = vld [vmem:[%s0 + $0x20] sm:$0xff]
    %v284 = vld [vmem:[%s0 + $0x28] sm:$0xff]
    %v285 = vld [vmem:[#allocation2] sm:$0xff]
    %v286 = vld [vmem:[#allocation2 + $0x8] sm:$0xff]
    %v287 = vld [vmem:[#allocation5] sm:$0x1]
    %v289 = vlaneseq
    %v290 = vshrl.u32 %v289, 7
    %v291 = vsub.s32 0, %v290
    %v292 = vrot.slane %v287, %v291
    %vm294 = vcmask 130048
    %v296 = vsel %vm294, %v279, 0
    %v299 = vsel %vm294, %v280, 0
    %v302 = vsel %vm294, %v281, 0
    %v305 = vsel %vm294, %v282, 0
    %v308 = vsel %vm294, %v283, 0
    %v311 = vsel %vm294, %v284, 0
    %313 = vmatprep.subr.mxu0 0.0
    %314 = vmatpush1.msra.mxu0 %v285
    %315 = vmatprep.subr.mxu0 0.0
    %316 = vmatpush1.msra.mxu0 %v286
    %317 = vmatprep.subr.mxu0 0.0
    %318 = vmatpush1.msra.mxu0 0.0
    %319 = vmatprep.subr.mxu0 0.0
    %320 = vmatpush1.msra.mxu0 0.0
    %321 = vmatprep.subr.mxu0 0.0
    %322 = vmatpush1.msra.mxu0 0.0
    %323 = vmatprep.subr.mxu0 0.0
    %324 = vmatpush1.msra.mxu0 0.0
    %325 = vmatprep.subr.mxu0 0.0
    %326 = vmatpush1.msra.mxu0 0.0
    %327 = vmatprep.subr.mxu0 0.0
    %328 = vmatpush1.msra.mxu0 0.0
    %329 = vmatprep.subr.mxu0 0.0
    %330 = vmatpush1.msra.mxu0 0.0
    %331 = vmatprep.subr.mxu0 0.0
    %332 = vmatpush1.msra.mxu0 0.0
    %333 = vmatprep.subr.mxu0 0.0
    %334 = vmatpush1.msra.mxu0 0.0
    %335 = vmatprep.subr.mxu0 0.0
    %336 = vmatpush1.msra.mxu0 0.0
    %337 = vmatprep.subr.mxu0 0.0
    %338 = vmatpush1.msra.mxu0 0.0
    %339 = vmatprep.subr.mxu0 0.0
    %340 = vmatpush1.msra.mxu0 0.0
    %341 = vmatprep.subr.mxu0 0.0
    %342 = vmatpush1.msra.mxu0 0.0
    %343 = vmatprep.subr.mxu0 0.0
    %344 = vmatpush1.msra.mxu0 0.0
    %345 = vmatprep.subr.mxu0 0.0
    %346 = vmatpush1.msra.mxu0 0.0
    %347 = vmatprep.subr.mxu0 0.0
    %348 = vmatpush1.msra.mxu0 0.0
    %349 = vmatprep.subr.mxu0 0.0
    %350 = vmatpush1.msra.mxu0 0.0
    %351 = vmatprep.subr.mxu0 0.0
    %352 = vmatpush1.msra.mxu0 0.0
    %353 = vmatprep.subr.mxu0 0.0
    %354 = vmatpush1.msra.mxu0 0.0
    %355 = vmatprep.subr.mxu0 0.0
    %356 = vmatpush1.msra.mxu0 0.0
    %357 = vmatprep.subr.mxu0 0.0
    %358 = vmatpush1.msra.mxu0 0.0
    %359 = vmatprep.subr.mxu0 0.0
    %360 = vmatpush1.msra.mxu0 0.0
    %361 = vmatprep.subr.mxu0 0.0
    %362 = vmatpush1.msra.mxu0 0.0
    %363 = vmatprep.subr.mxu0 0.0
    %364 = vmatpush1.msra.mxu0 0.0
    %365 = vmatprep.subr.mxu0 0.0
    %366 = vmatpush1.msra.mxu0 0.0
    %367 = vmatprep.subr.mxu0 0.0
    %368 = vmatpush1.msra.mxu0 0.0
    %369 = vmatprep.subr.mxu0 0.0
    %370 = vmatpush1.msra.mxu0 0.0
    %371 = vmatprep.subr.mxu0 0.0
    %372 = vmatpush1.msra.mxu0 0.0
    %373 = vmatprep.subr.mxu0 0.0
    %374 = vmatpush1.msra.mxu0 0.0
    %375 = vmatprep.subr.mxu0 0.0
    %376 = vmatpush1.msra.mxu0 0.0
    %377 = vmatprep.mubr.f32.mxu0 0.0
    %378 = vmatmul.mubr.f32.gmra.mrb[0].mxu0 %v296
    %v379 = vpop.f32.mrb[0].mxu0
    %v380 = vadd.f32 %v292, %v379
    %v381 = vpop.f32.mrb[0].mxu0
    %382 = vmatprep.mubr.f32.mxu0 0.0
    %383 = vmatmul.mubr.f32.gmra.mrb[0].mxu0 %v299
    %v384 = vpop.f32.mrb[0].mxu0
    %v385 = vadd.f32 %v292, %v384
    %v386 = vpop.f32.mrb[0].mxu0
    %387 = vmatprep.mubr.f32.mxu0 0.0
    %388 = vmatmul.mubr.f32.gmra.mrb[0].mxu0 %v302
    %v389 = vpop.f32.mrb[0].mxu0
    %v390 = vadd.f32 %v292, %v389
    %v391 = vpop.f32.mrb[0].mxu0
    %392 = vmatprep.mubr.f32.mxu0 0.0
    %393 = vmatmul.mubr.f32.gmra.mrb[0].mxu0 %v305
    %v394 = vpop.f32.mrb[0].mxu0
    %v395 = vadd.f32 %v292, %v394
    %v396 = vpop.f32.mrb[0].mxu0
    %397 = vmatprep.mubr.f32.mxu0 0.0
    %398 = vmatmul.mubr.f32.gmra.mrb[0].mxu0 %v308
    %v399 = vpop.f32.mrb[0].mxu0
    %v400 = vadd.f32 %v292, %v399
    %v401 = vpop.f32.mrb[0].mxu0
    %402 = vmatprep.mubr.f32.mxu0 0.0
    %403 = vmatmul.mubr.f32.gmra.mrb[0].mxu0 %v311
    %v404 = vpop.f32.mrb[0].mxu0
    %v405 = vadd.f32 %v292, %v404
    %v406 = vpop.f32.mrb[0].mxu0
    %407 = vdwg.mxu0
    %v408 = vld [vmem:[#allocation7] sm:$0xff]
    %v409 = vld [vmem:[#allocation7 + $0x8] sm:$0xff]
    %v410 = vadd.f32 %v408, %v380
    %v411 = vadd.f32 %v409, %v385
    %v412 = vld [vmem:[#allocation8] sm:$0xff]
    %v413 = vld [vmem:[#allocation8 + $0x8] sm:$0xff]
    %v414 = vadd.f32 %v412, %v390
    %v415 = vadd.f32 %v413, %v395
    %v416 = vld [vmem:[#allocation10] sm:$0xff]
    %v417 = vld [vmem:[#allocation10 + $0x8] sm:$0xff]
    %420 = vrot.lane.b32.xlu0 %v400, 96
    %v421 = vpop.permute.xlu0 %420
    %422 = vrot.lane.b32.xlu0 %v405, 96
    %v423 = vpop.permute.xlu0 %422
    %v426 = vadd.f32 %v416, %v421
    %v427 = vadd.f32 %v417, %v423
    %v428 = vld [vmem:[#allocation13] sm:$0xff]
    %v429 = vld [vmem:[#allocation13 + $0x8] sm:$0xff]
    %v430 = vld [vmem:[#allocation14] sm:$0xff]
    %v431 = vld [vmem:[#allocation14 + $0x8] sm:$0xff]
    %v432 = vld [vmem:[#allocation14 + $0x10] sm:$0xff]
    %v433 = vld [vmem:[#allocation14 + $0x18] sm:$0xff]
    %vm434 = vcmask 261120
    %v436 = vsel %vm434, %v414, 0
    %v439 = vsel %vm434, %v415, 0
    %441 = vmatprep.subr.mxu0 0.0
    %442 = vmatpush1.msra.mxu0 %v430
    %443 = vmatprep.subr.mxu0 0.0
    %444 = vmatpush1.msra.mxu0 %v431
    %445 = vmatprep.subr.mxu0 0.0
    %446 = vmatpush1.msra.mxu0 %v432
    %447 = vmatprep.subr.mxu0 0.0
    %448 = vmatpush1.msra.mxu0 %v433
    %449 = vmatprep.subr.mxu0 0.0
    %450 = vmatpush1.msra.mxu0 0.0
    %451 = vmatprep.subr.mxu0 0.0
    %452 = vmatpush1.msra.mxu0 0.0
    %453 = vmatprep.subr.mxu0 0.0
    %454 = vmatpush1.msra.mxu0 0.0
    %455 = vmatprep.subr.mxu0 0.0
    %456 = vmatpush1.msra.mxu0 0.0
    %457 = vmatprep.subr.mxu0 0.0
    %458 = vmatpush1.msra.mxu0 0.0
    %459 = vmatprep.subr.mxu0 0.0
    %460 = vmatpush1.msra.mxu0 0.0
    %461 = vmatprep.subr.mxu0 0.0
    %462 = vmatpush1.msra.mxu0 0.0
    %463 = vmatprep.subr.mxu0 0.0
    %464 = vmatpush1.msra.mxu0 0.0
    %465 = vmatprep.subr.mxu0 0.0
    %466 = vmatpush1.msra.mxu0 0.0
    %467 = vmatprep.subr.mxu0 0.0
    %468 = vmatpush1.msra.mxu0 0.0
    %469 = vmatprep.subr.mxu0 0.0
    %470 = vmatpush1.msra.mxu0 0.0
    %471 = vmatprep.subr.mxu0 0.0
    %472 = vmatpush1.msra.mxu0 0.0
    %473 = vmatprep.subr.mxu0 0.0
    %474 = vmatpush1.msra.mxu0 0.0
    %475 = vmatprep.subr.mxu0 0.0
    %476 = vmatpush1.msra.mxu0 0.0
    %477 = vmatprep.subr.mxu0 0.0
    %478 = vmatpush1.msra.mxu0 0.0
    %479 = vmatprep.subr.mxu0 0.0
    %480 = vmatpush1.msra.mxu0 0.0
    %481 = vmatprep.subr.mxu0 0.0
    %482 = vmatpush1.msra.mxu0 0.0
    %483 = vmatprep.subr.mxu0 0.0
    %484 = vmatpush1.msra.mxu0 0.0
    %485 = vmatprep.subr.mxu0 0.0
    %486 = vmatpush1.msra.mxu0 0.0
    %487 = vmatprep.subr.mxu0 0.0
    %488 = vmatpush1.msra.mxu0 0.0
    %489 = vmatprep.subr.mxu0 0.0
    %490 = vmatpush1.msra.mxu0 0.0
    %491 = vmatprep.subr.mxu0 0.0
    %492 = vmatpush1.msra.mxu0 0.0
    %493 = vmatprep.subr.mxu0 0.0
    %494 = vmatpush1.msra.mxu0 0.0
    %495 = vmatprep.subr.mxu0 0.0
    %496 = vmatpush1.msra.mxu0 0.0
    %497 = vmatprep.subr.mxu0 0.0
    %498 = vmatpush1.msra.mxu0 0.0
    %499 = vmatprep.subr.mxu0 0.0
    %500 = vmatpush1.msra.mxu0 0.0
    %501 = vmatprep.subr.mxu0 0.0
    %502 = vmatpush1.msra.mxu0 0.0
    %503 = vmatprep.subr.mxu0 0.0
    %504 = vmatpush1.msra.mxu0 0.0
    %505 = vmatprep.mubr.f32.mxu0 0.0
    %506 = vmatmul.mubr.f32.gmra.mrb[0].mxu0 %v436
    %v507 = vpop.f32.mrb[0].mxu0
    %v508 = vadd.f32 0.0, %v507
    %v509 = vpop.f32.mrb[0].mxu0
    %510 = vmatprep.mubr.f32.mxu0 0.0
    %511 = vmatmul.mubr.f32.gmra.mrb[0].mxu0 %v439
    %v512 = vpop.f32.mrb[0].mxu0
    %v513 = vadd.f32 0.0, %v512
    %v514 = vpop.f32.mrb[0].mxu0
    %515 = vdwg.mxu0
    %518 = vrot.lane.b32.xlu0 %v508, 96
    %v519 = vpop.permute.xlu0 %518
    %520 = vrot.lane.b32.xlu0 %v513, 96
    %v521 = vpop.permute.xlu0 %520
    %522 = vrot.lane.b32.xlu0 %v508, 64
    %v523 = vpop.permute.xlu0 %522
    %524 = vrot.lane.b32.xlu0 %v513, 64
    %v525 = vpop.permute.xlu0 %524
    %v526 = vld [vmem:[#allocation16] sm:$0x1]
    %v528 = vlaneseq
    %v529 = vshrl.u32 %v528, 7
    %v530 = vsub.s32 0, %v529
    %v531 = vrot.slane %v526, %v530
    %v533 = vadd.f32 %v508, %v531
    %v534 = vadd.f32 %v513, %v531
    %535 = vrot.lane.b32.xlu0 %v519, 96
    %v536 = vpop.permute.xlu0 %535
    %537 = vrot.lane.b32.xlu0 %v521, 96
    %v538 = vpop.permute.xlu0 %537
    %539 = vrot.lane.b32.xlu0 %v523, 96
    %v540 = vpop.permute.xlu0 %539
    %541 = vrot.lane.b32.xlu0 %v525, 96
    %v542 = vpop.permute.xlu0 %541
    %vm549 = vcmask 392192
    %v551 = vsel %vm549, %v428, 0
    %v554 = vsel %vm549, %v429, 0
    %556 = vmatprep.subr.mxu0 0.0
    %557 = vmatpush1.msra.mxu0 %v519
    %558 = vmatprep.subr.mxu0 0.0
    %559 = vmatpush1.msra.mxu0 %v521
    %560 = vmatprep.subr.mxu0 0.0
    %561 = vmatpush1.msra.mxu0 %v536
    %562 = vmatprep.subr.mxu0 0.0
    %563 = vmatpush1.msra.mxu0 %v538
    %564 = vmatprep.subr.mxu0 0.0
    %565 = vmatpush1.msra.mxu0 %v540
    %566 = vmatprep.subr.mxu0 0.0
    %567 = vmatpush1.msra.mxu0 %v542
    %568 = vmatprep.subr.mxu0 0.0
    %569 = vmatpush1.msra.mxu0 0.0
    %570 = vmatprep.subr.mxu0 0.0
    %571 = vmatpush1.msra.mxu0 0.0
    %572 = vmatprep.subr.mxu0 0.0
    %573 = vmatpush1.msra.mxu0 0.0
    %574 = vmatprep.subr.mxu0 0.0
    %575 = vmatpush1.msra.mxu0 0.0
    %576 = vmatprep.subr.mxu0 0.0
    %577 = vmatpush1.msra.mxu0 0.0
    %578 = vmatprep.subr.mxu0 0.0
    %579 = vmatpush1.msra.mxu0 0.0
    %580 = vmatprep.subr.mxu0 0.0
    %581 = vmatpush1.msra.mxu0 0.0
    %582 = vmatprep.subr.mxu0 0.0
    %583 = vmatpush1.msra.mxu0 0.0
    %584 = vmatprep.subr.mxu0 0.0
    %585 = vmatpush1.msra.mxu0 0.0
    %586 = vmatprep.subr.mxu0 0.0
    %587 = vmatpush1.msra.mxu0 0.0
    %588 = vmatprep.subr.mxu0 0.0
    %589 = vmatpush1.msra.mxu0 0.0
    %590 = vmatprep.subr.mxu0 0.0
    %591 = vmatpush1.msra.mxu0 0.0
    %592 = vmatprep.subr.mxu0 0.0
    %593 = vmatpush1.msra.mxu0 0.0
    %594 = vmatprep.subr.mxu0 0.0
    %595 = vmatpush1.msra.mxu0 0.0
    %596 = vmatprep.subr.mxu0 0.0
    %597 = vmatpush1.msra.mxu0 0.0
    %598 = vmatprep.subr.mxu0 0.0
    %599 = vmatpush1.msra.mxu0 0.0
    %600 = vmatprep.subr.mxu0 0.0
    %601 = vmatpush1.msra.mxu0 0.0
    %602 = vmatprep.subr.mxu0 0.0
    %603 = vmatpush1.msra.mxu0 0.0
    %604 = vmatprep.subr.mxu0 0.0
    %605 = vmatpush1.msra.mxu0 0.0
    %606 = vmatprep.subr.mxu0 0.0
    %607 = vmatpush1.msra.mxu0 0.0
    %608 = vmatprep.subr.mxu0 0.0
    %609 = vmatpush1.msra.mxu0 0.0
    %610 = vmatprep.subr.mxu0 0.0
    %611 = vmatpush1.msra.mxu0 0.0
    %612 = vmatprep.subr.mxu0 0.0
    %613 = vmatpush1.msra.mxu0 0.0
    %614 = vmatprep.subr.mxu0 0.0
    %615 = vmatpush1.msra.mxu0 0.0
    %616 = vmatprep.subr.mxu0 0.0
    %617 = vmatpush1.msra.mxu0 0.0
    %618 = vmatprep.subr.mxu0 0.0
    %619 = vmatpush1.msra.mxu0 0.0
    %620 = vmatprep.mubr.f32.mxu0 0.0
    %621 = vmatmul.mubr.f32.gmra.mrb[0].mxu0 %v551
    %v622 = vpop.f32.mrb[0].mxu0
    %v623 = vadd.f32 0.0, %v622
    %v624 = vpop.f32.mrb[0].mxu0
    %625 = vmatprep.mubr.f32.mxu0 0.0
    %626 = vmatmul.mubr.f32.gmra.mrb[0].mxu0 %v554
    %v627 = vpop.f32.mrb[0].mxu0
    %v628 = vadd.f32 0.0, %v627
    %v629 = vpop.f32.mrb[0].mxu0
    %630 = vdwg.mxu0
    %v631 = vadd.f32 %v533, %v623
    %v632 = vadd.f32 %v534, %v628
    %v633 = vmax.f32 %v631, 0.0
    %v634 = vmax.f32 %v632, 0.0
    %s635 = scalar_lea.vmem [#allocation14], 32
    %v636 = vld [vmem:[%s635] sm:$0xff]
    %v637 = vld [vmem:[%s635 + $0x8] sm:$0xff]
    %v638 = vld [vmem:[%s635 + $0x10] sm:$0xff]
    %v639 = vld [vmem:[%s635 + $0x18] sm:$0xff]
    %v641 = vsel %vm434, %v633, 0
    %v644 = vsel %vm434, %v634, 0
    %646 = vmatprep.subr.mxu0 0.0
    %647 = vmatpush1.msra.mxu0 %v636
    %648 = vmatprep.subr.mxu0 0.0
    %649 = vmatpush1.msra.mxu0 %v637
    %650 = vmatprep.subr.mxu0 0.0
    %651 = vmatpush1.msra.mxu0 %v638
    %652 = vmatprep.subr.mxu0 0.0
    %653 = vmatpush1.msra.mxu0 %v639
    %654 = vmatprep.subr.mxu0 0.0
    %655 = vmatpush1.msra.mxu0 0.0
    %656 = vmatprep.subr.mxu0 0.0
    %657 = vmatpush1.msra.mxu0 0.0
    %658 = vmatprep.subr.mxu0 0.0
    %659 = vmatpush1.msra.mxu0 0.0
    %660 = vmatprep.subr.mxu0 0.0
    %661 = vmatpush1.msra.mxu0 0.0
    %662 = vmatprep.subr.mxu0 0.0
    %663 = vmatpush1.msra.mxu0 0.0
    %664 = vmatprep.subr.mxu0 0.0
    %665 = vmatpush1.msra.mxu0 0.0
    %666 = vmatprep.subr.mxu0 0.0
    %667 = vmatpush1.msra.mxu0 0.0
    %668 = vmatprep.subr.mxu0 0.0
    %669 = vmatpush1.msra.mxu0 0.0
    %670 = vmatprep.subr.mxu0 0.0
    %671 = vmatpush1.msra.mxu0 0.0
    %672 = vmatprep.subr.mxu0 0.0
    %673 = vmatpush1.msra.mxu0 0.0
    %674 = vmatprep.subr.mxu0 0.0
    %675 = vmatpush1.msra.mxu0 0.0
    %676 = vmatprep.subr.mxu0 0.0
    %677 = vmatpush1.msra.mxu0 0.0
    %678 = vmatprep.subr.mxu0 0.0
    %679 = vmatpush1.msra.mxu0 0.0
    %680 = vmatprep.subr.mxu0 0.0
    %681 = vmatpush1.msra.mxu0 0.0
    %682 = vmatprep.subr.mxu0 0.0
    %683 = vmatpush1.msra.mxu0 0.0
    %684 = vmatprep.subr.mxu0 0.0
    %685 = vmatpush1.msra.mxu0 0.0
    %686 = vmatprep.subr.mxu0 0.0
    %687 = vmatpush1.msra.mxu0 0.0
    %688 = vmatprep.subr.mxu0 0.0
    %689 = vmatpush1.msra.mxu0 0.0
    %690 = vmatprep.subr.mxu0 0.0
    %691 = vmatpush1.msra.mxu0 0.0
    %692 = vmatprep.subr.mxu0 0.0
    %693 = vmatpush1.msra.mxu0 0.0
    %694 = vmatprep.subr.mxu0 0.0
    %695 = vmatpush1.msra.mxu0 0.0
    %696 = vmatprep.subr.mxu0 0.0
    %697 = vmatpush1.msra.mxu0 0.0
    %698 = vmatprep.subr.mxu0 0.0
    %699 = vmatpush1.msra.mxu0 0.0
    %700 = vmatprep.subr.mxu0 0.0
    %701 = vmatpush1.msra.mxu0 0.0
    %702 = vmatprep.subr.mxu0 0.0
    %703 = vmatpush1.msra.mxu0 0.0
    %704 = vmatprep.subr.mxu0 0.0
    %705 = vmatpush1.msra.mxu0 0.0
    %706 = vmatprep.subr.mxu0 0.0
    %707 = vmatpush1.msra.mxu0 0.0
    %708 = vmatprep.subr.mxu0 0.0
    %709 = vmatpush1.msra.mxu0 0.0
    %710 = vmatprep.mubr.f32.mxu0 0.0
    %711 = vmatmul.mubr.f32.gmra.mrb[0].mxu0 %v641
    %v712 = vpop.f32.mrb[0].mxu0
    %v713 = vadd.f32 0.0, %v712
    %v714 = vpop.f32.mrb[0].mxu0
    %715 = vmatprep.mubr.f32.mxu0 0.0
    %716 = vmatmul.mubr.f32.gmra.mrb[0].mxu0 %v644
    %v717 = vpop.f32.mrb[0].mxu0
    %v718 = vadd.f32 0.0, %v717
    %v719 = vpop.f32.mrb[0].mxu0
    %720 = vdwg.mxu0
    %723 = vrot.lane.b32.xlu0 %v713, 96
    %v724 = vpop.permute.xlu0 %723
    %725 = vrot.lane.b32.xlu0 %v718, 96
    %v726 = vpop.permute.xlu0 %725
    %727 = vrot.lane.b32.xlu0 %v713, 64
    %v728 = vpop.permute.xlu0 %727
    %729 = vrot.lane.b32.xlu0 %v718, 64
    %v730 = vpop.permute.xlu0 %729
    %s731 = scalar_lea.vmem [#allocation16], 1
    %v732 = vld [vmem:[%s731] sm:$0x1]
    %v734 = vlaneseq
    %v735 = vshrl.u32 %v734, 7
    %v736 = vsub.s32 0, %v735
    %v737 = vrot.slane %v732, %v736
    %v739 = vadd.f32 %v713, %v737
    %v740 = vadd.f32 %v718, %v737
    %741 = vrot.lane.b32.xlu0 %v724, 96
    %v742 = vpop.permute.xlu0 %741
    %743 = vrot.lane.b32.xlu0 %v726, 96
    %v744 = vpop.permute.xlu0 %743
    %745 = vrot.lane.b32.xlu0 %v728, 96
    %v746 = vpop.permute.xlu0 %745
    %747 = vrot.lane.b32.xlu0 %v730, 96
    %v748 = vpop.permute.xlu0 %747
    %755 = vmatprep.subr.mxu0 0.0
    %756 = vmatpush1.msra.mxu0 %v724
    %757 = vmatprep.subr.mxu0 0.0
    %758 = vmatpush1.msra.mxu0 %v726
    %759 = vmatprep.subr.mxu0 0.0
    %760 = vmatpush1.msra.mxu0 %v742
    %761 = vmatprep.subr.mxu0 0.0
    %762 = vmatpush1.msra.mxu0 %v744
    %763 = vmatprep.subr.mxu0 0.0
    %764 = vmatpush1.msra.mxu0 %v746
    %765 = vmatprep.subr.mxu0 0.0
    %766 = vmatpush1.msra.mxu0 %v748
    %767 = vmatprep.subr.mxu0 0.0
    %768 = vmatpush1.msra.mxu0 0.0
    %769 = vmatprep.subr.mxu0 0.0
    %770 = vmatpush1.msra.mxu0 0.0
    %771 = vmatprep.subr.mxu0 0.0
    %772 = vmatpush1.msra.mxu0 0.0
    %773 = vmatprep.subr.mxu0 0.0
    %774 = vmatpush1.msra.mxu0 0.0
    %775 = vmatprep.subr.mxu0 0.0
    %776 = vmatpush1.msra.mxu0 0.0
    %777 = vmatprep.subr.mxu0 0.0
    %778 = vmatpush1.msra.mxu0 0.0
    %779 = vmatprep.subr.mxu0 0.0
    %780 = vmatpush1.msra.mxu0 0.0
    %781 = vmatprep.subr.mxu0 0.0
    %782 = vmatpush1.msra.mxu0 0.0
    %783 = vmatprep.subr.mxu0 0.0
    %784 = vmatpush1.msra.mxu0 0.0
    %785 = vmatprep.subr.mxu0 0.0
    %786 = vmatpush1.msra.mxu0 0.0
    %787 = vmatprep.subr.mxu0 0.0
    %788 = vmatpush1.msra.mxu0 0.0
    %789 = vmatprep.subr.mxu0 0.0
    %790 = vmatpush1.msra.mxu0 0.0
    %791 = vmatprep.subr.mxu0 0.0
    %792 = vmatpush1.msra.mxu0 0.0
    %793 = vmatprep.subr.mxu0 0.0
    %794 = vmatpush1.msra.mxu0 0.0
    %795 = vmatprep.subr.mxu0 0.0
    %796 = vmatpush1.msra.mxu0 0.0
    %797 = vmatprep.subr.mxu0 0.0
    %798 = vmatpush1.msra.mxu0 0.0
    %799 = vmatprep.subr.mxu0 0.0
    %800 = vmatpush1.msra.mxu0 0.0
    %801 = vmatprep.subr.mxu0 0.0
    %802 = vmatpush1.msra.mxu0 0.0
    %803 = vmatprep.subr.mxu0 0.0
    %804 = vmatpush1.msra.mxu0 0.0
    %805 = vmatprep.subr.mxu0 0.0
    %806 = vmatpush1.msra.mxu0 0.0
    %807 = vmatprep.subr.mxu0 0.0
    %808 = vmatpush1.msra.mxu0 0.0
    %809 = vmatprep.subr.mxu0 0.0
    %810 = vmatpush1.msra.mxu0 0.0
    %811 = vmatprep.subr.mxu0 0.0
    %812 = vmatpush1.msra.mxu0 0.0
    %813 = vmatprep.subr.mxu0 0.0
    %814 = vmatpush1.msra.mxu0 0.0
    %815 = vmatprep.subr.mxu0 0.0
    %816 = vmatpush1.msra.mxu0 0.0
    %817 = vmatprep.subr.mxu0 0.0
    %818 = vmatpush1.msra.mxu0 0.0
    %819 = vmatprep.mubr.f32.mxu0 0.0
    %820 = vmatmul.mubr.f32.gmra.mrb[0].mxu0 %v551
    %v821 = vpop.f32.mrb[0].mxu0
    %v822 = vadd.f32 0.0, %v821
    %v823 = vpop.f32.mrb[0].mxu0
    %824 = vmatprep.mubr.f32.mxu0 0.0
    %825 = vmatmul.mubr.f32.gmra.mrb[0].mxu0 %v554
    %v826 = vpop.f32.mrb[0].mxu0
    %v827 = vadd.f32 0.0, %v826
    %v828 = vpop.f32.mrb[0].mxu0
    %829 = vdwg.mxu0
    %v830 = vadd.f32 %v739, %v822
    %v831 = vadd.f32 %v740, %v827
    %v832 = vmax.f32 %v830, 0.0
    %v833 = vmax.f32 %v831, 0.0
    %s834 = scalar_lea.vmem [#allocation14], 64
    %v835 = vld [vmem:[%s834] sm:$0xff]
    %v836 = vld [vmem:[%s834 + $0x8] sm:$0xff]
    %v837 = vld [vmem:[%s834 + $0x10] sm:$0xff]
    %v838 = vld [vmem:[%s834 + $0x18] sm:$0xff]
    %v840 = vsel %vm434, %v832, 0
    %v843 = vsel %vm434, %v833, 0
    %845 = vmatprep.subr.mxu0 0.0
    %846 = vmatpush1.msra.mxu0 %v835
    %847 = vmatprep.subr.mxu0 0.0
    %848 = vmatpush1.msra.mxu0 %v836
    %849 = vmatprep.subr.mxu0 0.0
    %850 = vmatpush1.msra.mxu0 %v837
    %851 = vmatprep.subr.mxu0 0.0
    %852 = vmatpush1.msra.mxu0 %v838
    %853 = vmatprep.subr.mxu0 0.0
    %854 = vmatpush1.msra.mxu0 0.0
    %855 = vmatprep.subr.mxu0 0.0
    %856 = vmatpush1.msra.mxu0 0.0
    %857 = vmatprep.subr.mxu0 0.0
    %858 = vmatpush1.msra.mxu0 0.0
    %859 = vmatprep.subr.mxu0 0.0
    %860 = vmatpush1.msra.mxu0 0.0
    %861 = vmatprep.subr.mxu0 0.0
    %862 = vmatpush1.msra.mxu0 0.0
    %863 = vmatprep.subr.mxu0 0.0
    %864 = vmatpush1.msra.mxu0 0.0
    %865 = vmatprep.subr.mxu0 0.0
    %866 = vmatpush1.msra.mxu0 0.0
    %867 = vmatprep.subr.mxu0 0.0
    %868 = vmatpush1.msra.mxu0 0.0
    %869 = vmatprep.subr.mxu0 0.0
    %870 = vmatpush1.msra.mxu0 0.0
    %871 = vmatprep.subr.mxu0 0.0
    %872 = vmatpush1.msra.mxu0 0.0
    %873 = vmatprep.subr.mxu0 0.0
    %874 = vmatpush1.msra.mxu0 0.0
    %875 = vmatprep.subr.mxu0 0.0
    %876 = vmatpush1.msra.mxu0 0.0
    %877 = vmatprep.subr.mxu0 0.0
    %878 = vmatpush1.msra.mxu0 0.0
    %879 = vmatprep.subr.mxu0 0.0
    %880 = vmatpush1.msra.mxu0 0.0
    %881 = vmatprep.subr.mxu0 0.0
    %882 = vmatpush1.msra.mxu0 0.0
    %883 = vmatprep.subr.mxu0 0.0
    %884 = vmatpush1.msra.mxu0 0.0
    %885 = vmatprep.subr.mxu0 0.0
    %886 = vmatpush1.msra.mxu0 0.0
    %887 = vmatprep.subr.mxu0 0.0
    %888 = vmatpush1.msra.mxu0 0.0
    %889 = vmatprep.subr.mxu0 0.0
    %890 = vmatpush1.msra.mxu0 0.0
    %891 = vmatprep.subr.mxu0 0.0
    %892 = vmatpush1.msra.mxu0 0.0
    %893 = vmatprep.subr.mxu0 0.0
    %894 = vmatpush1.msra.mxu0 0.0
    %895 = vmatprep.subr.mxu0 0.0
    %896 = vmatpush1.msra.mxu0 0.0
    %897 = vmatprep.subr.mxu0 0.0
    %898 = vmatpush1.msra.mxu0 0.0
    %899 = vmatprep.subr.mxu0 0.0
    %900 = vmatpush1.msra.mxu0 0.0
    %901 = vmatprep.subr.mxu0 0.0
    %902 = vmatpush1.msra.mxu0 0.0
    %903 = vmatprep.subr.mxu0 0.0
    %904 = vmatpush1.msra.mxu0 0.0
    %905 = vmatprep.subr.mxu0 0.0
    %906 = vmatpush1.msra.mxu0 0.0
    %907 = vmatprep.subr.mxu0 0.0
    %908 = vmatpush1.msra.mxu0 0.0
    %909 = vmatprep.mubr.f32.mxu0 0.0
    %910 = vmatmul.mubr.f32.gmra.mrb[0].mxu0 %v840
    %v911 = vpop.f32.mrb[0].mxu0
    %v912 = vadd.f32 0.0, %v911
    %v913 = vpop.f32.mrb[0].mxu0
    %914 = vmatprep.mubr.f32.mxu0 0.0
    %915 = vmatmul.mubr.f32.gmra.mrb[0].mxu0 %v843
    %v916 = vpop.f32.mrb[0].mxu0
    %v917 = vadd.f32 0.0, %v916
    %v918 = vpop.f32.mrb[0].mxu0
    %919 = vdwg.mxu0
    %922 = vrot.lane.b32.xlu0 %v912, 96
    %v923 = vpop.permute.xlu0 %922
    %924 = vrot.lane.b32.xlu0 %v917, 96
    %v925 = vpop.permute.xlu0 %924
    %926 = vrot.lane.b32.xlu0 %v912, 64
    %v927 = vpop.permute.xlu0 %926
    %928 = vrot.lane.b32.xlu0 %v917, 64
    %v929 = vpop.permute.xlu0 %928
    %s930 = scalar_lea.vmem [#allocation16], 2
    %v931 = vld [vmem:[%s930] sm:$0x1]
    %v933 = vlaneseq
    %v934 = vshrl.u32 %v933, 7
    %v935 = vsub.s32 0, %v934
    %v936 = vrot.slane %v931, %v935
    %v938 = vadd.f32 %v912, %v936
    %v939 = vadd.f32 %v917, %v936
    %940 = vrot.lane.b32.xlu0 %v923, 96
    %v941 = vpop.permute.xlu0 %940
    %942 = vrot.lane.b32.xlu0 %v925, 96
    %v943 = vpop.permute.xlu0 %942
    %944 = vrot.lane.b32.xlu0 %v927, 96
    %v945 = vpop.permute.xlu0 %944
    %946 = vrot.lane.b32.xlu0 %v929, 96
    %v947 = vpop.permute.xlu0 %946
    %954 = vmatprep.subr.mxu0 0.0
    %955 = vmatpush1.msra.mxu0 %v923
    %956 = vmatprep.subr.mxu0 0.0
    %957 = vmatpush1.msra.mxu0 %v925
    %958 = vmatprep.subr.mxu0 0.0
    %959 = vmatpush1.msra.mxu0 %v941
    %960 = vmatprep.subr.mxu0 0.0
    %961 = vmatpush1.msra.mxu0 %v943
    %962 = vmatprep.subr.mxu0 0.0
    %963 = vmatpush1.msra.mxu0 %v945
    %964 = vmatprep.subr.mxu0 0.0
    %965 = vmatpush1.msra.mxu0 %v947
    %966 = vmatprep.subr.mxu0 0.0
    %967 = vmatpush1.msra.mxu0 0.0
    %968 = vmatprep.subr.mxu0 0.0
    %969 = vmatpush1.msra.mxu0 0.0
    %970 = vmatprep.subr.mxu0 0.0
    %971 = vmatpush1.msra.mxu0 0.0
    %972 = vmatprep.subr.mxu0 0.0
    %973 = vmatpush1.msra.mxu0 0.0
    %974 = vmatprep.subr.mxu0 0.0
    %975 = vmatpush1.msra.mxu0 0.0
    %976 = vmatprep.subr.mxu0 0.0
    %977 = vmatpush1.msra.mxu0 0.0
    %978 = vmatprep.subr.mxu0 0.0
    %979 = vmatpush1.msra.mxu0 0.0
    %980 = vmatprep.subr.mxu0 0.0
    %981 = vmatpush1.msra.mxu0 0.0
    %982 = vmatprep.subr.mxu0 0.0
    %983 = vmatpush1.msra.mxu0 0.0
    %984 = vmatprep.subr.mxu0 0.0
    %985 = vmatpush1.msra.mxu0 0.0
    %986 = vmatprep.subr.mxu0 0.0
    %987 = vmatpush1.msra.mxu0 0.0
    %988 = vmatprep.subr.mxu0 0.0
    %989 = vmatpush1.msra.mxu0 0.0
    %990 = vmatprep.subr.mxu0 0.0
    %991 = vmatpush1.msra.mxu0 0.0
    %992 = vmatprep.subr.mxu0 0.0
    %993 = vmatpush1.msra.mxu0 0.0
    %994 = vmatprep.subr.mxu0 0.0
    %995 = vmatpush1.msra.mxu0 0.0
    %996 = vmatprep.subr.mxu0 0.0
    %997 = vmatpush1.msra.mxu0 0.0
    %998 = vmatprep.subr.mxu0 0.0
    %999 = vmatpush1.msra.mxu0 0.0
    %1000 = vmatprep.subr.mxu0 0.0
    %1001 = vmatpush1.msra.mxu0 0.0
    %1002 = vmatprep.subr.mxu0 0.0
    %1003 = vmatpush1.msra.mxu0 0.0
    %1004 = vmatprep.subr.mxu0 0.0
    %1005 = vmatpush1.msra.mxu0 0.0
    %1006 = vmatprep.subr.mxu0 0.0
    %1007 = vmatpush1.msra.mxu0 0.0
    %1008 = vmatprep.subr.mxu0 0.0
    %1009 = vmatpush1.msra.mxu0 0.0
    %1010 = vmatprep.subr.mxu0 0.0
    %1011 = vmatpush1.msra.mxu0 0.0
    %1012 = vmatprep.subr.mxu0 0.0
    %1013 = vmatpush1.msra.mxu0 0.0
    %1014 = vmatprep.subr.mxu0 0.0
    %1015 = vmatpush1.msra.mxu0 0.0
    %1016 = vmatprep.subr.mxu0 0.0
    %1017 = vmatpush1.msra.mxu0 0.0
    %1018 = vmatprep.mubr.f32.mxu0 0.0
    %1019 = vmatmul.mubr.f32.gmra.mrb[0].mxu0 %v551
    %v1020 = vpop.f32.mrb[0].mxu0
    %v1021 = vadd.f32 0.0, %v1020
    %v1022 = vpop.f32.mrb[0].mxu0
    %1023 = vmatprep.mubr.f32.mxu0 0.0
    %1024 = vmatmul.mubr.f32.gmra.mrb[0].mxu0 %v554
    %v1025 = vpop.f32.mrb[0].mxu0
    %v1026 = vadd.f32 0.0, %v1025
    %v1027 = vpop.f32.mrb[0].mxu0
    %1028 = vdwg.mxu0
    %v1029 = vadd.f32 %v938, %v1021
    %v1030 = vadd.f32 %v939, %v1026
    %v1031 = vmax.f32 %v1029, 0.0
    %v1032 = vmax.f32 %v1030, 0.0
    %v1033 = vld [vmem:[#allocation17] sm:$0xff]
    %v1034 = vld [vmem:[#allocation17 + $0x8] sm:$0xff]
    %v1035 = vld [vmem:[%s11] sm:$0xff]
    %v1036 = vld [vmem:[%s11 + $0x8] sm:$0xff]
    %v1037 = vld [vmem:[%s11 + $0x10] sm:$0xff]
    %v1038 = vld [vmem:[%s11 + $0x18] sm:$0xff]
    %v1040 = vsel %vm434, %v426, 0
    %v1043 = vsel %vm434, %v427, 0
    %1045 = vmatprep.subr.mxu0 0.0
    %1046 = vmatpush1.msra.mxu0 %v1035
    %1047 = vmatprep.subr.mxu0 0.0
    %1048 = vmatpush1.msra.mxu0 %v1036
    %1049 = vmatprep.subr.mxu0 0.0
    %1050 = vmatpush1.msra.mxu0 %v1037
    %1051 = vmatprep.subr.mxu0 0.0
    %1052 = vmatpush1.msra.mxu0 %v1038
    %1053 = vmatprep.subr.mxu0 0.0
    %1054 = vmatpush1.msra.mxu0 0.0
    %1055 = vmatprep.subr.mxu0 0.0
    %1056 = vmatpush1.msra.mxu0 0.0
    %1057 = vmatprep.subr.mxu0 0.0
    %1058 = vmatpush1.msra.mxu0 0.0
    %1059 = vmatprep.subr.mxu0 0.0
    %1060 = vmatpush1.msra.mxu0 0.0
    %1061 = vmatprep.subr.mxu0 0.0
    %1062 = vmatpush1.msra.mxu0 0.0
    %1063 = vmatprep.subr.mxu0 0.0
    %1064 = vmatpush1.msra.mxu0 0.0
    %1065 = vmatprep.subr.mxu0 0.0
    %1066 = vmatpush1.msra.mxu0 0.0
    %1067 = vmatprep.subr.mxu0 0.0
    %1068 = vmatpush1.msra.mxu0 0.0
    %1069 = vmatprep.subr.mxu0 0.0
    %1070 = vmatpush1.msra.mxu0 0.0
    %1071 = vmatprep.subr.mxu0 0.0
    %1072 = vmatpush1.msra.mxu0 0.0
    %1073 = vmatprep.subr.mxu0 0.0
    %1074 = vmatpush1.msra.mxu0 0.0
    %1075 = vmatprep.subr.mxu0 0.0
    %1076 = vmatpush1.msra.mxu0 0.0
    %1077 = vmatprep.subr.mxu0 0.0
    %1078 = vmatpush1.msra.mxu0 0.0
    %1079 = vmatprep.subr.mxu0 0.0
    %1080 = vmatpush1.msra.mxu0 0.0
    %1081 = vmatprep.subr.mxu0 0.0
    %1082 = vmatpush1.msra.mxu0 0.0
    %1083 = vmatprep.subr.mxu0 0.0
    %1084 = vmatpush1.msra.mxu0 0.0
    %1085 = vmatprep.subr.mxu0 0.0
    %1086 = vmatpush1.msra.mxu0 0.0
    %1087 = vmatprep.subr.mxu0 0.0
    %1088 = vmatpush1.msra.mxu0 0.0
    %1089 = vmatprep.subr.mxu0 0.0
    %1090 = vmatpush1.msra.mxu0 0.0
    %1091 = vmatprep.subr.mxu0 0.0
    %1092 = vmatpush1.msra.mxu0 0.0
    %1093 = vmatprep.subr.mxu0 0.0
    %1094 = vmatpush1.msra.mxu0 0.0
    %1095 = vmatprep.subr.mxu0 0.0
    %1096 = vmatpush1.msra.mxu0 0.0
    %1097 = vmatprep.subr.mxu0 0.0
    %1098 = vmatpush1.msra.mxu0 0.0
    %1099 = vmatprep.subr.mxu0 0.0
    %1100 = vmatpush1.msra.mxu0 0.0
    %1101 = vmatprep.subr.mxu0 0.0
    %1102 = vmatpush1.msra.mxu0 0.0
    %1103 = vmatprep.subr.mxu0 0.0
    %1104 = vmatpush1.msra.mxu0 0.0
    %1105 = vmatprep.subr.mxu0 0.0
    %1106 = vmatpush1.msra.mxu0 0.0
    %1107 = vmatprep.subr.mxu0 0.0
    %1108 = vmatpush1.msra.mxu0 0.0
    %1109 = vmatprep.mubr.f32.mxu0 0.0
    %1110 = vmatmul.mubr.f32.gmra.mrb[0].mxu0 %v1040
    %v1111 = vpop.f32.mrb[0].mxu0
    %v1112 = vadd.f32 0.0, %v1111
    %v1113 = vpop.f32.mrb[0].mxu0
    %1114 = vmatprep.mubr.f32.mxu0 0.0
    %1115 = vmatmul.mubr.f32.gmra.mrb[0].mxu0 %v1043
    %v1116 = vpop.f32.mrb[0].mxu0
    %v1117 = vadd.f32 0.0, %v1116
    %v1118 = vpop.f32.mrb[0].mxu0
    %1119 = vdwg.mxu0
    %v1120 = vld [vmem:[#allocation19] sm:$0x1]
    %v1122 = vlaneseq
    %v1123 = vshrl.u32 %v1122, 7
    %v1124 = vsub.s32 0, %v1123
    %v1125 = vrot.slane %v1120, %v1124
    %v1128 = vsel %vm294, %v1033, 0
    %v1131 = vsel %vm294, %v1034, 0
    %1133 = vmatprep.subr.mxu0 0.0
    %1134 = vmatpush1.msra.mxu0 %v1112
    %1135 = vmatprep.subr.mxu0 0.0
    %1136 = vmatpush1.msra.mxu0 %v1117
    %1137 = vmatprep.subr.mxu0 0.0
    %1138 = vmatpush1.msra.mxu0 0.0
    %1139 = vmatprep.subr.mxu0 0.0
    %1140 = vmatpush1.msra.mxu0 0.0
    %1141 = vmatprep.subr.mxu0 0.0
    %1142 = vmatpush1.msra.mxu0 0.0
    %1143 = vmatprep.subr.mxu0 0.0
    %1144 = vmatpush1.msra.mxu0 0.0
    %1145 = vmatprep.subr.mxu0 0.0
    %1146 = vmatpush1.msra.mxu0 0.0
    %1147 = vmatprep.subr.mxu0 0.0
    %1148 = vmatpush1.msra.mxu0 0.0
    %1149 = vmatprep.subr.mxu0 0.0
    %1150 = vmatpush1.msra.mxu0 0.0
    %1151 = vmatprep.subr.mxu0 0.0
    %1152 = vmatpush1.msra.mxu0 0.0
    %1153 = vmatprep.subr.mxu0 0.0
    %1154 = vmatpush1.msra.mxu0 0.0
    %1155 = vmatprep.subr.mxu0 0.0
    %1156 = vmatpush1.msra.mxu0 0.0
    %1157 = vmatprep.subr.mxu0 0.0
    %1158 = vmatpush1.msra.mxu0 0.0
    %1159 = vmatprep.subr.mxu0 0.0
    %1160 = vmatpush1.msra.mxu0 0.0
    %1161 = vmatprep.subr.mxu0 0.0
    %1162 = vmatpush1.msra.mxu0 0.0
    %1163 = vmatprep.subr.mxu0 0.0
    %1164 = vmatpush1.msra.mxu0 0.0
    %1165 = vmatprep.subr.mxu0 0.0
    %1166 = vmatpush1.msra.mxu0 0.0
    %1167 = vmatprep.subr.mxu0 0.0
    %1168 = vmatpush1.msra.mxu0 0.0
    %1169 = vmatprep.subr.mxu0 0.0
    %1170 = vmatpush1.msra.mxu0 0.0
    %1171 = vmatprep.subr.mxu0 0.0
    %1172 = vmatpush1.msra.mxu0 0.0
    %1173 = vmatprep.subr.mxu0 0.0
    %1174 = vmatpush1.msra.mxu0 0.0
    %1175 = vmatprep.subr.mxu0 0.0
    %1176 = vmatpush1.msra.mxu0 0.0
    %1177 = vmatprep.subr.mxu0 0.0
    %1178 = vmatpush1.msra.mxu0 0.0
    %1179 = vmatprep.subr.mxu0 0.0
    %1180 = vmatpush1.msra.mxu0 0.0
    %1181 = vmatprep.subr.mxu0 0.0
    %1182 = vmatpush1.msra.mxu0 0.0
    %1183 = vmatprep.subr.mxu0 0.0
    %1184 = vmatpush1.msra.mxu0 0.0
    %1185 = vmatprep.subr.mxu0 0.0
    %1186 = vmatpush1.msra.mxu0 0.0
    %1187 = vmatprep.subr.mxu0 0.0
    %1188 = vmatpush1.msra.mxu0 0.0
    %1189 = vmatprep.subr.mxu0 0.0
    %1190 = vmatpush1.msra.mxu0 0.0
    %1191 = vmatprep.subr.mxu0 0.0
    %1192 = vmatpush1.msra.mxu0 0.0
    %1193 = vmatprep.subr.mxu0 0.0
    %1194 = vmatpush1.msra.mxu0 0.0
    %1195 = vmatprep.subr.mxu0 0.0
    %1196 = vmatpush1.msra.mxu0 0.0
    %1197 = vmatprep.mubr.f32.mxu0 0.0
    %1198 = vmatmul.mubr.f32.gmra.mrb[0].mxu0 %v1128
    %v1199 = vpop.f32.mrb[0].mxu0
    %v1200 = vadd.f32 %v1125, %v1199
    %v1201 = vpop.f32.mrb[0].mxu0
    %1202 = vmatprep.mubr.f32.mxu0 0.0
    %1203 = vmatmul.mubr.f32.gmra.mrb[0].mxu0 %v1131
    %v1204 = vpop.f32.mrb[0].mxu0
    %v1205 = vadd.f32 %v1125, %v1204
    %v1206 = vpop.f32.mrb[0].mxu0
    %1207 = vdwg.mxu0
    %v1208 = vmax.f32 %v1200, 0.0
    %v1209 = vmax.f32 %v1205, 0.0
    %s1210 = scalar_lea.vmem %s11, 32
    %v1211 = vld [vmem:[%s1210] sm:$0xff]
    %v1212 = vld [vmem:[%s1210 + $0x8] sm:$0xff]
    %v1213 = vld [vmem:[%s1210 + $0x10] sm:$0xff]
    %v1214 = vld [vmem:[%s1210 + $0x18] sm:$0xff]
    %v1216 = vsel %vm434, %v1208, 0
    %v1219 = vsel %vm434, %v1209, 0
    %1221 = vmatprep.subr.mxu0 0.0
    %1222 = vmatpush1.msra.mxu0 %v1211
    %1223 = vmatprep.subr.mxu0 0.0
    %1224 = vmatpush1.msra.mxu0 %v1212
    %1225 = vmatprep.subr.mxu0 0.0
    %1226 = vmatpush1.msra.mxu0 %v1213
    %1227 = vmatprep.subr.mxu0 0.0
    %1228 = vmatpush1.msra.mxu0 %v1214
    %1229 = vmatprep.subr.mxu0 0.0
    %1230 = vmatpush1.msra.mxu0 0.0
    %1231 = vmatprep.subr.mxu0 0.0
    %1232 = vmatpush1.msra.mxu0 0.0
    %1233 = vmatprep.subr.mxu0 0.0
    %1234 = vmatpush1.msra.mxu0 0.0
    %1235 = vmatprep.subr.mxu0 0.0
    %1236 = vmatpush1.msra.mxu0 0.0
    %1237 = vmatprep.subr.mxu0 0.0
    %1238 = vmatpush1.msra.mxu0 0.0
    %1239 = vmatprep.subr.mxu0 0.0
    %1240 = vmatpush1.msra.mxu0 0.0
    %1241 = vmatprep.subr.mxu0 0.0
    %1242 = vmatpush1.msra.mxu0 0.0
    %1243 = vmatprep.subr.mxu0 0.0
    %1244 = vmatpush1.msra.mxu0 0.0
    %1245 = vmatprep.subr.mxu0 0.0
    %1246 = vmatpush1.msra.mxu0 0.0
    %1247 = vmatprep.subr.mxu0 0.0
    %1248 = vmatpush1.msra.mxu0 0.0
    %1249 = vmatprep.subr.mxu0 0.0
    %1250 = vmatpush1.msra.mxu0 0.0
    %1251 = vmatprep.subr.mxu0 0.0
    %1252 = vmatpush1.msra.mxu0 0.0
    %1253 = vmatprep.subr.mxu0 0.0
    %1254 = vmatpush1.msra.mxu0 0.0
    %1255 = vmatprep.subr.mxu0 0.0
    %1256 = vmatpush1.msra.mxu0 0.0
    %1257 = vmatprep.subr.mxu0 0.0
    %1258 = vmatpush1.msra.mxu0 0.0
    %1259 = vmatprep.subr.mxu0 0.0
    %1260 = vmatpush1.msra.mxu0 0.0
    %1261 = vmatprep.subr.mxu0 0.0
    %1262 = vmatpush1.msra.mxu0 0.0
    %1263 = vmatprep.subr.mxu0 0.0
    %1264 = vmatpush1.msra.mxu0 0.0
    %1265 = vmatprep.subr.mxu0 0.0
    %1266 = vmatpush1.msra.mxu0 0.0
    %1267 = vmatprep.subr.mxu0 0.0
    %1268 = vmatpush1.msra.mxu0 0.0
    %1269 = vmatprep.subr.mxu0 0.0
    %1270 = vmatpush1.msra.mxu0 0.0
    %1271 = vmatprep.subr.mxu0 0.0
    %1272 = vmatpush1.msra.mxu0 0.0
    %1273 = vmatprep.subr.mxu0 0.0
    %1274 = vmatpush1.msra.mxu0 0.0
    %1275 = vmatprep.subr.mxu0 0.0
    %1276 = vmatpush1.msra.mxu0 0.0
    %1277 = vmatprep.subr.mxu0 0.0
    %1278 = vmatpush1.msra.mxu0 0.0
    %1279 = vmatprep.subr.mxu0 0.0
    %1280 = vmatpush1.msra.mxu0 0.0
    %1281 = vmatprep.subr.mxu0 0.0
    %1282 = vmatpush1.msra.mxu0 0.0
    %1283 = vmatprep.subr.mxu0 0.0
    %1284 = vmatpush1.msra.mxu0 0.0
    %1285 = vmatprep.mubr.f32.mxu0 0.0
    %1286 = vmatmul.mubr.f32.gmra.mrb[0].mxu0 %v1216
    %v1287 = vpop.f32.mrb[0].mxu0
    %v1288 = vadd.f32 0.0, %v1287
    %v1289 = vpop.f32.mrb[0].mxu0
    %1290 = vmatprep.mubr.f32.mxu0 0.0
    %1291 = vmatmul.mubr.f32.gmra.mrb[0].mxu0 %v1219
    %v1292 = vpop.f32.mrb[0].mxu0
    %v1293 = vadd.f32 0.0, %v1292
    %v1294 = vpop.f32.mrb[0].mxu0
    %1295 = vdwg.mxu0
    %s1296 = scalar_lea.vmem [#allocation19], 1
    %v1297 = vld [vmem:[%s1296] sm:$0x1]
    %v1299 = vlaneseq
    %v1300 = vshrl.u32 %v1299, 7
    %v1301 = vsub.s32 0, %v1300
    %v1302 = vrot.slane %v1297, %v1301
    %1304 = vmatprep.subr.mxu0 0.0
    %1305 = vmatpush1.msra.mxu0 %v1288
    %1306 = vmatprep.subr.mxu0 0.0
    %1307 = vmatpush1.msra.mxu0 %v1293
    %1308 = vmatprep.subr.mxu0 0.0
    %1309 = vmatpush1.msra.mxu0 0.0
    %1310 = vmatprep.subr.mxu0 0.0
    %1311 = vmatpush1.msra.mxu0 0.0
    %1312 = vmatprep.subr.mxu0 0.0
    %1313 = vmatpush1.msra.mxu0 0.0
    %1314 = vmatprep.subr.mxu0 0.0
    %1315 = vmatpush1.msra.mxu0 0.0
    %1316 = vmatprep.subr.mxu0 0.0
    %1317 = vmatpush1.msra.mxu0 0.0
    %1318 = vmatprep.subr.mxu0 0.0
    %1319 = vmatpush1.msra.mxu0 0.0
    %1320 = vmatprep.subr.mxu0 0.0
    %1321 = vmatpush1.msra.mxu0 0.0
    %1322 = vmatprep.subr.mxu0 0.0
    %1323 = vmatpush1.msra.mxu0 0.0
    %1324 = vmatprep.subr.mxu0 0.0
    %1325 = vmatpush1.msra.mxu0 0.0
    %1326 = vmatprep.subr.mxu0 0.0
    %1327 = vmatpush1.msra.mxu0 0.0
    %1328 = vmatprep.subr.mxu0 0.0
    %1329 = vmatpush1.msra.mxu0 0.0
    %1330 = vmatprep.subr.mxu0 0.0
    %1331 = vmatpush1.msra.mxu0 0.0
    %1332 = vmatprep.subr.mxu0 0.0
    %1333 = vmatpush1.msra.mxu0 0.0
    %1334 = vmatprep.subr.mxu0 0.0
    %1335 = vmatpush1.msra.mxu0 0.0
    %1336 = vmatprep.subr.mxu0 0.0
    %1337 = vmatpush1.msra.mxu0 0.0
    %1338 = vmatprep.subr.mxu0 0.0
    %1339 = vmatpush1.msra.mxu0 0.0
    %1340 = vmatprep.subr.mxu0 0.0
    %1341 = vmatpush1.msra.mxu0 0.0
    %1342 = vmatprep.subr.mxu0 0.0
    %1343 = vmatpush1.msra.mxu0 0.0
    %1344 = vmatprep.subr.mxu0 0.0
    %1345 = vmatpush1.msra.mxu0 0.0
    %1346 = vmatprep.subr.mxu0 0.0
    %1347 = vmatpush1.msra.mxu0 0.0
    %1348 = vmatprep.subr.mxu0 0.0
    %1349 = vmatpush1.msra.mxu0 0.0
    %1350 = vmatprep.subr.mxu0 0.0
    %1351 = vmatpush1.msra.mxu0 0.0
    %1352 = vmatprep.subr.mxu0 0.0
    %1353 = vmatpush1.msra.mxu0 0.0
    %1354 = vmatprep.subr.mxu0 0.0
    %1355 = vmatpush1.msra.mxu0 0.0
    %1356 = vmatprep.subr.mxu0 0.0
    %1357 = vmatpush1.msra.mxu0 0.0
    %1358 = vmatprep.subr.mxu0 0.0
    %1359 = vmatpush1.msra.mxu0 0.0
    %1360 = vmatprep.subr.mxu0 0.0
    %1361 = vmatpush1.msra.mxu0 0.0
    %1362 = vmatprep.subr.mxu0 0.0
    %1363 = vmatpush1.msra.mxu0 0.0
    %1364 = vmatprep.subr.mxu0 0.0
    %1365 = vmatpush1.msra.mxu0 0.0
    %1366 = vmatprep.subr.mxu0 0.0
    %1367 = vmatpush1.msra.mxu0 0.0
    %1368 = vmatprep.mubr.f32.mxu0 0.0
    %1369 = vmatmul.mubr.f32.gmra.mrb[0].mxu0 %v1128
    %v1370 = vpop.f32.mrb[0].mxu0
    %v1371 = vadd.f32 %v1302, %v1370
    %v1372 = vpop.f32.mrb[0].mxu0
    %1373 = vmatprep.mubr.f32.mxu0 0.0
    %1374 = vmatmul.mubr.f32.gmra.mrb[0].mxu0 %v1131
    %v1375 = vpop.f32.mrb[0].mxu0
    %v1376 = vadd.f32 %v1302, %v1375
    %v1377 = vpop.f32.mrb[0].mxu0
    %1378 = vdwg.mxu0
    %v1379 = vmax.f32 %v1371, 0.0
    %v1380 = vmax.f32 %v1376, 0.0
    %s1381 = scalar_lea.vmem %s11, 64
    %v1382 = vld [vmem:[%s1381] sm:$0xff]
    %v1383 = vld [vmem:[%s1381 + $0x8] sm:$0xff]
    %v1384 = vld [vmem:[%s1381 + $0x10] sm:$0xff]
    %v1385 = vld [vmem:[%s1381 + $0x18] sm:$0xff]
    %v1387 = vsel %vm434, %v1379, 0
    %v1390 = vsel %vm434, %v1380, 0
    %1392 = vmatprep.subr.mxu0 0.0
    %1393 = vmatpush1.msra.mxu0 %v1382
    %1394 = vmatprep.subr.mxu0 0.0
    %1395 = vmatpush1.msra.mxu0 %v1383
    %1396 = vmatprep.subr.mxu0 0.0
    %1397 = vmatpush1.msra.mxu0 %v1384
    %1398 = vmatprep.subr.mxu0 0.0
    %1399 = vmatpush1.msra.mxu0 %v1385
    %1400 = vmatprep.subr.mxu0 0.0
    %1401 = vmatpush1.msra.mxu0 0.0
    %1402 = vmatprep.subr.mxu0 0.0
    %1403 = vmatpush1.msra.mxu0 0.0
    %1404 = vmatprep.subr.mxu0 0.0
    %1405 = vmatpush1.msra.mxu0 0.0
    %1406 = vmatprep.subr.mxu0 0.0
    %1407 = vmatpush1.msra.mxu0 0.0
    %1408 = vmatprep.subr.mxu0 0.0
    %1409 = vmatpush1.msra.mxu0 0.0
    %1410 = vmatprep.subr.mxu0 0.0
    %1411 = vmatpush1.msra.mxu0 0.0
    %1412 = vmatprep.subr.mxu0 0.0
    %1413 = vmatpush1.msra.mxu0 0.0
    %1414 = vmatprep.subr.mxu0 0.0
    %1415 = vmatpush1.msra.mxu0 0.0
    %1416 = vmatprep.subr.mxu0 0.0
    %1417 = vmatpush1.msra.mxu0 0.0
    %1418 = vmatprep.subr.mxu0 0.0
    %1419 = vmatpush1.msra.mxu0 0.0
    %1420 = vmatprep.subr.mxu0 0.0
    %1421 = vmatpush1.msra.mxu0 0.0
    %1422 = vmatprep.subr.mxu0 0.0
    %1423 = vmatpush1.msra.mxu0 0.0
    %1424 = vmatprep.subr.mxu0 0.0
    %1425 = vmatpush1.msra.mxu0 0.0
    %1426 = vmatprep.subr.mxu0 0.0
    %1427 = vmatpush1.msra.mxu0 0.0
    %1428 = vmatprep.subr.mxu0 0.0
    %1429 = vmatpush1.msra.mxu0 0.0
    %1430 = vmatprep.subr.mxu0 0.0
    %1431 = vmatpush1.msra.mxu0 0.0
    %1432 = vmatprep.subr.mxu0 0.0
    %1433 = vmatpush1.msra.mxu0 0.0
    %1434 = vmatprep.subr.mxu0 0.0
    %1435 = vmatpush1.msra.mxu0 0.0
    %1436 = vmatprep.subr.mxu0 0.0
    %1437 = vmatpush1.msra.mxu0 0.0
    %1438 = vmatprep.subr.mxu0 0.0
    %1439 = vmatpush1.msra.mxu0 0.0
    %1440 = vmatprep.subr.mxu0 0.0
    %1441 = vmatpush1.msra.mxu0 0.0
    %1442 = vmatprep.subr.mxu0 0.0
    %1443 = vmatpush1.msra.mxu0 0.0
    %1444 = vmatprep.subr.mxu0 0.0
    %1445 = vmatpush1.msra.mxu0 0.0
    %1446 = vmatprep.subr.mxu0 0.0
    %1447 = vmatpush1.msra.mxu0 0.0
    %1448 = vmatprep.subr.mxu0 0.0
    %1449 = vmatpush1.msra.mxu0 0.0
    %1450 = vmatprep.subr.mxu0 0.0
    %1451 = vmatpush1.msra.mxu0 0.0
    %1452 = vmatprep.subr.mxu0 0.0
    %1453 = vmatpush1.msra.mxu0 0.0
    %1454 = vmatprep.subr.mxu0 0.0
    %1455 = vmatpush1.msra.mxu0 0.0
    %1456 = vmatprep.mubr.f32.mxu0 0.0
    %1457 = vmatmul.mubr.f32.gmra.mrb[0].mxu0 %v1387
    %v1458 = vpop.f32.mrb[0].mxu0
    %v1459 = vadd.f32 0.0, %v1458
    %v1460 = vpop.f32.mrb[0].mxu0
    %1461 = vmatprep.mubr.f32.mxu0 0.0
    %1462 = vmatmul.mubr.f32.gmra.mrb[0].mxu0 %v1390
    %v1463 = vpop.f32.mrb[0].mxu0
    %v1464 = vadd.f32 0.0, %v1463
    %v1465 = vpop.f32.mrb[0].mxu0
    %1466 = vdwg.mxu0
    %s1467 = scalar_lea.vmem [#allocation19], 2
    %v1468 = vld [vmem:[%s1467] sm:$0x1]
    %v1470 = vlaneseq
    %v1471 = vshrl.u32 %v1470, 7
    %v1472 = vsub.s32 0, %v1471
    %v1473 = vrot.slane %v1468, %v1472
    %1475 = vmatprep.subr.mxu0 0.0
    %1476 = vmatpush1.msra.mxu0 %v1459
    %1477 = vmatprep.subr.mxu0 0.0
    %1478 = vmatpush1.msra.mxu0 %v1464
    %1479 = vmatprep.subr.mxu0 0.0
    %1480 = vmatpush1.msra.mxu0 0.0
    %1481 = vmatprep.subr.mxu0 0.0
    %1482 = vmatpush1.msra.mxu0 0.0
    %1483 = vmatprep.subr.mxu0 0.0
    %1484 = vmatpush1.msra.mxu0 0.0
    %1485 = vmatprep.subr.mxu0 0.0
    %1486 = vmatpush1.msra.mxu0 0.0
    %1487 = vmatprep.subr.mxu0 0.0
    %1488 = vmatpush1.msra.mxu0 0.0
    %1489 = vmatprep.subr.mxu0 0.0
    %1490 = vmatpush1.msra.mxu0 0.0
    %1491 = vmatprep.subr.mxu0 0.0
    %1492 = vmatpush1.msra.mxu0 0.0
    %1493 = vmatprep.subr.mxu0 0.0
    %1494 = vmatpush1.msra.mxu0 0.0
    %1495 = vmatprep.subr.mxu0 0.0
    %1496 = vmatpush1.msra.mxu0 0.0
    %1497 = vmatprep.subr.mxu0 0.0
    %1498 = vmatpush1.msra.mxu0 0.0
    %1499 = vmatprep.subr.mxu0 0.0
    %1500 = vmatpush1.msra.mxu0 0.0
    %1501 = vmatprep.subr.mxu0 0.0
    %1502 = vmatpush1.msra.mxu0 0.0
    %1503 = vmatprep.subr.mxu0 0.0
    %1504 = vmatpush1.msra.mxu0 0.0
    %1505 = vmatprep.subr.mxu0 0.0
    %1506 = vmatpush1.msra.mxu0 0.0
    %1507 = vmatprep.subr.mxu0 0.0
    %1508 = vmatpush1.msra.mxu0 0.0
    %1509 = vmatprep.subr.mxu0 0.0
    %1510 = vmatpush1.msra.mxu0 0.0
    %1511 = vmatprep.subr.mxu0 0.0
    %1512 = vmatpush1.msra.mxu0 0.0
    %1513 = vmatprep.subr.mxu0 0.0
    %1514 = vmatpush1.msra.mxu0 0.0
    %1515 = vmatprep.subr.mxu0 0.0
    %1516 = vmatpush1.msra.mxu0 0.0
    %1517 = vmatprep.subr.mxu0 0.0
    %1518 = vmatpush1.msra.mxu0 0.0
    %1519 = vmatprep.subr.mxu0 0.0
    %1520 = vmatpush1.msra.mxu0 0.0
    %1521 = vmatprep.subr.mxu0 0.0
    %1522 = vmatpush1.msra.mxu0 0.0
    %1523 = vmatprep.subr.mxu0 0.0
    %1524 = vmatpush1.msra.mxu0 0.0
    %1525 = vmatprep.subr.mxu0 0.0
    %1526 = vmatpush1.msra.mxu0 0.0
    %1527 = vmatprep.subr.mxu0 0.0
    %1528 = vmatpush1.msra.mxu0 0.0
    %1529 = vmatprep.subr.mxu0 0.0
    %1530 = vmatpush1.msra.mxu0 0.0
    %1531 = vmatprep.subr.mxu0 0.0
    %1532 = vmatpush1.msra.mxu0 0.0
    %1533 = vmatprep.subr.mxu0 0.0
    %1534 = vmatpush1.msra.mxu0 0.0
    %1535 = vmatprep.subr.mxu0 0.0
    %1536 = vmatpush1.msra.mxu0 0.0
    %1537 = vmatprep.subr.mxu0 0.0
    %1538 = vmatpush1.msra.mxu0 0.0
    %1539 = vmatprep.mubr.f32.mxu0 0.0
    %1540 = vmatmul.mubr.f32.gmra.mrb[0].mxu0 %v1128
    %v1541 = vpop.f32.mrb[0].mxu0
    %v1542 = vadd.f32 %v1473, %v1541
    %v1543 = vpop.f32.mrb[0].mxu0
    %1544 = vmatprep.mubr.f32.mxu0 0.0
    %1545 = vmatmul.mubr.f32.gmra.mrb[0].mxu0 %v1131
    %v1546 = vpop.f32.mrb[0].mxu0
    %v1547 = vadd.f32 %v1473, %v1546
    %v1548 = vpop.f32.mrb[0].mxu0
    %1549 = vdwg.mxu0
    %v1550 = vmax.f32 %v1542, 0.0
    %v1551 = vmax.f32 %v1547, 0.0
    %v1552 = vld [vmem:[#allocation11] sm:$0xff]
    %v1553 = vld [vmem:[#allocation11 + $0x8] sm:$0xff]
    %v1554 = vld [vmem:[#allocation20] sm:$0xff]
    %v1555 = vld [vmem:[#allocation20 + $0x8] sm:$0xff]
    %v1556 = vld [vmem:[#allocation20 + $0x10] sm:$0xff]
    %v1557 = vld [vmem:[#allocation20 + $0x18] sm:$0xff]
    %v1558 = vld [vmem:[#allocation20 + $0x20] sm:$0xff]
    %v1559 = vld [vmem:[#allocation20 + $0x28] sm:$0xff]
    %v1560 = vld [vmem:[#allocation20 + $0x30] sm:$0xff]
    %v1561 = vld [vmem:[#allocation20 + $0x38] sm:$0xff]
    %v1562 = vld [vmem:[#allocation20 + $0x40] sm:$0xff]
    %v1563 = vld [vmem:[#allocation20 + $0x48] sm:$0xff]
    %v1564 = vld [vmem:[#allocation20 + $0x50] sm:$0xff]
    %v1565 = vld [vmem:[#allocation20 + $0x58] sm:$0xff]
    %v1566 = vld [vmem:[#allocation20 + $0x60] sm:$0xff]
    %v1567 = vld [vmem:[#allocation20 + $0x68] sm:$0xff]
    %v1568 = vld [vmem:[#allocation20 + $0x70] sm:$0xff]
    %v1569 = vld [vmem:[#allocation20 + $0x78] sm:$0xff]
    %v1570 = vld [vmem:[#allocation22] sm:$0xff]
    %v1571 = vld [vmem:[#allocation22 + $0x8] sm:$0xff]
    %v1572 = vld [vmem:[#allocation22 + $0x10] sm:$0xff]
    %v1573 = vld [vmem:[#allocation22 + $0x18] sm:$0xff]
    %v1574 = vld [vmem:[#allocation22 + $0x20] sm:$0xff]
    %v1575 = vld [vmem:[#allocation22 + $0x28] sm:$0xff]
    %v1576 = vld [vmem:[#allocation22 + $0x30] sm:$0xff]
    %v1577 = vld [vmem:[#allocation22 + $0x38] sm:$0xff]
    %v1579 = vsel %vm434, %v410, 0
    %v1582 = vsel %vm434, %v411, 0
    %v1585 = vsel %vm434, %v1031, 0
    %v1588 = vsel %vm434, %v1032, 0
    %v1591 = vsel %vm434, %v1552, 0
    %v1594 = vsel %vm434, %v1553, 0
    %v1597 = vsel %vm434, %v1550, 0
    %v1600 = vsel %vm434, %v1551, 0
    %1602 = vmatprep.subr.mxu0 %v1571
    %1603 = vmatpush1.msra.mxu0 %v1570
    %1604 = vmatprep.subr.mxu0 %v1573
    %1605 = vmatpush1.msra.mxu0 %v1572
    %1606 = vmatprep.subr.mxu0 %v1575
    %1607 = vmatpush1.msra.mxu0 %v1574
    %1608 = vmatprep.subr.mxu0 %v1577
    %1609 = vmatpush1.msra.mxu0 %v1576
    %1610 = vmatprep.subr.mxu0 0.0
    %1611 = vmatpush1.msra.mxu0 0.0
    %1612 = vmatprep.subr.mxu0 0.0
    %1613 = vmatpush1.msra.mxu0 0.0
    %1614 = vmatprep.subr.mxu0 0.0
    %1615 = vmatpush1.msra.mxu0 0.0
    %1616 = vmatprep.subr.mxu0 0.0
    %1617 = vmatpush1.msra.mxu0 0.0
    %1618 = vmatprep.subr.mxu0 0.0
    %1619 = vmatpush1.msra.mxu0 0.0
    %1620 = vmatprep.subr.mxu0 0.0
    %1621 = vmatpush1.msra.mxu0 0.0
    %1622 = vmatprep.subr.mxu0 0.0
    %1623 = vmatpush1.msra.mxu0 0.0
    %1624 = vmatprep.subr.mxu0 0.0
    %1625 = vmatpush1.msra.mxu0 0.0
    %1626 = vmatprep.subr.mxu0 0.0
    %1627 = vmatpush1.msra.mxu0 0.0
    %1628 = vmatprep.subr.mxu0 0.0
    %1629 = vmatpush1.msra.mxu0 0.0
    %1630 = vmatprep.subr.mxu0 0.0
    %1631 = vmatpush1.msra.mxu0 0.0
    %1632 = vmatprep.subr.mxu0 0.0
    %1633 = vmatpush1.msra.mxu0 0.0
    %1634 = vmatprep.subr.mxu0 0.0
    %1635 = vmatpush1.msra.mxu0 0.0
    %1636 = vmatprep.subr.mxu0 0.0
    %1637 = vmatpush1.msra.mxu0 0.0
    %1638 = vmatprep.subr.mxu0 0.0
    %1639 = vmatpush1.msra.mxu0 0.0
    %1640 = vmatprep.subr.mxu0 0.0
    %1641 = vmatpush1.msra.mxu0 0.0
    %1642 = vmatprep.subr.mxu0 0.0
    %1643 = vmatpush1.msra.mxu0 0.0
    %1644 = vmatprep.subr.mxu0 0.0
    %1645 = vmatpush1.msra.mxu0 0.0
    %1646 = vmatprep.subr.mxu0 0.0
    %1647 = vmatpush1.msra.mxu0 0.0
    %1648 = vmatprep.subr.mxu0 0.0
    %1649 = vmatpush1.msra.mxu0 0.0
    %1650 = vmatprep.subr.mxu0 0.0
    %1651 = vmatpush1.msra.mxu0 0.0
    %1652 = vmatprep.subr.mxu0 0.0
    %1653 = vmatpush1.msra.mxu0 0.0
    %1654 = vmatprep.subr.mxu0 0.0
    %1655 = vmatpush1.msra.mxu0 0.0
    %1656 = vmatprep.subr.mxu0 0.0
    %1657 = vmatpush1.msra.mxu0 0.0
    %1658 = vmatprep.subr.mxu0 0.0
    %1659 = vmatpush1.msra.mxu0 0.0
    %1660 = vmatprep.subr.mxu0 0.0
    %1661 = vmatpush1.msra.mxu0 0.0
    %1662 = vmatprep.subr.mxu0 0.0
    %1663 = vmatpush1.msra.mxu0 0.0
    %1664 = vmatprep.subr.mxu0 0.0
    %1665 = vmatpush1.msra.mxu0 0.0
    %1666 = vmatprep.mubr.f32.mxu0 0.0
    %1667 = vmatmul.mubr.f32.gmra.mrb[0].mxu0 %v1579
    %v1668 = vpop.f32.mrb[0].mxu0
    %v1669 = vadd.f32 0.0, %v1668
    %v1670 = vpop.f32.mrb[0].mxu0
    %v1671 = vadd.f32 0.0, %v1670
    %1672 = vmatprep.mubr.f32.mxu0 0.0
    %1673 = vmatmul.mubr.f32.gmra.mrb[0].mxu0 %v1582
    %v1674 = vpop.f32.mrb[0].mxu0
    %v1675 = vadd.f32 0.0, %v1674
    %v1676 = vpop.f32.mrb[0].mxu0
    %v1677 = vadd.f32 0.0, %v1676
    %1678 = vmatprep.mubr.f32.mxu0 0.0
    %1679 = vmatmul.mubr.f32.gmra.mrb[0].mxu0 %v1585
    %v1680 = vpop.f32.mrb[0].mxu0
    %v1681 = vadd.f32 0.0, %v1680
    %v1682 = vpop.f32.mrb[0].mxu0
    %v1683 = vadd.f32 0.0, %v1682
    %1684 = vmatprep.mubr.f32.mxu0 0.0
    %1685 = vmatmul.mubr.f32.gmra.mrb[0].mxu0 %v1588
    %v1686 = vpop.f32.mrb[0].mxu0
    %v1687 = vadd.f32 0.0, %v1686
    %v1688 = vpop.f32.mrb[0].mxu0
    %v1689 = vadd.f32 0.0, %v1688
    %1690 = vmatprep.mubr.f32.mxu0 0.0
    %1691 = vmatmul.mubr.f32.gmra.mrb[0].mxu0 %v1591
    %v1692 = vpop.f32.mrb[0].mxu0
    %v1693 = vadd.f32 0.0, %v1692
    %v1694 = vpop.f32.mrb[0].mxu0
    %v1695 = vadd.f32 0.0, %v1694
    %1696 = vmatprep.mubr.f32.mxu0 0.0
    %1697 = vmatmul.mubr.f32.gmra.mrb[0].mxu0 %v1594
    %v1698 = vpop.f32.mrb[0].mxu0
    %v1699 = vadd.f32 0.0, %v1698
    %v1700 = vpop.f32.mrb[0].mxu0
    %v1701 = vadd.f32 0.0, %v1700
    %1702 = vmatprep.mubr.f32.mxu0 0.0
    %1703 = vmatmul.mubr.f32.gmra.mrb[0].mxu0 %v1597
    %v1704 = vpop.f32.mrb[0].mxu0
    %v1705 = vadd.f32 0.0, %v1704
    %v1706 = vpop.f32.mrb[0].mxu0
    %v1707 = vadd.f32 0.0, %v1706
    %1708 = vmatprep.mubr.f32.mxu0 0.0
    %1709 = vmatmul.mubr.f32.gmra.mrb[0].mxu0 %v1600
    %v1710 = vpop.f32.mrb[0].mxu0
    %v1711 = vadd.f32 0.0, %v1710
    %v1712 = vpop.f32.mrb[0].mxu0
    %v1713 = vadd.f32 0.0, %v1712
    %1714 = vdwg.mxu0
    %1723 = vrot.lane.b32.xlu0 %v1669, 96
    %v1724 = vpop.permute.xlu0 %1723
    %1725 = vrot.lane.b32.xlu0 %v1675, 96
    %v1726 = vpop.permute.xlu0 %1725
    %1727 = vrot.lane.b32.xlu0 %v1681, 96
    %v1728 = vpop.permute.xlu0 %1727
    %1729 = vrot.lane.b32.xlu0 %v1687, 96
    %v1730 = vpop.permute.xlu0 %1729
    %1731 = vrot.lane.b32.xlu0 %v1693, 96
    %v1732 = vpop.permute.xlu0 %1731
    %1733 = vrot.lane.b32.xlu0 %v1699, 96
    %v1734 = vpop.permute.xlu0 %1733
    %1735 = vrot.lane.b32.xlu0 %v1705, 96
    %v1736 = vpop.permute.xlu0 %1735
    %1737 = vrot.lane.b32.xlu0 %v1711, 96
    %v1738 = vpop.permute.xlu0 %1737
    %1739 = vrot.lane.b32.xlu0 %v1669, 64
    %v1740 = vpop.permute.xlu0 %1739
    %1741 = vrot.lane.b32.xlu0 %v1675, 64
    %v1742 = vpop.permute.xlu0 %1741
    %1743 = vrot.lane.b32.xlu0 %v1681, 64
    %v1744 = vpop.permute.xlu0 %1743
    %1745 = vrot.lane.b32.xlu0 %v1687, 64
    %v1746 = vpop.permute.xlu0 %1745
    %1747 = vrot.lane.b32.xlu0 %v1693, 64
    %v1748 = vpop.permute.xlu0 %1747
    %1749 = vrot.lane.b32.xlu0 %v1699, 64
    %v1750 = vpop.permute.xlu0 %1749
    %1751 = vrot.lane.b32.xlu0 %v1705, 64
    %v1752 = vpop.permute.xlu0 %1751
    %1753 = vrot.lane.b32.xlu0 %v1711, 64
    %v1754 = vpop.permute.xlu0 %1753
    %1763 = vrot.lane.b32.xlu0 %v1671, 32
    %v1764 = vpop.permute.xlu0 %1763
    %1765 = vrot.lane.b32.xlu0 %v1677, 32
    %v1766 = vpop.permute.xlu0 %1765
    %1767 = vrot.lane.b32.xlu0 %v1683, 32
    %v1768 = vpop.permute.xlu0 %1767
    %1769 = vrot.lane.b32.xlu0 %v1689, 32
    %v1770 = vpop.permute.xlu0 %1769
    %1771 = vrot.lane.b32.xlu0 %v1695, 32
    %v1772 = vpop.permute.xlu0 %1771
    %1773 = vrot.lane.b32.xlu0 %v1701, 32
    %v1774 = vpop.permute.xlu0 %1773
    %1775 = vrot.lane.b32.xlu0 %v1707, 32
    %v1776 = vpop.permute.xlu0 %1775
    %1777 = vrot.lane.b32.xlu0 %v1713, 32
    %v1778 = vpop.permute.xlu0 %1777
    %v1779 = vld [vmem:[#allocation23] sm:$0x1]
    %v1781 = vlaneseq
    %v1782 = vshrl.u32 %v1781, 7
    %v1783 = vsub.s32 0, %v1782
    %v1784 = vrot.slane %v1779, %v1783
    %v1786 = vadd.f32 %v1669, %v1784
    %v1787 = vadd.f32 %v1675, %v1784
    %v1788 = vadd.f32 %v1681, %v1784
    %v1789 = vadd.f32 %v1687, %v1784
    %v1790 = vadd.f32 %v1693, %v1784
    %v1791 = vadd.f32 %v1699, %v1784
    %v1792 = vadd.f32 %v1705, %v1784
    %v1793 = vadd.f32 %v1711, %v1784
    %1794 = vrot.lane.b32.xlu0 %v1724, 96
    %v1795 = vpop.permute.xlu0 %1794
    %1796 = vrot.lane.b32.xlu0 %v1726, 96
    %v1797 = vpop.permute.xlu0 %1796
    %1798 = vrot.lane.b32.xlu0 %v1728, 96
    %v1799 = vpop.permute.xlu0 %1798
    %1800 = vrot.lane.b32.xlu0 %v1730, 96
    %v1801 = vpop.permute.xlu0 %1800
    %1802 = vrot.lane.b32.xlu0 %v1732, 96
    %v1803 = vpop.permute.xlu0 %1802
    %1804 = vrot.lane.b32.xlu0 %v1734, 96
    %v1805 = vpop.permute.xlu0 %1804
    %1806 = vrot.lane.b32.xlu0 %v1736, 96
    %v1807 = vpop.permute.xlu0 %1806
    %1808 = vrot.lane.b32.xlu0 %v1738, 96
    %v1809 = vpop.permute.xlu0 %1808
    %1810 = vrot.lane.b32.xlu0 %v1740, 96
    %v1811 = vpop.permute.xlu0 %1810
    %1812 = vrot.lane.b32.xlu0 %v1742, 96
    %v1813 = vpop.permute.xlu0 %1812
    %1814 = vrot.lane.b32.xlu0 %v1744, 96
    %v1815 = vpop.permute.xlu0 %1814
    %1816 = vrot.lane.b32.xlu0 %v1746, 96
    %v1817 = vpop.permute.xlu0 %1816
    %1818 = vrot.lane.b32.xlu0 %v1748, 96
    %v1819 = vpop.permute.xlu0 %1818
    %1820 = vrot.lane.b32.xlu0 %v1750, 96
    %v1821 = vpop.permute.xlu0 %1820
    %1822 = vrot.lane.b32.xlu0 %v1752, 96
    %v1823 = vpop.permute.xlu0 %1822
    %1824 = vrot.lane.b32.xlu0 %v1754, 96
    %v1825 = vpop.permute.xlu0 %1824
    %1826 = vrot.lane.b32.xlu0 %v1764, 96
    %v1827 = vpop.permute.xlu0 %1826
    %1828 = vrot.lane.b32.xlu0 %v1766, 96
    %v1829 = vpop.permute.xlu0 %1828
    %1830 = vrot.lane.b32.xlu0 %v1768, 96
    %v1831 = vpop.permute.xlu0 %1830
    %1832 = vrot.lane.b32.xlu0 %v1770, 96
    %v1833 = vpop.permute.xlu0 %1832
    %1834 = vrot.lane.b32.xlu0 %v1772, 96
    %v1835 = vpop.permute.xlu0 %1834
    %1836 = vrot.lane.b32.xlu0 %v1774, 96
    %v1837 = vpop.permute.xlu0 %1836
    %1838 = vrot.lane.b32.xlu0 %v1776, 96
    %v1839 = vpop.permute.xlu0 %1838
    %1840 = vrot.lane.b32.xlu0 %v1778, 96
    %v1841 = vpop.permute.xlu0 %1840
    %1874 = vmatprep.subr.mxu0 0.0
    %1875 = vmatpush1.msra.mxu0 %v1724
    %1876 = vmatprep.subr.mxu0 0.0
    %1877 = vmatpush1.msra.mxu0 %v1726
    %1878 = vmatprep.subr.mxu0 0.0
    %1879 = vmatpush1.msra.mxu0 %v1728
    %1880 = vmatprep.subr.mxu0 0.0
    %1881 = vmatpush1.msra.mxu0 %v1730
    %1882 = vmatprep.subr.mxu0 0.0
    %1883 = vmatpush1.msra.mxu0 %v1732
    %1884 = vmatprep.subr.mxu0 0.0
    %1885 = vmatpush1.msra.mxu0 %v1734
    %1886 = vmatprep.subr.mxu0 0.0
    %1887 = vmatpush1.msra.mxu0 %v1736
    %1888 = vmatprep.subr.mxu0 0.0
    %1889 = vmatpush1.msra.mxu0 %v1738
    %1890 = vmatprep.subr.mxu0 0.0
    %1891 = vmatpush1.msra.mxu0 %v1795
    %1892 = vmatprep.subr.mxu0 0.0
    %1893 = vmatpush1.msra.mxu0 %v1797
    %1894 = vmatprep.subr.mxu0 0.0
    %1895 = vmatpush1.msra.mxu0 %v1799
    %1896 = vmatprep.subr.mxu0 0.0
    %1897 = vmatpush1.msra.mxu0 %v1801
    %1898 = vmatprep.subr.mxu0 0.0
    %1899 = vmatpush1.msra.mxu0 %v1803
    %1900 = vmatprep.subr.mxu0 0.0
    %1901 = vmatpush1.msra.mxu0 %v1805
    %1902 = vmatprep.subr.mxu0 0.0
    %1903 = vmatpush1.msra.mxu0 %v1807
    %1904 = vmatprep.subr.mxu0 0.0
    %1905 = vmatpush1.msra.mxu0 %v1809
    %1906 = vmatprep.subr.mxu0 0.0
    %1907 = vmatpush1.msra.mxu0 %v1811
    %1908 = vmatprep.subr.mxu0 0.0
    %1909 = vmatpush1.msra.mxu0 %v1813
    %1910 = vmatprep.subr.mxu0 0.0
    %1911 = vmatpush1.msra.mxu0 %v1815
    %1912 = vmatprep.subr.mxu0 0.0
    %1913 = vmatpush1.msra.mxu0 %v1817
    %1914 = vmatprep.subr.mxu0 0.0
    %1915 = vmatpush1.msra.mxu0 %v1819
    %1916 = vmatprep.subr.mxu0 0.0
    %1917 = vmatpush1.msra.mxu0 %v1821
    %1918 = vmatprep.subr.mxu0 0.0
    %1919 = vmatpush1.msra.mxu0 %v1823
    %1920 = vmatprep.subr.mxu0 0.0
    %1921 = vmatpush1.msra.mxu0 %v1825
    %1922 = vmatprep.subr.mxu0 0.0
    %1923 = vmatpush1.msra.mxu0 %v1827
    %1924 = vmatprep.subr.mxu0 0.0
    %1925 = vmatpush1.msra.mxu0 %v1829
    %1926 = vmatprep.subr.mxu0 0.0
    %1927 = vmatpush1.msra.mxu0 %v1831
    %1928 = vmatprep.subr.mxu0 0.0
    %1929 = vmatpush1.msra.mxu0 %v1833
    %1930 = vmatprep.subr.mxu0 0.0
    %1931 = vmatpush1.msra.mxu0 %v1835
    %1932 = vmatprep.subr.mxu0 0.0
    %1933 = vmatpush1.msra.mxu0 %v1837
    %1934 = vmatprep.subr.mxu0 0.0
    %1935 = vmatpush1.msra.mxu0 %v1839
    %1936 = vmatprep.subr.mxu0 0.0
    %1937 = vmatpush1.msra.mxu0 %v1841
    %1938 = vmatprep.mubr.f32.mxu0 %v1555
    %1939 = vmatmul.mubr.f32.gmra.mrb[0].mxu0 %v1554
    %v1940 = vpop.f32.mrb[0].mxu0
    %v1941 = vadd.f32 0.0, %v1940
    %v1942 = vpop.f32.mrb[0].mxu0
    %1943 = vmatprep.mubr.f32.mxu0 %v1557
    %1944 = vmatmul.mubr.f32.gmra.mrb[0].mxu0 %v1556
    %v1945 = vpop.f32.mrb[0].mxu0
    %v1946 = vadd.f32 0.0, %v1945
    %v1947 = vpop.f32.mrb[0].mxu0
    %1948 = vmatprep.mubr.f32.mxu0 %v1559
    %1949 = vmatmul.mubr.f32.gmra.mrb[0].mxu0 %v1558
    %v1950 = vpop.f32.mrb[0].mxu0
    %v1951 = vadd.f32 0.0, %v1950
    %v1952 = vpop.f32.mrb[0].mxu0
    %1953 = vmatprep.mubr.f32.mxu0 %v1561
    %1954 = vmatmul.mubr.f32.gmra.mrb[0].mxu0 %v1560
    %v1955 = vpop.f32.mrb[0].mxu0
    %v1956 = vadd.f32 0.0, %v1955
    %v1957 = vpop.f32.mrb[0].mxu0
    %1958 = vmatprep.mubr.f32.mxu0 %v1563
    %1959 = vmatmul.mubr.f32.gmra.mrb[0].mxu0 %v1562
    %v1960 = vpop.f32.mrb[0].mxu0
    %v1961 = vadd.f32 0.0, %v1960
    %v1962 = vpop.f32.mrb[0].mxu0
    %1963 = vmatprep.mubr.f32.mxu0 %v1565
    %1964 = vmatmul.mubr.f32.gmra.mrb[0].mxu0 %v1564
    %v1965 = vpop.f32.mrb[0].mxu0
    %v1966 = vadd.f32 0.0, %v1965
    %v1967 = vpop.f32.mrb[0].mxu0
    %1968 = vmatprep.mubr.f32.mxu0 %v1567
    %1969 = vmatmul.mubr.f32.gmra.mrb[0].mxu0 %v1566
    %v1970 = vpop.f32.mrb[0].mxu0
    %v1971 = vadd.f32 0.0, %v1970
    %v1972 = vpop.f32.mrb[0].mxu0
    %1973 = vmatprep.mubr.f32.mxu0 %v1569
    %1974 = vmatmul.mubr.f32.gmra.mrb[0].mxu0 %v1568
    %v1975 = vpop.f32.mrb[0].mxu0
    %v1976 = vadd.f32 0.0, %v1975
    %v1977 = vpop.f32.mrb[0].mxu0
    %1978 = vdwg.mxu0
    %v1979 = vadd.f32 %v1786, %v1941
    %v1980 = vadd.f32 %v1787, %v1946
    %v1981 = vadd.f32 %v1788, %v1951
    %v1982 = vadd.f32 %v1789, %v1956
    %v1983 = vadd.f32 %v1790, %v1961
    %v1984 = vadd.f32 %v1791, %v1966
    %v1985 = vadd.f32 %v1792, %v1971
    %v1986 = vadd.f32 %v1793, %v1976
    %v1987 = vmax.f32 %v1979, 0.0
    %v1988 = vmax.f32 %v1980, 0.0
    %v1989 = vmax.f32 %v1981, 0.0
    %v1990 = vmax.f32 %v1982, 0.0
    %v1991 = vmax.f32 %v1983, 0.0
    %v1992 = vmax.f32 %v1984, 0.0
    %v1993 = vmax.f32 %v1985, 0.0
    %v1994 = vmax.f32 %v1986, 0.0
    %s1995 = scalar_lea.vmem [#allocation22], 64
    %v1996 = vld [vmem:[%s1995] sm:$0xff]
    %v1997 = vld [vmem:[%s1995 + $0x8] sm:$0xff]
    %v1998 = vld [vmem:[%s1995 + $0x10] sm:$0xff]
    %v1999 = vld [vmem:[%s1995 + $0x18] sm:$0xff]
    %v2000 = vld [vmem:[%s1995 + $0x20] sm:$0xff]
    %v2001 = vld [vmem:[%s1995 + $0x28] sm:$0xff]
    %v2002 = vld [vmem:[%s1995 + $0x30] sm:$0xff]
    %v2003 = vld [vmem:[%s1995 + $0x38] sm:$0xff]
    %v2005 = vsel %vm434, %v1987, 0
    %v2008 = vsel %vm434, %v1988, 0
    %v2011 = vsel %vm434, %v1989, 0
    %v2014 = vsel %vm434, %v1990, 0
    %v2017 = vsel %vm434, %v1991, 0
    %v2020 = vsel %vm434, %v1992, 0
    %v2023 = vsel %vm434, %v1993, 0
    %v2026 = vsel %vm434, %v1994, 0
    %2028 = vmatprep.subr.mxu0 %v1997
    %2029 = vmatpush1.msra.mxu0 %v1996
    %2030 = vmatprep.subr.mxu0 %v1999
    %2031 = vmatpush1.msra.mxu0 %v1998
    %2032 = vmatprep.subr.mxu0 %v2001
    %2033 = vmatpush1.msra.mxu0 %v2000
    %2034 = vmatprep.subr.mxu0 %v2003
    %2035 = vmatpush1.msra.mxu0 %v2002
    %2036 = vmatprep.subr.mxu0 0.0
    %2037 = vmatpush1.msra.mxu0 0.0
    %2038 = vmatprep.subr.mxu0 0.0
    %2039 = vmatpush1.msra.mxu0 0.0
    %2040 = vmatprep.subr.mxu0 0.0
    %2041 = vmatpush1.msra.mxu0 0.0
    %2042 = vmatprep.subr.mxu0 0.0
    %2043 = vmatpush1.msra.mxu0 0.0
    %2044 = vmatprep.subr.mxu0 0.0
    %2045 = vmatpush1.msra.mxu0 0.0
    %2046 = vmatprep.subr.mxu0 0.0
    %2047 = vmatpush1.msra.mxu0 0.0
    %2048 = vmatprep.subr.mxu0 0.0
    %2049 = vmatpush1.msra.mxu0 0.0
    %2050 = vmatprep.subr.mxu0 0.0
    %2051 = vmatpush1.msra.mxu0 0.0
    %2052 = vmatprep.subr.mxu0 0.0
    %2053 = vmatpush1.msra.mxu0 0.0
    %2054 = vmatprep.subr.mxu0 0.0
    %2055 = vmatpush1.msra.mxu0 0.0
    %2056 = vmatprep.subr.mxu0 0.0
    %2057 = vmatpush1.msra.mxu0 0.0
    %2058 = vmatprep.subr.mxu0 0.0
    %2059 = vmatpush1.msra.mxu0 0.0
    %2060 = vmatprep.subr.mxu0 0.0
    %2061 = vmatpush1.msra.mxu0 0.0
    %2062 = vmatprep.subr.mxu0 0.0
    %2063 = vmatpush1.msra.mxu0 0.0
    %2064 = vmatprep.subr.mxu0 0.0
    %2065 = vmatpush1.msra.mxu0 0.0
    %2066 = vmatprep.subr.mxu0 0.0
    %2067 = vmatpush1.msra.mxu0 0.0
    %2068 = vmatprep.subr.mxu0 0.0
    %2069 = vmatpush1.msra.mxu0 0.0
    %2070 = vmatprep.subr.mxu0 0.0
    %2071 = vmatpush1.msra.mxu0 0.0
    %2072 = vmatprep.subr.mxu0 0.0
    %2073 = vmatpush1.msra.mxu0 0.0
    %2074 = vmatprep.subr.mxu0 0.0
    %2075 = vmatpush1.msra.mxu0 0.0
    %2076 = vmatprep.subr.mxu0 0.0
    %2077 = vmatpush1.msra.mxu0 0.0
    %2078 = vmatprep.subr.mxu0 0.0
    %2079 = vmatpush1.msra.mxu0 0.0
    %2080 = vmatprep.subr.mxu0 0.0
    %2081 = vmatpush1.msra.mxu0 0.0
    %2082 = vmatprep.subr.mxu0 0.0
    %2083 = vmatpush1.msra.mxu0 0.0
    %2084 = vmatprep.subr.mxu0 0.0
    %2085 = vmatpush1.msra.mxu0 0.0
    %2086 = vmatprep.subr.mxu0 0.0
    %2087 = vmatpush1.msra.mxu0 0.0
    %2088 = vmatprep.subr.mxu0 0.0
    %2089 = vmatpush1.msra.mxu0 0.0
    %2090 = vmatprep.subr.mxu0 0.0
    %2091 = vmatpush1.msra.mxu0 0.0
    %2092 = vmatprep.mubr.f32.mxu0 0.0
    %2093 = vmatmul.mubr.f32.gmra.mrb[0].mxu0 %v2005
    %v2094 = vpop.f32.mrb[0].mxu0
    %v2095 = vadd.f32 0.0, %v2094
    %v2096 = vpop.f32.mrb[0].mxu0
    %v2097 = vadd.f32 0.0, %v2096
    %2098 = vmatprep.mubr.f32.mxu0 0.0
    %2099 = vmatmul.mubr.f32.gmra.mrb[0].mxu0 %v2008
    %v2100 = vpop.f32.mrb[0].mxu0
    %v2101 = vadd.f32 0.0, %v2100
    %v2102 = vpop.f32.mrb[0].mxu0
    %v2103 = vadd.f32 0.0, %v2102
    %2104 = vmatprep.mubr.f32.mxu0 0.0
    %2105 = vmatmul.mubr.f32.gmra.mrb[0].mxu0 %v2011
    %v2106 = vpop.f32.mrb[0].mxu0
    %v2107 = vadd.f32 0.0, %v2106
    %v2108 = vpop.f32.mrb[0].mxu0
    %v2109 = vadd.f32 0.0, %v2108
    %2110 = vmatprep.mubr.f32.mxu0 0.0
    %2111 = vmatmul.mubr.f32.gmra.mrb[0].mxu0 %v2014
    %v2112 = vpop.f32.mrb[0].mxu0
    %v2113 = vadd.f32 0.0, %v2112
    %v2114 = vpop.f32.mrb[0].mxu0
    %v2115 = vadd.f32 0.0, %v2114
    %2116 = vmatprep.mubr.f32.mxu0 0.0
    %2117 = vmatmul.mubr.f32.gmra.mrb[0].mxu0 %v2017
    %v2118 = vpop.f32.mrb[0].mxu0
    %v2119 = vadd.f32 0.0, %v2118
    %v2120 = vpop.f32.mrb[0].mxu0
    %v2121 = vadd.f32 0.0, %v2120
    %2122 = vmatprep.mubr.f32.mxu0 0.0
    %2123 = vmatmul.mubr.f32.gmra.mrb[0].mxu0 %v2020
    %v2124 = vpop.f32.mrb[0].mxu0
    %v2125 = vadd.f32 0.0, %v2124
    %v2126 = vpop.f32.mrb[0].mxu0
    %v2127 = vadd.f32 0.0, %v2126
    %2128 = vmatprep.mubr.f32.mxu0 0.0
    %2129 = vmatmul.mubr.f32.gmra.mrb[0].mxu0 %v2023
    %v2130 = vpop.f32.mrb[0].mxu0
    %v2131 = vadd.f32 0.0, %v2130
    %v2132 = vpop.f32.mrb[0].mxu0
    %v2133 = vadd.f32 0.0, %v2132
    %2134 = vmatprep.mubr.f32.mxu0 0.0
    %2135 = vmatmul.mubr.f32.gmra.mrb[0].mxu0 %v2026
    %v2136 = vpop.f32.mrb[0].mxu0
    %v2137 = vadd.f32 0.0, %v2136
    %v2138 = vpop.f32.mrb[0].mxu0
    %v2139 = vadd.f32 0.0, %v2138
    %2140 = vdwg.mxu0
    %2149 = vrot.lane.b32.xlu0 %v2095, 96
    %v2150 = vpop.permute.xlu0 %2149
    %2151 = vrot.lane.b32.xlu0 %v2101, 96
    %v2152 = vpop.permute.xlu0 %2151
    %2153 = vrot.lane.b32.xlu0 %v2107, 96
    %v2154 = vpop.permute.xlu0 %2153
    %2155 = vrot.lane.b32.xlu0 %v2113, 96
    %v2156 = vpop.permute.xlu0 %2155
    %2157 = vrot.lane.b32.xlu0 %v2119, 96
    %v2158 = vpop.permute.xlu0 %2157
    %2159 = vrot.lane.b32.xlu0 %v2125, 96
    %v2160 = vpop.permute.xlu0 %2159
    %2161 = vrot.lane.b32.xlu0 %v2131, 96
    %v2162 = vpop.permute.xlu0 %2161
    %2163 = vrot.lane.b32.xlu0 %v2137, 96
    %v2164 = vpop.permute.xlu0 %2163
    %2165 = vrot.lane.b32.xlu0 %v2095, 64
    %v2166 = vpop.permute.xlu0 %2165
    %2167 = vrot.lane.b32.xlu0 %v2101, 64
    %v2168 = vpop.permute.xlu0 %2167
    %2169 = vrot.lane.b32.xlu0 %v2107, 64
    %v2170 = vpop.permute.xlu0 %2169
    %2171 = vrot.lane.b32.xlu0 %v2113, 64
    %v2172 = vpop.permute.xlu0 %2171
    %2173 = vrot.lane.b32.xlu0 %v2119, 64
    %v2174 = vpop.permute.xlu0 %2173
    %2175 = vrot.lane.b32.xlu0 %v2125, 64
    %v2176 = vpop.permute.xlu0 %2175
    %2177 = vrot.lane.b32.xlu0 %v2131, 64
    %v2178 = vpop.permute.xlu0 %2177
    %2179 = vrot.lane.b32.xlu0 %v2137, 64
    %v2180 = vpop.permute.xlu0 %2179
    %2189 = vrot.lane.b32.xlu0 %v2097, 32
    %v2190 = vpop.permute.xlu0 %2189
    %2191 = vrot.lane.b32.xlu0 %v2103, 32
    %v2192 = vpop.permute.xlu0 %2191
    %2193 = vrot.lane.b32.xlu0 %v2109, 32
    %v2194 = vpop.permute.xlu0 %2193
    %2195 = vrot.lane.b32.xlu0 %v2115, 32
    %v2196 = vpop.permute.xlu0 %2195
    %2197 = vrot.lane.b32.xlu0 %v2121, 32
    %v2198 = vpop.permute.xlu0 %2197
    %2199 = vrot.lane.b32.xlu0 %v2127, 32
    %v2200 = vpop.permute.xlu0 %2199
    %2201 = vrot.lane.b32.xlu0 %v2133, 32
    %v2202 = vpop.permute.xlu0 %2201
    %2203 = vrot.lane.b32.xlu0 %v2139, 32
    %v2204 = vpop.permute.xlu0 %2203
    %s2205 = scalar_lea.vmem [#allocation23], 1
    %v2206 = vld [vmem:[%s2205] sm:$0x1]
    %v2208 = vlaneseq
    %v2209 = vshrl.u32 %v2208, 7
    %v2210 = vsub.s32 0, %v2209
    %v2211 = vrot.slane %v2206, %v2210
    %v2213 = vadd.f32 %v2095, %v2211
    %v2214 = vadd.f32 %v2101, %v2211
    %v2215 = vadd.f32 %v2107, %v2211
    %v2216 = vadd.f32 %v2113, %v2211
    %v2217 = vadd.f32 %v2119, %v2211
    %v2218 = vadd.f32 %v2125, %v2211
    %v2219 = vadd.f32 %v2131, %v2211
    %v2220 = vadd.f32 %v2137, %v2211
    %2221 = vrot.lane.b32.xlu0 %v2150, 96
    %v2222 = vpop.permute.xlu0 %2221
    %2223 = vrot.lane.b32.xlu0 %v2152, 96
    %v2224 = vpop.permute.xlu0 %2223
    %2225 = vrot.lane.b32.xlu0 %v2154, 96
    %v2226 = vpop.permute.xlu0 %2225
    %2227 = vrot.lane.b32.xlu0 %v2156, 96
    %v2228 = vpop.permute.xlu0 %2227
    %2229 = vrot.lane.b32.xlu0 %v2158, 96
    %v2230 = vpop.permute.xlu0 %2229
    %2231 = vrot.lane.b32.xlu0 %v2160, 96
    %v2232 = vpop.permute.xlu0 %2231
    %2233 = vrot.lane.b32.xlu0 %v2162, 96
    %v2234 = vpop.permute.xlu0 %2233
    %2235 = vrot.lane.b32.xlu0 %v2164, 96
    %v2236 = vpop.permute.xlu0 %2235
    %2237 = vrot.lane.b32.xlu0 %v2166, 96
    %v2238 = vpop.permute.xlu0 %2237
    %2239 = vrot.lane.b32.xlu0 %v2168, 96
    %v2240 = vpop.permute.xlu0 %2239
    %2241 = vrot.lane.b32.xlu0 %v2170, 96
    %v2242 = vpop.permute.xlu0 %2241
    %2243 = vrot.lane.b32.xlu0 %v2172, 96
    %v2244 = vpop.permute.xlu0 %2243
    %2245 = vrot.lane.b32.xlu0 %v2174, 96
    %v2246 = vpop.permute.xlu0 %2245
    %2247 = vrot.lane.b32.xlu0 %v2176, 96
    %v2248 = vpop.permute.xlu0 %2247
    %2249 = vrot.lane.b32.xlu0 %v2178, 96
    %v2250 = vpop.permute.xlu0 %2249
    %2251 = vrot.lane.b32.xlu0 %v2180, 96
    %v2252 = vpop.permute.xlu0 %2251
    %2253 = vrot.lane.b32.xlu0 %v2190, 96
    %v2254 = vpop.permute.xlu0 %2253
    %2255 = vrot.lane.b32.xlu0 %v2192, 96
    %v2256 = vpop.permute.xlu0 %2255
    %2257 = vrot.lane.b32.xlu0 %v2194, 96
    %v2258 = vpop.permute.xlu0 %2257
    %2259 = vrot.lane.b32.xlu0 %v2196, 96
    %v2260 = vpop.permute.xlu0 %2259
    %2261 = vrot.lane.b32.xlu0 %v2198, 96
    %v2262 = vpop.permute.xlu0 %2261
    %2263 = vrot.lane.b32.xlu0 %v2200, 96
    %v2264 = vpop.permute.xlu0 %2263
    %2265 = vrot.lane.b32.xlu0 %v2202, 96
    %v2266 = vpop.permute.xlu0 %2265
    %2267 = vrot.lane.b32.xlu0 %v2204, 96
    %v2268 = vpop.permute.xlu0 %2267
    %2301 = vmatprep.subr.mxu0 0.0
    %2302 = vmatpush1.msra.mxu0 %v2150
    %2303 = vmatprep.subr.mxu0 0.0
    %2304 = vmatpush1.msra.mxu0 %v2152
    %2305 = vmatprep.subr.mxu0 0.0
    %2306 = vmatpush1.msra.mxu0 %v2154
    %2307 = vmatprep.subr.mxu0 0.0
    %2308 = vmatpush1.msra.mxu0 %v2156
    %2309 = vmatprep.subr.mxu0 0.0
    %2310 = vmatpush1.msra.mxu0 %v2158
    %2311 = vmatprep.subr.mxu0 0.0
    %2312 = vmatpush1.msra.mxu0 %v2160
    %2313 = vmatprep.subr.mxu0 0.0
    %2314 = vmatpush1.msra.mxu0 %v2162
    %2315 = vmatprep.subr.mxu0 0.0
    %2316 = vmatpush1.msra.mxu0 %v2164
    %2317 = vmatprep.subr.mxu0 0.0
    %2318 = vmatpush1.msra.mxu0 %v2222
    %2319 = vmatprep.subr.mxu0 0.0
    %2320 = vmatpush1.msra.mxu0 %v2224
    %2321 = vmatprep.subr.mxu0 0.0
    %2322 = vmatpush1.msra.mxu0 %v2226
    %2323 = vmatprep.subr.mxu0 0.0
    %2324 = vmatpush1.msra.mxu0 %v2228
    %2325 = vmatprep.subr.mxu0 0.0
    %2326 = vmatpush1.msra.mxu0 %v2230
    %2327 = vmatprep.subr.mxu0 0.0
    %2328 = vmatpush1.msra.mxu0 %v2232
    %2329 = vmatprep.subr.mxu0 0.0
    %2330 = vmatpush1.msra.mxu0 %v2234
    %2331 = vmatprep.subr.mxu0 0.0
    %2332 = vmatpush1.msra.mxu0 %v2236
    %2333 = vmatprep.subr.mxu0 0.0
    %2334 = vmatpush1.msra.mxu0 %v2238
    %2335 = vmatprep.subr.mxu0 0.0
    %2336 = vmatpush1.msra.mxu0 %v2240
    %2337 = vmatprep.subr.mxu0 0.0
    %2338 = vmatpush1.msra.mxu0 %v2242
    %2339 = vmatprep.subr.mxu0 0.0
    %2340 = vmatpush1.msra.mxu0 %v2244
    %2341 = vmatprep.subr.mxu0 0.0
    %2342 = vmatpush1.msra.mxu0 %v2246
    %2343 = vmatprep.subr.mxu0 0.0
    %2344 = vmatpush1.msra.mxu0 %v2248
    %2345 = vmatprep.subr.mxu0 0.0
    %2346 = vmatpush1.msra.mxu0 %v2250
    %2347 = vmatprep.subr.mxu0 0.0
    %2348 = vmatpush1.msra.mxu0 %v2252
    %2349 = vmatprep.subr.mxu0 0.0
    %2350 = vmatpush1.msra.mxu0 %v2254
    %2351 = vmatprep.subr.mxu0 0.0
    %2352 = vmatpush1.msra.mxu0 %v2256
    %2353 = vmatprep.subr.mxu0 0.0
    %2354 = vmatpush1.msra.mxu0 %v2258
    %2355 = vmatprep.subr.mxu0 0.0
    %2356 = vmatpush1.msra.mxu0 %v2260
    %2357 = vmatprep.subr.mxu0 0.0
    %2358 = vmatpush1.msra.mxu0 %v2262
    %2359 = vmatprep.subr.mxu0 0.0
    %2360 = vmatpush1.msra.mxu0 %v2264
    %2361 = vmatprep.subr.mxu0 0.0
    %2362 = vmatpush1.msra.mxu0 %v2266
    %2363 = vmatprep.subr.mxu0 0.0
    %2364 = vmatpush1.msra.mxu0 %v2268
    %2365 = vmatprep.mubr.f32.mxu0 %v1555
    %2366 = vmatmul.mubr.f32.gmra.mrb[0].mxu0 %v1554
    %v2367 = vpop.f32.mrb[0].mxu0
    %v2368 = vadd.f32 0.0, %v2367
    %v2369 = vpop.f32.mrb[0].mxu0
    %2370 = vmatprep.mubr.f32.mxu0 %v1557
    %2371 = vmatmul.mubr.f32.gmra.mrb[0].mxu0 %v1556
    %v2372 = vpop.f32.mrb[0].mxu0
    %v2373 = vadd.f32 0.0, %v2372
    %v2374 = vpop.f32.mrb[0].mxu0
    %2375 = vmatprep.mubr.f32.mxu0 %v1559
    %2376 = vmatmul.mubr.f32.gmra.mrb[0].mxu0 %v1558
    %v2377 = vpop.f32.mrb[0].mxu0
    %v2378 = vadd.f32 0.0, %v2377
    %v2379 = vpop.f32.mrb[0].mxu0
    %2380 = vmatprep.mubr.f32.mxu0 %v1561
    %2381 = vmatmul.mubr.f32.gmra.mrb[0].mxu0 %v1560
    %v2382 = vpop.f32.mrb[0].mxu0
    %v2383 = vadd.f32 0.0, %v2382
    %v2384 = vpop.f32.mrb[0].mxu0
    %2385 = vmatprep.mubr.f32.mxu0 %v1563
    %2386 = vmatmul.mubr.f32.gmra.mrb[0].mxu0 %v1562
    %v2387 = vpop.f32.mrb[0].mxu0
    %v2388 = vadd.f32 0.0, %v2387
    %v2389 = vpop.f32.mrb[0].mxu0
    %2390 = vmatprep.mubr.f32.mxu0 %v1565
    %2391 = vmatmul.mubr.f32.gmra.mrb[0].mxu0 %v1564
    %v2392 = vpop.f32.mrb[0].mxu0
    %v2393 = vadd.f32 0.0, %v2392
    %v2394 = vpop.f32.mrb[0].mxu0
    %2395 = vmatprep.mubr.f32.mxu0 %v1567
    %2396 = vmatmul.mubr.f32.gmra.mrb[0].mxu0 %v1566
    %v2397 = vpop.f32.mrb[0].mxu0
    %v2398 = vadd.f32 0.0, %v2397
    %v2399 = vpop.f32.mrb[0].mxu0
    %2400 = vmatprep.mubr.f32.mxu0 %v1569
    %2401 = vmatmul.mubr.f32.gmra.mrb[0].mxu0 %v1568
    %v2402 = vpop.f32.mrb[0].mxu0
    %v2403 = vadd.f32 0.0, %v2402
    %v2404 = vpop.f32.mrb[0].mxu0
    %2405 = vdwg.mxu0
    %v2406 = vadd.f32 %v2213, %v2368
    %v2407 = vadd.f32 %v2214, %v2373
    %v2408 = vadd.f32 %v2215, %v2378
    %v2409 = vadd.f32 %v2216, %v2383
    %v2410 = vadd.f32 %v2217, %v2388
    %v2411 = vadd.f32 %v2218, %v2393
    %v2412 = vadd.f32 %v2219, %v2398
    %v2413 = vadd.f32 %v2220, %v2403
    %v2414 = vmax.f32 %v2406, 0.0
    %v2415 = vmax.f32 %v2407, 0.0
    %v2416 = vmax.f32 %v2408, 0.0
    %v2417 = vmax.f32 %v2409, 0.0
    %v2418 = vmax.f32 %v2410, 0.0
    %v2419 = vmax.f32 %v2411, 0.0
    %v2420 = vmax.f32 %v2412, 0.0
    %v2421 = vmax.f32 %v2413, 0.0
    %s2422 = scalar_lea.vmem [#allocation22], 128
    %v2423 = vld [vmem:[%s2422] sm:$0xff]
    %v2424 = vld [vmem:[%s2422 + $0x8] sm:$0xff]
    %v2425 = vld [vmem:[%s2422 + $0x10] sm:$0xff]
    %v2426 = vld [vmem:[%s2422 + $0x18] sm:$0xff]
    %v2427 = vld [vmem:[%s2422 + $0x20] sm:$0xff]
    %v2428 = vld [vmem:[%s2422 + $0x28] sm:$0xff]
    %v2429 = vld [vmem:[%s2422 + $0x30] sm:$0xff]
    %v2430 = vld [vmem:[%s2422 + $0x38] sm:$0xff]
    %v2432 = vsel %vm434, %v2414, 0
    %v2435 = vsel %vm434, %v2415, 0
    %v2438 = vsel %vm434, %v2416, 0
    %v2441 = vsel %vm434, %v2417, 0
    %v2444 = vsel %vm434, %v2418, 0
    %v2447 = vsel %vm434, %v2419, 0
    %v2450 = vsel %vm434, %v2420, 0
    %v2453 = vsel %vm434, %v2421, 0
    %2455 = vmatprep.subr.mxu0 %v2424
    %2456 = vmatpush1.msra.mxu0 %v2423
    %2457 = vmatprep.subr.mxu0 %v2426
    %2458 = vmatpush1.msra.mxu0 %v2425
    %2459 = vmatprep.subr.mxu0 %v2428
    %2460 = vmatpush1.msra.mxu0 %v2427
    %2461 = vmatprep.subr.mxu0 %v2430
    %2462 = vmatpush1.msra.mxu0 %v2429
    %2463 = vmatprep.subr.mxu0 0.0
    %2464 = vmatpush1.msra.mxu0 0.0
    %2465 = vmatprep.subr.mxu0 0.0
    %2466 = vmatpush1.msra.mxu0 0.0
    %2467 = vmatprep.subr.mxu0 0.0
    %2468 = vmatpush1.msra.mxu0 0.0
    %2469 = vmatprep.subr.mxu0 0.0
    %2470 = vmatpush1.msra.mxu0 0.0
    %2471 = vmatprep.subr.mxu0 0.0
    %2472 = vmatpush1.msra.mxu0 0.0
    %2473 = vmatprep.subr.mxu0 0.0
    %2474 = vmatpush1.msra.mxu0 0.0
    %2475 = vmatprep.subr.mxu0 0.0
    %2476 = vmatpush1.msra.mxu0 0.0
    %2477 = vmatprep.subr.mxu0 0.0
    %2478 = vmatpush1.msra.mxu0 0.0
    %2479 = vmatprep.subr.mxu0 0.0
    %2480 = vmatpush1.msra.mxu0 0.0
    %2481 = vmatprep.subr.mxu0 0.0
    %2482 = vmatpush1.msra.mxu0 0.0
    %2483 = vmatprep.subr.mxu0 0.0
    %2484 = vmatpush1.msra.mxu0 0.0
    %2485 = vmatprep.subr.mxu0 0.0
    %2486 = vmatpush1.msra.mxu0 0.0
    %2487 = vmatprep.subr.mxu0 0.0
    %2488 = vmatpush1.msra.mxu0 0.0
    %2489 = vmatprep.subr.mxu0 0.0
    %2490 = vmatpush1.msra.mxu0 0.0
    %2491 = vmatprep.subr.mxu0 0.0
    %2492 = vmatpush1.msra.mxu0 0.0
    %2493 = vmatprep.subr.mxu0 0.0
    %2494 = vmatpush1.msra.mxu0 0.0
    %2495 = vmatprep.subr.mxu0 0.0
    %2496 = vmatpush1.msra.mxu0 0.0
    %2497 = vmatprep.subr.mxu0 0.0
    %2498 = vmatpush1.msra.mxu0 0.0
    %2499 = vmatprep.subr.mxu0 0.0
    %2500 = vmatpush1.msra.mxu0 0.0
    %2501 = vmatprep.subr.mxu0 0.0
    %2502 = vmatpush1.msra.mxu0 0.0
    %2503 = vmatprep.subr.mxu0 0.0
    %2504 = vmatpush1.msra.mxu0 0.0
    %2505 = vmatprep.subr.mxu0 0.0
    %2506 = vmatpush1.msra.mxu0 0.0
    %2507 = vmatprep.subr.mxu0 0.0
    %2508 = vmatpush1.msra.mxu0 0.0
    %2509 = vmatprep.subr.mxu0 0.0
    %2510 = vmatpush1.msra.mxu0 0.0
    %2511 = vmatprep.subr.mxu0 0.0
    %2512 = vmatpush1.msra.mxu0 0.0
    %2513 = vmatprep.subr.mxu0 0.0
    %2514 = vmatpush1.msra.mxu0 0.0
    %2515 = vmatprep.subr.mxu0 0.0
    %2516 = vmatpush1.msra.mxu0 0.0
    %2517 = vmatprep.subr.mxu0 0.0
    %2518 = vmatpush1.msra.mxu0 0.0
    %2519 = vmatprep.mubr.f32.mxu0 0.0
    %2520 = vmatmul.mubr.f32.gmra.mrb[0].mxu0 %v2432
    %v2521 = vpop.f32.mrb[0].mxu0
    %v2522 = vadd.f32 0.0, %v2521
    %v2523 = vpop.f32.mrb[0].mxu0
    %v2524 = vadd.f32 0.0, %v2523
    %2525 = vmatprep.mubr.f32.mxu0 0.0
    %2526 = vmatmul.mubr.f32.gmra.mrb[0].mxu0 %v2435
    %v2527 = vpop.f32.mrb[0].mxu0
    %v2528 = vadd.f32 0.0, %v2527
    %v2529 = vpop.f32.mrb[0].mxu0
    %v2530 = vadd.f32 0.0, %v2529
    %2531 = vmatprep.mubr.f32.mxu0 0.0
    %2532 = vmatmul.mubr.f32.gmra.mrb[0].mxu0 %v2438
    %v2533 = vpop.f32.mrb[0].mxu0
    %v2534 = vadd.f32 0.0, %v2533
    %v2535 = vpop.f32.mrb[0].mxu0
    %v2536 = vadd.f32 0.0, %v2535
    %2537 = vmatprep.mubr.f32.mxu0 0.0
    %2538 = vmatmul.mubr.f32.gmra.mrb[0].mxu0 %v2441
    %v2539 = vpop.f32.mrb[0].mxu0
    %v2540 = vadd.f32 0.0, %v2539
    %v2541 = vpop.f32.mrb[0].mxu0
    %v2542 = vadd.f32 0.0, %v2541
    %2543 = vmatprep.mubr.f32.mxu0 0.0
    %2544 = vmatmul.mubr.f32.gmra.mrb[0].mxu0 %v2444
    %v2545 = vpop.f32.mrb[0].mxu0
    %v2546 = vadd.f32 0.0, %v2545
    %v2547 = vpop.f32.mrb[0].mxu0
    %v2548 = vadd.f32 0.0, %v2547
    %2549 = vmatprep.mubr.f32.mxu0 0.0
    %2550 = vmatmul.mubr.f32.gmra.mrb[0].mxu0 %v2447
    %v2551 = vpop.f32.mrb[0].mxu0
    %v2552 = vadd.f32 0.0, %v2551
    %v2553 = vpop.f32.mrb[0].mxu0
    %v2554 = vadd.f32 0.0, %v2553
    %2555 = vmatprep.mubr.f32.mxu0 0.0
    %2556 = vmatmul.mubr.f32.gmra.mrb[0].mxu0 %v2450
    %v2557 = vpop.f32.mrb[0].mxu0
    %v2558 = vadd.f32 0.0, %v2557
    %v2559 = vpop.f32.mrb[0].mxu0
    %v2560 = vadd.f32 0.0, %v2559
    %2561 = vmatprep.mubr.f32.mxu0 0.0
    %2562 = vmatmul.mubr.f32.gmra.mrb[0].mxu0 %v2453
    %v2563 = vpop.f32.mrb[0].mxu0
    %v2564 = vadd.f32 0.0, %v2563
    %v2565 = vpop.f32.mrb[0].mxu0
    %v2566 = vadd.f32 0.0, %v2565
    %2567 = vdwg.mxu0
    %2576 = vrot.lane.b32.xlu0 %v2522, 96
    %v2577 = vpop.permute.xlu0 %2576
    %2578 = vrot.lane.b32.xlu0 %v2528, 96
    %v2579 = vpop.permute.xlu0 %2578
    %2580 = vrot.lane.b32.xlu0 %v2534, 96
    %v2581 = vpop.permute.xlu0 %2580
    %2582 = vrot.lane.b32.xlu0 %v2540, 96
    %v2583 = vpop.permute.xlu0 %2582
    %2584 = vrot.lane.b32.xlu0 %v2546, 96
    %v2585 = vpop.permute.xlu0 %2584
    %2586 = vrot.lane.b32.xlu0 %v2552, 96
    %v2587 = vpop.permute.xlu0 %2586
    %2588 = vrot.lane.b32.xlu0 %v2558, 96
    %v2589 = vpop.permute.xlu0 %2588
    %2590 = vrot.lane.b32.xlu0 %v2564, 96
    %v2591 = vpop.permute.xlu0 %2590
    %2592 = vrot.lane.b32.xlu0 %v2522, 64
    %v2593 = vpop.permute.xlu0 %2592
    %2594 = vrot.lane.b32.xlu0 %v2528, 64
    %v2595 = vpop.permute.xlu0 %2594
    %2596 = vrot.lane.b32.xlu0 %v2534, 64
    %v2597 = vpop.permute.xlu0 %2596
    %2598 = vrot.lane.b32.xlu0 %v2540, 64
    %v2599 = vpop.permute.xlu0 %2598
    %2600 = vrot.lane.b32.xlu0 %v2546, 64
    %v2601 = vpop.permute.xlu0 %2600
    %2602 = vrot.lane.b32.xlu0 %v2552, 64
    %v2603 = vpop.permute.xlu0 %2602
    %2604 = vrot.lane.b32.xlu0 %v2558, 64
    %v2605 = vpop.permute.xlu0 %2604
    %2606 = vrot.lane.b32.xlu0 %v2564, 64
    %v2607 = vpop.permute.xlu0 %2606
    %2616 = vrot.lane.b32.xlu0 %v2524, 32
    %v2617 = vpop.permute.xlu0 %2616
    %2618 = vrot.lane.b32.xlu0 %v2530, 32
    %v2619 = vpop.permute.xlu0 %2618
    %2620 = vrot.lane.b32.xlu0 %v2536, 32
    %v2621 = vpop.permute.xlu0 %2620
    %2622 = vrot.lane.b32.xlu0 %v2542, 32
    %v2623 = vpop.permute.xlu0 %2622
    %2624 = vrot.lane.b32.xlu0 %v2548, 32
    %v2625 = vpop.permute.xlu0 %2624
    %2626 = vrot.lane.b32.xlu0 %v2554, 32
    %v2627 = vpop.permute.xlu0 %2626
    %2628 = vrot.lane.b32.xlu0 %v2560, 32
    %v2629 = vpop.permute.xlu0 %2628
    %2630 = vrot.lane.b32.xlu0 %v2566, 32
    %v2631 = vpop.permute.xlu0 %2630
    %s2632 = scalar_lea.vmem [#allocation23], 2
    %v2633 = vld [vmem:[%s2632] sm:$0x1]
    %v2635 = vlaneseq
    %v2636 = vshrl.u32 %v2635, 7
    %v2637 = vsub.s32 0, %v2636
    %v2638 = vrot.slane %v2633, %v2637
    %v2640 = vadd.f32 %v2522, %v2638
    %v2641 = vadd.f32 %v2528, %v2638
    %v2642 = vadd.f32 %v2534, %v2638
    %v2643 = vadd.f32 %v2540, %v2638
    %v2644 = vadd.f32 %v2546, %v2638
    %v2645 = vadd.f32 %v2552, %v2638
    %v2646 = vadd.f32 %v2558, %v2638
    %v2647 = vadd.f32 %v2564, %v2638
    %2648 = vrot.lane.b32.xlu0 %v2577, 96
    %v2649 = vpop.permute.xlu0 %2648
    %2650 = vrot.lane.b32.xlu0 %v2579, 96
    %v2651 = vpop.permute.xlu0 %2650
    %2652 = vrot.lane.b32.xlu0 %v2581, 96
    %v2653 = vpop.permute.xlu0 %2652
    %2654 = vrot.lane.b32.xlu0 %v2583, 96
    %v2655 = vpop.permute.xlu0 %2654
    %2656 = vrot.lane.b32.xlu0 %v2585, 96
    %v2657 = vpop.permute.xlu0 %2656
    %2658 = vrot.lane.b32.xlu0 %v2587, 96
    %v2659 = vpop.permute.xlu0 %2658
    %2660 = vrot.lane.b32.xlu0 %v2589, 96
    %v2661 = vpop.permute.xlu0 %2660
    %2662 = vrot.lane.b32.xlu0 %v2591, 96
    %v2663 = vpop.permute.xlu0 %2662
    %2664 = vrot.lane.b32.xlu0 %v2593, 96
    %v2665 = vpop.permute.xlu0 %2664
    %2666 = vrot.lane.b32.xlu0 %v2595, 96
    %v2667 = vpop.permute.xlu0 %2666
    %2668 = vrot.lane.b32.xlu0 %v2597, 96
    %v2669 = vpop.permute.xlu0 %2668
    %2670 = vrot.lane.b32.xlu0 %v2599, 96
    %v2671 = vpop.permute.xlu0 %2670
    %2672 = vrot.lane.b32.xlu0 %v2601, 96
    %v2673 = vpop.permute.xlu0 %2672
    %2674 = vrot.lane.b32.xlu0 %v2603, 96
    %v2675 = vpop.permute.xlu0 %2674
    %2676 = vrot.lane.b32.xlu0 %v2605, 96
    %v2677 = vpop.permute.xlu0 %2676
    %2678 = vrot.lane.b32.xlu0 %v2607, 96
    %v2679 = vpop.permute.xlu0 %2678
    %2680 = vrot.lane.b32.xlu0 %v2617, 96
    %v2681 = vpop.permute.xlu0 %2680
    %2682 = vrot.lane.b32.xlu0 %v2619, 96
    %v2683 = vpop.permute.xlu0 %2682
    %2684 = vrot.lane.b32.xlu0 %v2621, 96
    %v2685 = vpop.permute.xlu0 %2684
    %2686 = vrot.lane.b32.xlu0 %v2623, 96
    %v2687 = vpop.permute.xlu0 %2686
    %2688 = vrot.lane.b32.xlu0 %v2625, 96
    %v2689 = vpop.permute.xlu0 %2688
    %2690 = vrot.lane.b32.xlu0 %v2627, 96
    %v2691 = vpop.permute.xlu0 %2690
    %2692 = vrot.lane.b32.xlu0 %v2629, 96
    %v2693 = vpop.permute.xlu0 %2692
    %2694 = vrot.lane.b32.xlu0 %v2631, 96
    %v2695 = vpop.permute.xlu0 %2694
    %2728 = vmatprep.subr.mxu0 0.0
    %2729 = vmatpush1.msra.mxu0 %v2577
    %2730 = vmatprep.subr.mxu0 0.0
    %2731 = vmatpush1.msra.mxu0 %v2579
    %2732 = vmatprep.subr.mxu0 0.0
    %2733 = vmatpush1.msra.mxu0 %v2581
    %2734 = vmatprep.subr.mxu0 0.0
    %2735 = vmatpush1.msra.mxu0 %v2583
    %2736 = vmatprep.subr.mxu0 0.0
    %2737 = vmatpush1.msra.mxu0 %v2585
    %2738 = vmatprep.subr.mxu0 0.0
    %2739 = vmatpush1.msra.mxu0 %v2587
    %2740 = vmatprep.subr.mxu0 0.0
    %2741 = vmatpush1.msra.mxu0 %v2589
    %2742 = vmatprep.subr.mxu0 0.0
    %2743 = vmatpush1.msra.mxu0 %v2591
    %2744 = vmatprep.subr.mxu0 0.0
    %2745 = vmatpush1.msra.mxu0 %v2649
    %2746 = vmatprep.subr.mxu0 0.0
    %2747 = vmatpush1.msra.mxu0 %v2651
    %2748 = vmatprep.subr.mxu0 0.0
    %2749 = vmatpush1.msra.mxu0 %v2653
    %2750 = vmatprep.subr.mxu0 0.0
    %2751 = vmatpush1.msra.mxu0 %v2655
    %2752 = vmatprep.subr.mxu0 0.0
    %2753 = vmatpush1.msra.mxu0 %v2657
    %2754 = vmatprep.subr.mxu0 0.0
    %2755 = vmatpush1.msra.mxu0 %v2659
    %2756 = vmatprep.subr.mxu0 0.0
    %2757 = vmatpush1.msra.mxu0 %v2661
    %2758 = vmatprep.subr.mxu0 0.0
    %2759 = vmatpush1.msra.mxu0 %v2663
    %2760 = vmatprep.subr.mxu0 0.0
    %2761 = vmatpush1.msra.mxu0 %v2665
    %2762 = vmatprep.subr.mxu0 0.0
    %2763 = vmatpush1.msra.mxu0 %v2667
    %2764 = vmatprep.subr.mxu0 0.0
    %2765 = vmatpush1.msra.mxu0 %v2669
    %2766 = vmatprep.subr.mxu0 0.0
    %2767 = vmatpush1.msra.mxu0 %v2671
    %2768 = vmatprep.subr.mxu0 0.0
    %2769 = vmatpush1.msra.mxu0 %v2673
    %2770 = vmatprep.subr.mxu0 0.0
    %2771 = vmatpush1.msra.mxu0 %v2675
    %2772 = vmatprep.subr.mxu0 0.0
    %2773 = vmatpush1.msra.mxu0 %v2677
    %2774 = vmatprep.subr.mxu0 0.0
    %2775 = vmatpush1.msra.mxu0 %v2679
    %2776 = vmatprep.subr.mxu0 0.0
    %2777 = vmatpush1.msra.mxu0 %v2681
    %2778 = vmatprep.subr.mxu0 0.0
    %2779 = vmatpush1.msra.mxu0 %v2683
    %2780 = vmatprep.subr.mxu0 0.0
    %2781 = vmatpush1.msra.mxu0 %v2685
    %2782 = vmatprep.subr.mxu0 0.0
    %2783 = vmatpush1.msra.mxu0 %v2687
    %2784 = vmatprep.subr.mxu0 0.0
    %2785 = vmatpush1.msra.mxu0 %v2689
    %2786 = vmatprep.subr.mxu0 0.0
    %2787 = vmatpush1.msra.mxu0 %v2691
    %2788 = vmatprep.subr.mxu0 0.0
    %2789 = vmatpush1.msra.mxu0 %v2693
    %2790 = vmatprep.subr.mxu0 0.0
    %2791 = vmatpush1.msra.mxu0 %v2695
    %2792 = vmatprep.mubr.f32.mxu0 %v1555
    %2793 = vmatmul.mubr.f32.gmra.mrb[0].mxu0 %v1554
    %v2794 = vpop.f32.mrb[0].mxu0
    %v2795 = vadd.f32 0.0, %v2794
    %v2796 = vpop.f32.mrb[0].mxu0
    %2797 = vmatprep.mubr.f32.mxu0 %v1557
    %2798 = vmatmul.mubr.f32.gmra.mrb[0].mxu0 %v1556
    %v2799 = vpop.f32.mrb[0].mxu0
    %v2800 = vadd.f32 0.0, %v2799
    %v2801 = vpop.f32.mrb[0].mxu0
    %2802 = vmatprep.mubr.f32.mxu0 %v1559
    %2803 = vmatmul.mubr.f32.gmra.mrb[0].mxu0 %v1558
    %v2804 = vpop.f32.mrb[0].mxu0
    %v2805 = vadd.f32 0.0, %v2804
    %v2806 = vpop.f32.mrb[0].mxu0
    %2807 = vmatprep.mubr.f32.mxu0 %v1561
    %2808 = vmatmul.mubr.f32.gmra.mrb[0].mxu0 %v1560
    %v2809 = vpop.f32.mrb[0].mxu0
    %v2810 = vadd.f32 0.0, %v2809
    %v2811 = vpop.f32.mrb[0].mxu0
    %2812 = vmatprep.mubr.f32.mxu0 %v1563
    %2813 = vmatmul.mubr.f32.gmra.mrb[0].mxu0 %v1562
    %v2814 = vpop.f32.mrb[0].mxu0
    %v2815 = vadd.f32 0.0, %v2814
    %v2816 = vpop.f32.mrb[0].mxu0
    %2817 = vmatprep.mubr.f32.mxu0 %v1565
    %2818 = vmatmul.mubr.f32.gmra.mrb[0].mxu0 %v1564
    %v2819 = vpop.f32.mrb[0].mxu0
    %v2820 = vadd.f32 0.0, %v2819
    %v2821 = vpop.f32.mrb[0].mxu0
    %2822 = vmatprep.mubr.f32.mxu0 %v1567
    %2823 = vmatmul.mubr.f32.gmra.mrb[0].mxu0 %v1566
    %v2824 = vpop.f32.mrb[0].mxu0
    %v2825 = vadd.f32 0.0, %v2824
    %v2826 = vpop.f32.mrb[0].mxu0
    %2827 = vmatprep.mubr.f32.mxu0 %v1569
    %2828 = vmatmul.mubr.f32.gmra.mrb[0].mxu0 %v1568
    %v2829 = vpop.f32.mrb[0].mxu0
    %v2830 = vadd.f32 0.0, %v2829
    %v2831 = vpop.f32.mrb[0].mxu0
    %2832 = vdwg.mxu0
    %v2833 = vadd.f32 %v2640, %v2795
    %v2834 = vadd.f32 %v2641, %v2800
    %v2835 = vadd.f32 %v2642, %v2805
    %v2836 = vadd.f32 %v2643, %v2810
    %v2837 = vadd.f32 %v2644, %v2815
    %v2838 = vadd.f32 %v2645, %v2820
    %v2839 = vadd.f32 %v2646, %v2825
    %v2840 = vadd.f32 %v2647, %v2830
    %v2841 = vmax.f32 %v2833, 0.0
    %v2842 = vmax.f32 %v2834, 0.0
    %v2843 = vmax.f32 %v2835, 0.0
    %v2844 = vmax.f32 %v2836, 0.0
    %v2845 = vmax.f32 %v2837, 0.0
    %v2846 = vmax.f32 %v2838, 0.0
    %v2847 = vmax.f32 %v2839, 0.0
    %v2848 = vmax.f32 %v2840, 0.0
    %s2849 = scalar_lea.vmem [#allocation22], 192
    %v2850 = vld [vmem:[%s2849] sm:$0xff]
    %v2851 = vld [vmem:[%s2849 + $0x8] sm:$0xff]
    %v2852 = vld [vmem:[%s2849 + $0x10] sm:$0xff]
    %v2853 = vld [vmem:[%s2849 + $0x18] sm:$0xff]
    %v2854 = vld [vmem:[%s2849 + $0x20] sm:$0xff]
    %v2855 = vld [vmem:[%s2849 + $0x28] sm:$0xff]
    %v2856 = vld [vmem:[%s2849 + $0x30] sm:$0xff]
    %v2857 = vld [vmem:[%s2849 + $0x38] sm:$0xff]
    %v2859 = vsel %vm434, %v2841, 0
    %v2862 = vsel %vm434, %v2842, 0
    %v2865 = vsel %vm434, %v2843, 0
    %v2868 = vsel %vm434, %v2844, 0
    %v2871 = vsel %vm434, %v2845, 0
    %v2874 = vsel %vm434, %v2846, 0
    %v2877 = vsel %vm434, %v2847, 0
    %v2880 = vsel %vm434, %v2848, 0
    %2882 = vmatprep.subr.mxu0 %v2851
    %2883 = vmatpush1.msra.mxu0 %v2850
    %2884 = vmatprep.subr.mxu0 %v2853
    %2885 = vmatpush1.msra.mxu0 %v2852
    %2886 = vmatprep.subr.mxu0 %v2855
    %2887 = vmatpush1.msra.mxu0 %v2854
    %2888 = vmatprep.subr.mxu0 %v2857
    %2889 = vmatpush1.msra.mxu0 %v2856
    %2890 = vmatprep.subr.mxu0 0.0
    %2891 = vmatpush1.msra.mxu0 0.0
    %2892 = vmatprep.subr.mxu0 0.0
    %2893 = vmatpush1.msra.mxu0 0.0
    %2894 = vmatprep.subr.mxu0 0.0
    %2895 = vmatpush1.msra.mxu0 0.0
    %2896 = vmatprep.subr.mxu0 0.0
    %2897 = vmatpush1.msra.mxu0 0.0
    %2898 = vmatprep.subr.mxu0 0.0
    %2899 = vmatpush1.msra.mxu0 0.0
    %2900 = vmatprep.subr.mxu0 0.0
    %2901 = vmatpush1.msra.mxu0 0.0
    %2902 = vmatprep.subr.mxu0 0.0
    %2903 = vmatpush1.msra.mxu0 0.0
    %2904 = vmatprep.subr.mxu0 0.0
    %2905 = vmatpush1.msra.mxu0 0.0
    %2906 = vmatprep.subr.mxu0 0.0
    %2907 = vmatpush1.msra.mxu0 0.0
    %2908 = vmatprep.subr.mxu0 0.0
    %2909 = vmatpush1.msra.mxu0 0.0
    %2910 = vmatprep.subr.mxu0 0.0
    %2911 = vmatpush1.msra.mxu0 0.0
    %2912 = vmatprep.subr.mxu0 0.0
    %2913 = vmatpush1.msra.mxu0 0.0
    %2914 = vmatprep.subr.mxu0 0.0
    %2915 = vmatpush1.msra.mxu0 0.0
    %2916 = vmatprep.subr.mxu0 0.0
    %2917 = vmatpush1.msra.mxu0 0.0
    %2918 = vmatprep.subr.mxu0 0.0
    %2919 = vmatpush1.msra.mxu0 0.0
    %2920 = vmatprep.subr.mxu0 0.0
    %2921 = vmatpush1.msra.mxu0 0.0
    %2922 = vmatprep.subr.mxu0 0.0
    %2923 = vmatpush1.msra.mxu0 0.0
    %2924 = vmatprep.subr.mxu0 0.0
    %2925 = vmatpush1.msra.mxu0 0.0
    %2926 = vmatprep.subr.mxu0 0.0
    %2927 = vmatpush1.msra.mxu0 0.0
    %2928 = vmatprep.subr.mxu0 0.0
    %2929 = vmatpush1.msra.mxu0 0.0
    %2930 = vmatprep.subr.mxu0 0.0
    %2931 = vmatpush1.msra.mxu0 0.0
    %2932 = vmatprep.subr.mxu0 0.0
    %2933 = vmatpush1.msra.mxu0 0.0
    %2934 = vmatprep.subr.mxu0 0.0
    %2935 = vmatpush1.msra.mxu0 0.0
    %2936 = vmatprep.subr.mxu0 0.0
    %2937 = vmatpush1.msra.mxu0 0.0
    %2938 = vmatprep.subr.mxu0 0.0
    %2939 = vmatpush1.msra.mxu0 0.0
    %2940 = vmatprep.subr.mxu0 0.0
    %2941 = vmatpush1.msra.mxu0 0.0
    %2942 = vmatprep.subr.mxu0 0.0
    %2943 = vmatpush1.msra.mxu0 0.0
    %2944 = vmatprep.subr.mxu0 0.0
    %2945 = vmatpush1.msra.mxu0 0.0
    %2946 = vmatprep.mubr.f32.mxu0 0.0
    %2947 = vmatmul.mubr.f32.gmra.mrb[0].mxu0 %v2859
    %v2948 = vpop.f32.mrb[0].mxu0
    %v2949 = vadd.f32 0.0, %v2948
    %v2950 = vpop.f32.mrb[0].mxu0
    %v2951 = vadd.f32 0.0, %v2950
    %2952 = vmatprep.mubr.f32.mxu0 0.0
    %2953 = vmatmul.mubr.f32.gmra.mrb[0].mxu0 %v2862
    %v2954 = vpop.f32.mrb[0].mxu0
    %v2955 = vadd.f32 0.0, %v2954
    %v2956 = vpop.f32.mrb[0].mxu0
    %v2957 = vadd.f32 0.0, %v2956
    %2958 = vmatprep.mubr.f32.mxu0 0.0
    %2959 = vmatmul.mubr.f32.gmra.mrb[0].mxu0 %v2865
    %v2960 = vpop.f32.mrb[0].mxu0
    %v2961 = vadd.f32 0.0, %v2960
    %v2962 = vpop.f32.mrb[0].mxu0
    %v2963 = vadd.f32 0.0, %v2962
    %2964 = vmatprep.mubr.f32.mxu0 0.0
    %2965 = vmatmul.mubr.f32.gmra.mrb[0].mxu0 %v2868
    %v2966 = vpop.f32.mrb[0].mxu0
    %v2967 = vadd.f32 0.0, %v2966
    %v2968 = vpop.f32.mrb[0].mxu0
    %v2969 = vadd.f32 0.0, %v2968
    %2970 = vmatprep.mubr.f32.mxu0 0.0
    %2971 = vmatmul.mubr.f32.gmra.mrb[0].mxu0 %v2871
    %v2972 = vpop.f32.mrb[0].mxu0
    %v2973 = vadd.f32 0.0, %v2972
    %v2974 = vpop.f32.mrb[0].mxu0
    %v2975 = vadd.f32 0.0, %v2974
    %2976 = vmatprep.mubr.f32.mxu0 0.0
    %2977 = vmatmul.mubr.f32.gmra.mrb[0].mxu0 %v2874
    %v2978 = vpop.f32.mrb[0].mxu0
    %v2979 = vadd.f32 0.0, %v2978
    %v2980 = vpop.f32.mrb[0].mxu0
    %v2981 = vadd.f32 0.0, %v2980
    %2982 = vmatprep.mubr.f32.mxu0 0.0
    %2983 = vmatmul.mubr.f32.gmra.mrb[0].mxu0 %v2877
    %v2984 = vpop.f32.mrb[0].mxu0
    %v2985 = vadd.f32 0.0, %v2984
    %v2986 = vpop.f32.mrb[0].mxu0
    %v2987 = vadd.f32 0.0, %v2986
    %2988 = vmatprep.mubr.f32.mxu0 0.0
    %2989 = vmatmul.mubr.f32.gmra.mrb[0].mxu0 %v2880
    %v2990 = vpop.f32.mrb[0].mxu0
    %v2991 = vadd.f32 0.0, %v2990
    %v2992 = vpop.f32.mrb[0].mxu0
    %v2993 = vadd.f32 0.0, %v2992
    %2994 = vdwg.mxu0
    %3003 = vrot.lane.b32.xlu0 %v2949, 96
    %v3004 = vpop.permute.xlu0 %3003
    %3005 = vrot.lane.b32.xlu0 %v2955, 96
    %v3006 = vpop.permute.xlu0 %3005
    %3007 = vrot.lane.b32.xlu0 %v2961, 96
    %v3008 = vpop.permute.xlu0 %3007
    %3009 = vrot.lane.b32.xlu0 %v2967, 96
    %v3010 = vpop.permute.xlu0 %3009
    %3011 = vrot.lane.b32.xlu0 %v2973, 96
    %v3012 = vpop.permute.xlu0 %3011
    %3013 = vrot.lane.b32.xlu0 %v2979, 96
    %v3014 = vpop.permute.xlu0 %3013
    %3015 = vrot.lane.b32.xlu0 %v2985, 96
    %v3016 = vpop.permute.xlu0 %3015
    %3017 = vrot.lane.b32.xlu0 %v2991, 96
    %v3018 = vpop.permute.xlu0 %3017
    %3019 = vrot.lane.b32.xlu0 %v2949, 64
    %v3020 = vpop.permute.xlu0 %3019
    %3021 = vrot.lane.b32.xlu0 %v2955, 64
    %v3022 = vpop.permute.xlu0 %3021
    %3023 = vrot.lane.b32.xlu0 %v2961, 64
    %v3024 = vpop.permute.xlu0 %3023
    %3025 = vrot.lane.b32.xlu0 %v2967, 64
    %v3026 = vpop.permute.xlu0 %3025
    %3027 = vrot.lane.b32.xlu0 %v2973, 64
    %v3028 = vpop.permute.xlu0 %3027
    %3029 = vrot.lane.b32.xlu0 %v2979, 64
    %v3030 = vpop.permute.xlu0 %3029
    %3031 = vrot.lane.b32.xlu0 %v2985, 64
    %v3032 = vpop.permute.xlu0 %3031
    %3033 = vrot.lane.b32.xlu0 %v2991, 64
    %v3034 = vpop.permute.xlu0 %3033
    %3043 = vrot.lane.b32.xlu0 %v2951, 32
    %v3044 = vpop.permute.xlu0 %3043
    %3045 = vrot.lane.b32.xlu0 %v2957, 32
    %v3046 = vpop.permute.xlu0 %3045
    %3047 = vrot.lane.b32.xlu0 %v2963, 32
    %v3048 = vpop.permute.xlu0 %3047
    %3049 = vrot.lane.b32.xlu0 %v2969, 32
    %v3050 = vpop.permute.xlu0 %3049
    %3051 = vrot.lane.b32.xlu0 %v2975, 32
    %v3052 = vpop.permute.xlu0 %3051
    %3053 = vrot.lane.b32.xlu0 %v2981, 32
    %v3054 = vpop.permute.xlu0 %3053
    %3055 = vrot.lane.b32.xlu0 %v2987, 32
    %v3056 = vpop.permute.xlu0 %3055
    %3057 = vrot.lane.b32.xlu0 %v2993, 32
    %v3058 = vpop.permute.xlu0 %3057
    %s3059 = scalar_lea.vmem [#allocation23], 3
    %v3060 = vld [vmem:[%s3059] sm:$0x1]
    %v3062 = vlaneseq
    %v3063 = vshrl.u32 %v3062, 7
    %v3064 = vsub.s32 0, %v3063
    %v3065 = vrot.slane %v3060, %v3064
    %v3067 = vadd.f32 %v2949, %v3065
    %v3068 = vadd.f32 %v2955, %v3065
    %3069 = vrot.lane.b32.xlu0 %v3004, 96
    %v3070 = vpop.permute.xlu0 %3069
    %3071 = vrot.lane.b32.xlu0 %v3006, 96
    %v3072 = vpop.permute.xlu0 %3071
    %3073 = vrot.lane.b32.xlu0 %v3008, 96
    %v3074 = vpop.permute.xlu0 %3073
    %3075 = vrot.lane.b32.xlu0 %v3010, 96
    %v3076 = vpop.permute.xlu0 %3075
    %3077 = vrot.lane.b32.xlu0 %v3012, 96
    %v3078 = vpop.permute.xlu0 %3077
    %3079 = vrot.lane.b32.xlu0 %v3014, 96
    %v3080 = vpop.permute.xlu0 %3079
    %3081 = vrot.lane.b32.xlu0 %v3016, 96
    %v3082 = vpop.permute.xlu0 %3081
    %3083 = vrot.lane.b32.xlu0 %v3018, 96
    %v3084 = vpop.permute.xlu0 %3083
    %3085 = vrot.lane.b32.xlu0 %v3020, 96
    %v3086 = vpop.permute.xlu0 %3085
    %3087 = vrot.lane.b32.xlu0 %v3022, 96
    %v3088 = vpop.permute.xlu0 %3087
    %3089 = vrot.lane.b32.xlu0 %v3024, 96
    %v3090 = vpop.permute.xlu0 %3089
    %3091 = vrot.lane.b32.xlu0 %v3026, 96
    %v3092 = vpop.permute.xlu0 %3091
    %3093 = vrot.lane.b32.xlu0 %v3028, 96
    %v3094 = vpop.permute.xlu0 %3093
    %3095 = vrot.lane.b32.xlu0 %v3030, 96
    %v3096 = vpop.permute.xlu0 %3095
    %3097 = vrot.lane.b32.xlu0 %v3032, 96
    %v3098 = vpop.permute.xlu0 %3097
    %3099 = vrot.lane.b32.xlu0 %v3034, 96
    %v3100 = vpop.permute.xlu0 %3099
    %3101 = vrot.lane.b32.xlu0 %v3044, 96
    %v3102 = vpop.permute.xlu0 %3101
    %3103 = vrot.lane.b32.xlu0 %v3046, 96
    %v3104 = vpop.permute.xlu0 %3103
    %3105 = vrot.lane.b32.xlu0 %v3048, 96
    %v3106 = vpop.permute.xlu0 %3105
    %3107 = vrot.lane.b32.xlu0 %v3050, 96
    %v3108 = vpop.permute.xlu0 %3107
    %3109 = vrot.lane.b32.xlu0 %v3052, 96
    %v3110 = vpop.permute.xlu0 %3109
    %3111 = vrot.lane.b32.xlu0 %v3054, 96
    %v3112 = vpop.permute.xlu0 %3111
    %3113 = vrot.lane.b32.xlu0 %v3056, 96
    %v3114 = vpop.permute.xlu0 %3113
    %3115 = vrot.lane.b32.xlu0 %v3058, 96
    %v3116 = vpop.permute.xlu0 %3115
    %3149 = vmatprep.subr.mxu0 0.0
    %3150 = vmatpush1.msra.mxu0 %v3004
    %3151 = vmatprep.subr.mxu0 0.0
    %3152 = vmatpush1.msra.mxu0 %v3006
    %3153 = vmatprep.subr.mxu0 0.0
    %3154 = vmatpush1.msra.mxu0 %v3008
    %3155 = vmatprep.subr.mxu0 0.0
    %3156 = vmatpush1.msra.mxu0 %v3010
    %3157 = vmatprep.subr.mxu0 0.0
    %3158 = vmatpush1.msra.mxu0 %v3012
    %3159 = vmatprep.subr.mxu0 0.0
    %3160 = vmatpush1.msra.mxu0 %v3014
    %3161 = vmatprep.subr.mxu0 0.0
    %3162 = vmatpush1.msra.mxu0 %v3016
    %3163 = vmatprep.subr.mxu0 0.0
    %3164 = vmatpush1.msra.mxu0 %v3018
    %3165 = vmatprep.subr.mxu0 0.0
    %3166 = vmatpush1.msra.mxu0 %v3070
    %3167 = vmatprep.subr.mxu0 0.0
    %3168 = vmatpush1.msra.mxu0 %v3072
    %3169 = vmatprep.subr.mxu0 0.0
    %3170 = vmatpush1.msra.mxu0 %v3074
    %3171 = vmatprep.subr.mxu0 0.0
    %3172 = vmatpush1.msra.mxu0 %v3076
    %3173 = vmatprep.subr.mxu0 0.0
    %3174 = vmatpush1.msra.mxu0 %v3078
    %3175 = vmatprep.subr.mxu0 0.0
    %3176 = vmatpush1.msra.mxu0 %v3080
    %3177 = vmatprep.subr.mxu0 0.0
    %3178 = vmatpush1.msra.mxu0 %v3082
    %3179 = vmatprep.subr.mxu0 0.0
    %3180 = vmatpush1.msra.mxu0 %v3084
    %3181 = vmatprep.subr.mxu0 0.0
    %3182 = vmatpush1.msra.mxu0 %v3086
    %3183 = vmatprep.subr.mxu0 0.0
    %3184 = vmatpush1.msra.mxu0 %v3088
    %3185 = vmatprep.subr.mxu0 0.0
    %3186 = vmatpush1.msra.mxu0 %v3090
    %3187 = vmatprep.subr.mxu0 0.0
    %3188 = vmatpush1.msra.mxu0 %v3092
    %3189 = vmatprep.subr.mxu0 0.0
    %3190 = vmatpush1.msra.mxu0 %v3094
    %3191 = vmatprep.subr.mxu0 0.0
    %3192 = vmatpush1.msra.mxu0 %v3096
    %3193 = vmatprep.subr.mxu0 0.0
    %3194 = vmatpush1.msra.mxu0 %v3098
    %3195 = vmatprep.subr.mxu0 0.0
    %3196 = vmatpush1.msra.mxu0 %v3100
    %3197 = vmatprep.subr.mxu0 0.0
    %3198 = vmatpush1.msra.mxu0 %v3102
    %3199 = vmatprep.subr.mxu0 0.0
    %3200 = vmatpush1.msra.mxu0 %v3104
    %3201 = vmatprep.subr.mxu0 0.0
    %3202 = vmatpush1.msra.mxu0 %v3106
    %3203 = vmatprep.subr.mxu0 0.0
    %3204 = vmatpush1.msra.mxu0 %v3108
    %3205 = vmatprep.subr.mxu0 0.0
    %3206 = vmatpush1.msra.mxu0 %v3110
    %3207 = vmatprep.subr.mxu0 0.0
    %3208 = vmatpush1.msra.mxu0 %v3112
    %3209 = vmatprep.subr.mxu0 0.0
    %3210 = vmatpush1.msra.mxu0 %v3114
    %3211 = vmatprep.subr.mxu0 0.0
    %3212 = vmatpush1.msra.mxu0 %v3116
    %3213 = vmatprep.mubr.f32.mxu0 %v1555
    %3214 = vmatmul.mubr.f32.gmra.mrb[0].mxu0 %v1554
    %v3215 = vpop.f32.mrb[0].mxu0
    %v3216 = vadd.f32 0.0, %v3215
    %v3217 = vpop.f32.mrb[0].mxu0
    %3218 = vmatprep.mubr.f32.mxu0 %v1557
    %3219 = vmatmul.mubr.f32.gmra.mrb[0].mxu0 %v1556
    %v3220 = vpop.f32.mrb[0].mxu0
    %v3221 = vadd.f32 0.0, %v3220
    %v3222 = vpop.f32.mrb[0].mxu0
    %3223 = vmatprep.mubr.f32.mxu0 %v1559
    %3224 = vmatmul.mubr.f32.gmra.mrb[0].mxu0 %v1558
    %v3225 = vpop.f32.mrb[0].mxu0
    %v3226 = vpop.f32.mrb[0].mxu0
    %3227 = vmatprep.mubr.f32.mxu0 %v1561
    %3228 = vmatmul.mubr.f32.gmra.mrb[0].mxu0 %v1560
    %v3229 = vpop.f32.mrb[0].mxu0
    %v3230 = vpop.f32.mrb[0].mxu0
    %3231 = vmatprep.mubr.f32.mxu0 %v1563
    %3232 = vmatmul.mubr.f32.gmra.mrb[0].mxu0 %v1562
    %v3233 = vpop.f32.mrb[0].mxu0
    %v3234 = vpop.f32.mrb[0].mxu0
    %3235 = vmatprep.mubr.f32.mxu0 %v1565
    %3236 = vmatmul.mubr.f32.gmra.mrb[0].mxu0 %v1564
    %v3237 = vpop.f32.mrb[0].mxu0
    %v3238 = vpop.f32.mrb[0].mxu0
    %3239 = vmatprep.mubr.f32.mxu0 %v1567
    %3240 = vmatmul.mubr.f32.gmra.mrb[0].mxu0 %v1566
    %v3241 = vpop.f32.mrb[0].mxu0
    %v3242 = vpop.f32.mrb[0].mxu0
    %3243 = vmatprep.mubr.f32.mxu0 %v1569
    %3244 = vmatmul.mubr.f32.gmra.mrb[0].mxu0 %v1568
    %v3245 = vpop.f32.mrb[0].mxu0
    %v3246 = vpop.f32.mrb[0].mxu0
    %3247 = vdwg.mxu0
    %v3248 = vadd.f32 %v3067, %v3216
    %v3249 = vadd.f32 %v3068, %v3221
    %v3250 = vmax.f32 %v3248, 0.0
    %v3251 = vmax.f32 %v3249, 0.0
    %v3252 = vld [vmem:[#allocation25] sm:$0xff]
    %v3253 = vld [vmem:[#allocation25 + $0x8] sm:$0xff]
    %v3254 = vld [vmem:[#allocation25 + $0x10] sm:$0xff]
    %v3255 = vld [vmem:[#allocation25 + $0x18] sm:$0xff]
    %v3256 = vld [vmem:[#allocation26] sm:$0x1]
    %v3258 = vlaneseq
    %v3259 = vshrl.u32 %v3258, 7
    %v3260 = vsub.s32 0, %v3259
    %v3261 = vrot.slane %v3256, %v3260
    %v3264 = vsel %vm434, %v3250, 0
    %v3267 = vsel %vm434, %v3251, 0
    %3269 = vmatprep.subr.mxu0 0.0
    %3270 = vmatpush1.msra.mxu0 %v3252
    %3271 = vmatprep.subr.mxu0 0.0
    %3272 = vmatpush1.msra.mxu0 %v3253
    %3273 = vmatprep.subr.mxu0 0.0
    %3274 = vmatpush1.msra.mxu0 %v3254
    %3275 = vmatprep.subr.mxu0 0.0
    %3276 = vmatpush1.msra.mxu0 %v3255
    %3277 = vmatprep.subr.mxu0 0.0
    %3278 = vmatpush1.msra.mxu0 0.0
    %3279 = vmatprep.subr.mxu0 0.0
    %3280 = vmatpush1.msra.mxu0 0.0
    %3281 = vmatprep.subr.mxu0 0.0
    %3282 = vmatpush1.msra.mxu0 0.0
    %3283 = vmatprep.subr.mxu0 0.0
    %3284 = vmatpush1.msra.mxu0 0.0
    %3285 = vmatprep.subr.mxu0 0.0
    %3286 = vmatpush1.msra.mxu0 0.0
    %3287 = vmatprep.subr.mxu0 0.0
    %3288 = vmatpush1.msra.mxu0 0.0
    %3289 = vmatprep.subr.mxu0 0.0
    %3290 = vmatpush1.msra.mxu0 0.0
    %3291 = vmatprep.subr.mxu0 0.0
    %3292 = vmatpush1.msra.mxu0 0.0
    %3293 = vmatprep.subr.mxu0 0.0
    %3294 = vmatpush1.msra.mxu0 0.0
    %3295 = vmatprep.subr.mxu0 0.0
    %3296 = vmatpush1.msra.mxu0 0.0
    %3297 = vmatprep.subr.mxu0 0.0
    %3298 = vmatpush1.msra.mxu0 0.0
    %3299 = vmatprep.subr.mxu0 0.0
    %3300 = vmatpush1.msra.mxu0 0.0
    %3301 = vmatprep.subr.mxu0 0.0
    %3302 = vmatpush1.msra.mxu0 0.0
    %3303 = vmatprep.subr.mxu0 0.0
    %3304 = vmatpush1.msra.mxu0 0.0
    %3305 = vmatprep.subr.mxu0 0.0
    %3306 = vmatpush1.msra.mxu0 0.0
    %3307 = vmatprep.subr.mxu0 0.0
    %3308 = vmatpush1.msra.mxu0 0.0
    %3309 = vmatprep.subr.mxu0 0.0
    %3310 = vmatpush1.msra.mxu0 0.0
    %3311 = vmatprep.subr.mxu0 0.0
    %3312 = vmatpush1.msra.mxu0 0.0
    %3313 = vmatprep.subr.mxu0 0.0
    %3314 = vmatpush1.msra.mxu0 0.0
    %3315 = vmatprep.subr.mxu0 0.0
    %3316 = vmatpush1.msra.mxu0 0.0
    %3317 = vmatprep.subr.mxu0 0.0
    %3318 = vmatpush1.msra.mxu0 0.0
    %3319 = vmatprep.subr.mxu0 0.0
    %3320 = vmatpush1.msra.mxu0 0.0
    %3321 = vmatprep.subr.mxu0 0.0
    %3322 = vmatpush1.msra.mxu0 0.0
    %3323 = vmatprep.subr.mxu0 0.0
    %3324 = vmatpush1.msra.mxu0 0.0
    %3325 = vmatprep.subr.mxu0 0.0
    %3326 = vmatpush1.msra.mxu0 0.0
    %3327 = vmatprep.subr.mxu0 0.0
    %3328 = vmatpush1.msra.mxu0 0.0
    %3329 = vmatprep.subr.mxu0 0.0
    %3330 = vmatpush1.msra.mxu0 0.0
    %3331 = vmatprep.subr.mxu0 0.0
    %3332 = vmatpush1.msra.mxu0 0.0
    %3333 = vmatprep.mubr.f32.mxu0 0.0
    %3334 = vmatmul.mubr.f32.gmra.mrb[0].mxu0 %v3264
    %v3335 = vpop.f32.mrb[0].mxu0
    %v3336 = vadd.f32 %v3261, %v3335
    %v3337 = vpop.f32.mrb[0].mxu0
    %3338 = vmatprep.mubr.f32.mxu0 0.0
    %3339 = vmatmul.mubr.f32.gmra.mrb[0].mxu0 %v3267
    %v3340 = vpop.f32.mrb[0].mxu0
    %v3341 = vadd.f32 %v3261, %v3340
    %v3342 = vpop.f32.mrb[0].mxu0
    %3343 = vdwg.mxu0
    %v3344 = vmax.f32 %v3336, 0.0
    %v3345 = vmax.f32 %v3341, 0.0
    %v3346 = vld [vmem:[%s18] sm:$0xff]
    %v3347 = vld [vmem:[%s18 + $0x8] sm:$0xff]
    %v3348 = vld [vmem:[%s18 + $0x10] sm:$0xff]
    %v3349 = vld [vmem:[%s18 + $0x18] sm:$0xff]
    %v3350 = vld [vmem:[%s19] sm:$0x1]
    %v3352 = vlaneseq
    %v3353 = vshrl.u32 %v3352, 7
    %v3354 = vsub.s32 0, %v3353
    %v3355 = vrot.slane %v3350, %v3354
    %v3358 = vsel %vm434, %v3344, 0
    %v3361 = vsel %vm434, %v3345, 0
    %3363 = vmatprep.subr.mxu0 0.0
    %3364 = vmatpush1.msra.mxu0 %v3346
    %3365 = vmatprep.subr.mxu0 0.0
    %3366 = vmatpush1.msra.mxu0 %v3347
    %3367 = vmatprep.subr.mxu0 0.0
    %3368 = vmatpush1.msra.mxu0 %v3348
    %3369 = vmatprep.subr.mxu0 0.0
    %3370 = vmatpush1.msra.mxu0 %v3349
    %3371 = vmatprep.subr.mxu0 0.0
    %3372 = vmatpush1.msra.mxu0 0.0
    %3373 = vmatprep.subr.mxu0 0.0
    %3374 = vmatpush1.msra.mxu0 0.0
    %3375 = vmatprep.subr.mxu0 0.0
    %3376 = vmatpush1.msra.mxu0 0.0
    %3377 = vmatprep.subr.mxu0 0.0
    %3378 = vmatpush1.msra.mxu0 0.0
    %3379 = vmatprep.subr.mxu0 0.0
    %3380 = vmatpush1.msra.mxu0 0.0
    %3381 = vmatprep.subr.mxu0 0.0
    %3382 = vmatpush1.msra.mxu0 0.0
    %3383 = vmatprep.subr.mxu0 0.0
    %3384 = vmatpush1.msra.mxu0 0.0
    %3385 = vmatprep.subr.mxu0 0.0
    %3386 = vmatpush1.msra.mxu0 0.0
    %3387 = vmatprep.subr.mxu0 0.0
    %3388 = vmatpush1.msra.mxu0 0.0
    %3389 = vmatprep.subr.mxu0 0.0
    %3390 = vmatpush1.msra.mxu0 0.0
    %3391 = vmatprep.subr.mxu0 0.0
    %3392 = vmatpush1.msra.mxu0 0.0
    %3393 = vmatprep.subr.mxu0 0.0
    %3394 = vmatpush1.msra.mxu0 0.0
    %3395 = vmatprep.subr.mxu0 0.0
    %3396 = vmatpush1.msra.mxu0 0.0
    %3397 = vmatprep.subr.mxu0 0.0
    %3398 = vmatpush1.msra.mxu0 0.0
    %3399 = vmatprep.subr.mxu0 0.0
    %3400 = vmatpush1.msra.mxu0 0.0
    %3401 = vmatprep.subr.mxu0 0.0
    %3402 = vmatpush1.msra.mxu0 0.0
    %3403 = vmatprep.subr.mxu0 0.0
    %3404 = vmatpush1.msra.mxu0 0.0
    %3405 = vmatprep.subr.mxu0 0.0
    %3406 = vmatpush1.msra.mxu0 0.0
    %3407 = vmatprep.subr.mxu0 0.0
    %3408 = vmatpush1.msra.mxu0 0.0
    %3409 = vmatprep.subr.mxu0 0.0
    %3410 = vmatpush1.msra.mxu0 0.0
    %3411 = vmatprep.subr.mxu0 0.0
    %3412 = vmatpush1.msra.mxu0 0.0
    %3413 = vmatprep.subr.mxu0 0.0
    %3414 = vmatpush1.msra.mxu0 0.0
    %3415 = vmatprep.subr.mxu0 0.0
    %3416 = vmatpush1.msra.mxu0 0.0
    %3417 = vmatprep.subr.mxu0 0.0
    %3418 = vmatpush1.msra.mxu0 0.0
    %3419 = vmatprep.subr.mxu0 0.0
    %3420 = vmatpush1.msra.mxu0 0.0
    %3421 = vmatprep.subr.mxu0 0.0
    %3422 = vmatpush1.msra.mxu0 0.0
    %3423 = vmatprep.subr.mxu0 0.0
    %3424 = vmatpush1.msra.mxu0 0.0
    %3425 = vmatprep.subr.mxu0 0.0
    %3426 = vmatpush1.msra.mxu0 0.0
    %3427 = vmatprep.mubr.f32.mxu0 0.0
    %3428 = vmatmul.mubr.f32.gmra.mrb[0].mxu0 %v3358
    %v3429 = vpop.f32.mrb[0].mxu0
    %v3430 = vadd.f32 %v3355, %v3429
    %v3431 = vpop.f32.mrb[0].mxu0
    %3432 = vmatprep.mubr.f32.mxu0 0.0
    %3433 = vmatmul.mubr.f32.gmra.mrb[0].mxu0 %v3361
    %v3434 = vpop.f32.mrb[0].mxu0
    %v3435 = vadd.f32 %v3355, %v3434
    %v3436 = vpop.f32.mrb[0].mxu0
    %3437 = vdwg.mxu0
    %3438 = vst [vmem:[#allocation28] sm:$0xff] %v3430
    %3439 = vst [vmem:[#allocation28 + $0x8] sm:$0xff] %v3435
    // Predicated region
    $region146: #{tpu_custom_call.1} parent=1 // pred_check
      _
    $region147: #{tpu_custom_call.1} parent=1 // pred_check_branch
      %3441 = sbr.rel (0) target = $region149
    $region148: #{tpu_custom_call.1} parent=1 // pred_region
      %s3443 = ssub.s32 256, 256
      %3444 = vsyncadd [#allocation4], %s3443
      %s3445 = sshll.u32 [#allocation28], 4
      %s3446 = int_to_ptr.vmem [resolvable:$true] %s3445
      %3451 = dma.vmem_to_hbm [thread:$0]  %s3446, 256, %s20, [#allocation4], 128, 128, 8
    $region149: #{tpu_custom_call.1} parent=1 // pred_fallthru
      _
    // Predicated region
    $region150: #{tpu_custom_call.1} parent=1 // pred_check
      _
    $region151: #{tpu_custom_call.1} parent=1 // pred_check_branch
      %3453 = sbr.rel (0) target = $region153
    $region152: #{tpu_custom_call.1} parent=1 // pred_region
      %3454 = dma.done [#allocation4], 256
    $region153: #{tpu_custom_call.1} parent=1 // pred_fallthru
      _
    %3455 = vsyncpa [#allocation3], 1
    %3456 = vsyncpa [#allocation6], 1
    %3457 = vsyncpa [#allocation9], 1
    %3458 = vsyncpa [#allocation12], 1
    %3459 = vsyncpa [#allocation15], 1
    %3460 = vsyncpa [#allocation18], 1
    %3461 = vsyncpa [#allocation21], 1
    %3462 = vsyncpa [#allocation24], 1
    %3463 = vsyncpa [#allocation27], 1
    %3464 = vsyncpa [#allocation4], 1

</llo_original>
